<compile_context>
chip_gen: v5e
topology: v5e:2x2
jax: 0.10.0
libtpu: 0.0.40
codegen_flags: <defaults>
</compile_context>

<pallas_src>
import functools
import math

import jax
import jax.numpy as jnp
from jax.experimental import pallas as pl
from jax.experimental.pallas import tpu as pltpu

EPS = 1e-5                      # nn.BatchNorm2d default
VMEM_LIMIT = 32 * 1024 * 1024   # explicit scoped-VMEM budget (safe on v5e/v6e/v7x)


# --------------------------------------------------------------------------- #
# helpers
# --------------------------------------------------------------------------- #
def _rup(n, m=128):
    return ((n + m - 1) // m) * m


def _pad_last(x, n):
    pad = n - x.shape[-1]
    if pad == 0:
        return x
    return jnp.pad(x, [(0, 0)] * (x.ndim - 1) + [(0, pad)])


def _deconv_wmat(w, cin_p, cout_p):
    """(Cin, Cout, 4, 4) PyTorch ConvTranspose2d weight -> (Cin_p, 16*Cout_p) bf16.

    Column layout: (ky*4 + kx)*Cout_p + co, so each tap occupies a lane-aligned
    128-multiple slice of the matmul output.
    """
    cin, cout = w.shape[0], w.shape[1]
    wp = jnp.zeros((cin_p, cout_p, 4, 4), jnp.float32)
    wp = wp.at[:cin, :cout].set(w.astype(jnp.float32))
    wm = jnp.transpose(wp, (0, 2, 3, 1)).reshape(cin_p, 16 * cout_p)
    return wm.astype(jnp.bfloat16)


def _bn_scale_shift(s, sq, count, gamma, beta):
    """Fold training-mode BatchNorm into per-channel scale/shift (one-pass stats)."""
    mean = s / count
    var = jnp.maximum(sq / count - mean * mean, 0.0)
    inv = jax.lax.rsqrt(var + EPS)
    scale = gamma * inv
    shift = beta - mean * scale
    return jnp.stack([scale, shift], axis=0).astype(jnp.float32)  # (2, C)


# --------------------------------------------------------------------------- #
# kernels
# --------------------------------------------------------------------------- #
def _initial_convt_kernel(z_ref, w_ref, y_ref):
    # ConvTranspose2d(nz, C0, 4, 1, 0) on a 1x1 input is a single matmul:
    #   out[b, ky, kx, co] = sum_ci z[b, ci] * W[ci, co, ky, kx]
    y_ref[...] = jnp.dot(z_ref[...], w_ref[...],
                         preferred_element_type=jnp.float32)


# Output-parity tap table: output row 2m+py sums the (row_offset, ky) pairs below,
# where row_offset indexes the 1-zero-padded tap scratch (scratch row = input row + 1).
# Columns are analogous.
_TAPS = (((1, 1), (0, 3)),    # parity 0 (even output rows / cols)
         ((2, 0), (1, 2)))    # parity 1 (odd  output rows / cols)


def _fused_bn_relu_deconv_kernel(x_ref, ss_ref, w_ref, *refs,
                                 apply_tanh, compute_stats):
    """Fused [BN(scale/shift) + ReLU] -> ConvTranspose2d(4, s=2, p=1) -> stats/tanh.

    x_ref   : (1, H*W, Cin)    raw conv output of the previous layer (f32, flattened)
    ss_ref  : (2, Cin)         row0 = scale, row1 = shift  (BN folded)
    w_ref   : (Cin, 16*Cout)   bf16 weights, all 16 taps concatenated on N
    yp_ref  : (4, H, W, Cout)  parity-grouped output: index p = py*2 + px,
                               out[2m+py, 2n+px] = yp[p, m, n]
    stat_ref: (1, 2, Cout)     per-image channel sum / sum-of-squares (only if
                               compute_stats)
    t_ref   : (H+2, W+2, 16*Cout) f32 scratch (per-tap partial products, zero border)
    """
    if compute_stats:
        yp_ref, stat_ref, t_ref = refs
    else:
        yp_ref, t_ref = refs
        stat_ref = None

    H, W, Cout = yp_ref.shape[1], yp_ref.shape[2], yp_ref.shape[3]
    NCT = w_ref.shape[1]                               # 16 * Cout

    # ---- fused BatchNorm (precomputed scale/shift) + ReLU of the previous layer ----
    ss = ss_ref[...]
    scale = ss[0:1, :]
    shift = ss[1:2, :]
    a = jnp.maximum(x_ref[0] * scale + shift, 0.0)     # (H*W, Cin) f32

    # ---- whole ConvTranspose2d as ONE wide MXU matmul over the H*W real pixels ----
    # M = H*W, K = Cin (128-padded), N = 16*Cout (all 16 taps at once)
    t2 = jnp.dot(a.astype(jnp.bfloat16), w_ref[...],
                 preferred_element_type=jnp.float32)   # (H*W, 16*Cout)

    # ---- tap scratch with a 1-pixel zero border (deconv boundary handling) ----
    # Border is re-zeroed every grid step (cheap) so the kernel carries no state
    # across iterations (safe with "parallel" batch sharding across TensorCores).
    zrow = jnp.zeros((1, W + 2, NCT), jnp.float32)
    zcol = jnp.zeros((H, 1, NCT), jnp.float32)
    t_ref[0:1, :, :] = zrow
    t_ref[H + 1:H + 2, :, :] = zrow
    t_ref[1:H + 1, 0:1, :] = zcol
    t_ref[1:H + 1, W + 1:W + 2, :] = zcol
    for r in range(H):                                 # interior rows
        t_ref[r + 1, 1:W + 1, :] = t2[r * W:(r + 1) * W, :]

    # ---- recombine the 16 tap planes into the 4 stride-2 output parities ----
    s_sum = jnp.zeros((1, 1, Cout), jnp.float32)
    s_sq = jnp.zeros((1, 1, Cout), jnp.float32)
    for py in range(2):
        for px in range(2):
            plane = jnp.zeros((H, W, Cout), jnp.float32)
            for ry, ky in _TAPS[py]:
                for rx, kx in _TAPS[px]:
                    c0 = (ky * 4 + kx) * Cout
                    plane = plane + t_ref[ry:ry + H, rx:rx + W, c0:c0 + Cout]
            if apply_tanh:
                plane = jnp.tanh(plane)
            yp_ref[py * 2 + px] = plane
            if compute_stats:
                s_sum = s_sum + jnp.sum(plane, axis=(0, 1), keepdims=True)
                s_sq = s_sq + jnp.sum(plane * plane, axis=(0, 1), keepdims=True)
    if compute_stats:
        stat_ref[...] = jnp.concatenate([s_sum, s_sq], axis=1)   # (1, 2, Cout)


# --------------------------------------------------------------------------- #
# pallas_call wrappers
# --------------------------------------------------------------------------- #
def _run_initial(z, wmat):
    B, nzp = z.shape
    n16c = wmat.shape[1]
    return pl.pallas_call(
        _initial_convt_kernel,
        out_shape=jax.ShapeDtypeStruct((B, n16c), jnp.float32),
        grid_spec=pltpu.PrefetchScalarGridSpec(
            num_scalar_prefetch=0,
            grid=(1,),
            in_specs=[pl.BlockSpec((B, nzp), lambda i: (0, 0)),
                      pl.BlockSpec((nzp, n16c), lambda i: (0, 0))],
            out_specs=pl.BlockSpec((B, n16c), lambda i: (0, 0))),
        compiler_params=pltpu.CompilerParams(
            dimension_semantics=("arbitrary",),
            vmem_limit_bytes=VMEM_LIMIT),
    )(z, wmat)


def _run_fused_deconv(x_flat, ss, wmat, H, W, cout_p, apply_tanh):
    B, HW, cin_p = x_flat.shape
    compute_stats = not apply_tanh
    kern = functools.partial(_fused_bn_relu_deconv_kernel,
                             apply_tanh=apply_tanh, compute_stats=compute_stats)

    yp_shape = jax.ShapeDtypeStruct((B * 4, H, W, cout_p), jnp.float32)
    yp_spec = pl.BlockSpec((4, H, W, cout_p), lambda b: (b, 0, 0, 0))
    if compute_stats:
        out_shape = (yp_shape, jax.ShapeDtypeStruct((B, 2, cout_p), jnp.float32))
        out_specs = (yp_spec, pl.BlockSpec((1, 2, cout_p), lambda b: (b, 0, 0)))
    else:
        out_shape = yp_shape
        out_specs = yp_spec

    res = pl.pallas_call(
        kern,
        out_shape=out_shape,
        grid_spec=pltpu.PrefetchScalarGridSpec(
            num_scalar_prefetch=0,
            grid=(B,),
            in_specs=[pl.BlockSpec((1, HW, cin_p), lambda b: (b, 0, 0)),
                      pl.BlockSpec((2, cin_p), lambda b: (0, 0)),
                      pl.BlockSpec((cin_p, 16 * cout_p), lambda b: (0, 0))],
            out_specs=out_specs,
            scratch_shapes=[pltpu.VMEM((H + 2, W + 2, 16 * cout_p), jnp.float32)]),
        compiler_params=pltpu.CompilerParams(
            dimension_semantics=("parallel",),   # batch axis -> both TCs on v7x
            vmem_limit_bytes=VMEM_LIMIT),
    )(x_flat, ss, wmat)
    if compute_stats:
        return res
    return res, None


# --------------------------------------------------------------------------- #
# DCGAN_G forward
# --------------------------------------------------------------------------- #
def dcgan_g_forward(z_nchw, layers):
    """layers[0] = initial, layers[-1] = final (tanh), middle = pyramid stages."""
    B, nz_in, hz, wz = z_nchw.shape
    assert hz == 1 and wz == 1, "DCGAN_G expects a (B, nz, 1, 1) latent input"

    # ---- initial ConvTranspose2d(nz -> C0, 4, 1, 0) ----
    lyr = layers[0]
    nz, C0 = lyr["w"].shape[0], lyr["w"].shape[1]
    nzp, C0p = _rup(nz), _rup(C0)
    z = _pad_last(z_nchw.reshape(B, nz).astype(jnp.float32), nzp).astype(jnp.bfloat16)
    w0 = _deconv_wmat(lyr["w"], nzp, C0p)
    y = _run_initial(z, w0).reshape(B, 4, 4, C0p)             # raw conv output, f32

    s = jnp.sum(y, axis=(0, 1, 2))
    sq = jnp.sum(y * y, axis=(0, 1, 2))
    ss = _bn_scale_shift(s, sq, B * 16,
                         _pad_last(lyr["gamma"], C0p), _pad_last(lyr["beta"], C0p))

    # ---- pyramid + final ConvTranspose2d(Cin -> Cout, 4, 2, 1) stages ----
    x = y
    n_layers = len(layers)
    for i in range(1, n_layers):
        lyr = layers[i]
        is_final = (i == n_layers - 1)
        Cout = lyr["w"].shape[1]
        cin_p = x.shape[-1]
        cout_p = _rup(Cout)
        H, W = x.shape[1], x.shape[2]

        wmat = _deconv_wmat(lyr["w"], cin_p, cout_p)
        x_flat = x.reshape(B, H * W, cin_p)                    # free-ish XLA glue
        yp, stats = _run_fused_deconv(x_flat, ss, wmat, H, W, cout_p,
                                      apply_tanh=is_final)

        # parity-grouped (B*4, H, W, C) -> NHWC (B, 2H, 2W, C)   (free-ish XLA glue)
        y = yp.reshape(B, 2, 2, H, W, cout_p).transpose(0, 3, 1, 4, 2, 5)
        y = y.reshape(B, 2 * H, 2 * W, cout_p)

        if is_final:
            out = y[..., :Cout]                                # drop channel padding
            return jnp.transpose(out, (0, 3, 1, 2))            # back to NCHW

        s = jnp.sum(stats[:, 0, :], axis=0)
        sq = jnp.sum(stats[:, 1, :], axis=0)
        ss = _bn_scale_shift(s, sq, B * (2 * H) * (2 * W),
                             _pad_last(lyr["gamma"], cout_p),
                             _pad_last(lyr["beta"], cout_p))
        x = y


# --------------------------------------------------------------------------- #
# parameter construction (mirrors the PyTorch module's layer schedule)
# --------------------------------------------------------------------------- #
def _convt_weight(key, cin, cout):
    bound = 1.0 / math.sqrt(cin * 16)
    return jax.random.uniform(key, (cin, cout, 4, 4), jnp.float32, -bound, bound)


def init_dcgan_g_params(key, isize, nz, nc, ngf, n_extra_layers=0):
    assert isize % 16 == 0, "isize has to be a multiple of 16"
    assert n_extra_layers == 0  # TODO(synk): extra 3x3 conv blocks not implemented
    cngf, tisize = ngf // 2, 4
    while tisize != isize:
        cngf, tisize = cngf * 2, tisize * 2
    layers = []
    key, k1, k2, k3 = jax.random.split(key, 4)
    layers.append(dict(w=_convt_weight(k1, nz, cngf),
                       gamma=1.0 + 0.1 * jax.random.normal(k2, (cngf,)),
                       beta=0.1 * jax.random.normal(k3, (cngf,))))
    csize = 4
    while csize < isize // 2:
        key, k1, k2, k3 = jax.random.split(key, 4)
        layers.append(dict(w=_convt_weight(k1, cngf, cngf // 2),
                           gamma=1.0 + 0.1 * jax.random.normal(k2, (cngf // 2,)),
                           beta=0.1 * jax.random.normal(k3, (cngf // 2,))))
        cngf, csize = cngf // 2, csize * 2
    key, k1 = jax.random.split(key)
    layers.append(dict(w=_convt_weight(k1, cngf, nc)))         # final, no BN
    return layers


# --------------------------------------------------------------------------- #
# pure-JAX reference (same math, same bf16 operand precision)
# --------------------------------------------------------------------------- #
def _reference_deconv_s2(x, w):
    """PyTorch ConvTranspose2d(Cin, Cout, 4, stride=2, padding=1, bias=False), NHWC."""
    B, H, W, Cin = x.shape
    Cout = w.shape[1]
    xb = x.astype(jnp.bfloat16)
    wb = w.astype(jnp.bfloat16)
    out = jnp.zeros((B, 2 * H, 2 * W, Cout), jnp.float32)
    for ky in range(4):
        for kx in range(4):
            contrib = jnp.einsum("bhwi,io->bhwo", xb, wb[:, :, ky, kx],
                                 preferred_element_type=jnp.float32)
            ylo = 1 if ky == 0 else 0
            yhi = H - 2 if ky == 3 else H - 1
            xlo = 1 if kx == 0 else 0
            xhi = W - 2 if kx == 3 else W - 1
            oy, ox = 2 * ylo + ky - 1, 2 * xlo + kx - 1
            ny, nx = yhi - ylo + 1, xhi - xlo + 1
            out = out.at[:, oy:oy + 2 * ny:2, ox:ox + 2 * nx:2, :].add(
                contrib[:, ylo:ylo + ny, xlo:xlo + nx, :])
    return out


def _reference_forward(z_nchw, layers):
    B = z_nchw.shape[0]
    x = None
    for idx, lyr in enumerate(layers):
        w = lyr["w"].astype(jnp.float32)
        if idx == 0:
            z2 = z_nchw.reshape(B, -1).astype(jnp.bfloat16)
            y = jnp.einsum("bi,iokl->bklo", z2, w.astype(jnp.bfloat16),
                           preferred_element_type=jnp.float32)
        else:
            y = _reference_deconv_s2(x, w)
        if idx == len(layers) - 1:
            x = jnp.tanh(y)
        else:
            mean = jnp.mean(y, axis=(0, 1, 2))
            var = jnp.mean(jnp.square(y - mean), axis=(0, 1, 2))
            yn = (y - mean) * jax.lax.rsqrt(var + EPS)
            x = jnp.maximum(yn * lyr["gamma"] + lyr["beta"], 0.0)
    return jnp.transpose(x, (0, 3, 1, 2))


# --------------------------------------------------------------------------- #
if __name__ == "__main__":
    key = jax.random.PRNGKey(0)
    B, isize, nz, nc, ngf = 2, 16, 4, 3, 32

    k_z, k_p = jax.random.split(key)
    z = jax.random.normal(k_z, (B, nz, 1, 1), dtype=jnp.float32)
    layers = init_dcgan_g_params(k_p, isize, nz, nc, ngf)

    out = jax.block_until_ready(jax.jit(dcgan_g_forward)(z, layers))
    ref = jax.block_until_ready(_reference_forward(z, layers))

    assert out.shape == (B, nc, isize, isize)
    err = float(jnp.max(jnp.abs(out - ref)))
    assert err < 5e-3, f"mismatch vs reference: max abs err = {err}"

    print("KERNEL_OK")
</pallas_src>

<mosaic_0001>
module attributes {stable_mosaic.version = 11 : i64} {
  func.func @_initial_convt_kernel(%arg0: i32, %arg1: memref<2x128xbf16, #tpu.memory_space<vmem>>, %arg2: memref<128x2048xbf16, #tpu.memory_space<vmem>>, %arg3: memref<2x2048xf32, #tpu.memory_space<vmem>>) attributes {dimension_semantics = [#tpu.dimension_semantics<arbitrary>], iteration_bounds = array<i64: 1>, scalar_prefetch = 0 : i64, scratch_operands = 0 : i64, tpu.core_type = #tpu.core_type<tc>, window_params = [{pipeline_mode = #tpu.pipeline_mode<synchronous>, transform_indices = @transform_0, window_bounds = array<i64: 2, 128>}, {pipeline_mode = #tpu.pipeline_mode<synchronous>, transform_indices = @transform_1, window_bounds = array<i64: 128, 2048>}, {pipeline_mode = #tpu.pipeline_mode<synchronous>, transform_indices = @transform_2, window_bounds = array<i64: 2, 2048>}]} {
    %c0 = arith.constant 0 : index
    %c0_0 = arith.constant 0 : index
    %0 = vector.load %arg1[%c0, %c0_0] : memref<2x128xbf16, #tpu.memory_space<vmem>>, vector<2x128xbf16>
    %c0_1 = arith.constant 0 : index
    %c0_2 = arith.constant 0 : index
    %1 = vector.load %arg2[%c0_1, %c0_2] : memref<128x2048xbf16, #tpu.memory_space<vmem>>, vector<128x2048xbf16>
    %cst = arith.constant dense<0.000000e+00> : vector<2x2048xf32>
    %2 = tpu.matmul %0, %1, %cst {dimension_numbers = #tpu.dot_dimension_numbers<[1], [0], [0], [1], [0, 0, 1, 1], [], []>} : vector<2x128xbf16>, vector<128x2048xbf16>, vector<2x2048xf32> -> vector<2x2048xf32>
    %c0_3 = arith.constant 0 : index
    %c0_4 = arith.constant 0 : index
    %3 = vector.load %arg3[%c0_3, %c0_4] : memref<2x2048xf32, #tpu.memory_space<vmem>>, vector<2x2048xf32>
    tpu.vector_store %arg3[%c0_3, %c0_4], %2 {strides = array<i32>} : memref<2x2048xf32, #tpu.memory_space<vmem>>, vector<2x2048xf32>,
    return
  }
  func.func @transform_0(%arg0: i32) -> (i32, i32) {
    %c0_i32 = arith.constant 0 : i32
    %c0_i32_0 = arith.constant 0 : i32
    %c0_i32_1 = arith.constant 0 : i32
    return %c0_i32, %c0_i32_0 : i32, i32
  }
  func.func @transform_1(%arg0: i32) -> (i32, i32) {
    %c0_i32 = arith.constant 0 : i32
    %c0_i32_0 = arith.constant 0 : i32
    %c0_i32_1 = arith.constant 0 : i32
    return %c0_i32, %c0_i32_0 : i32, i32
  }
  func.func @transform_2(%arg0: i32) -> (i32, i32) {
    %c0_i32 = arith.constant 0 : i32
    %c0_i32_0 = arith.constant 0 : i32
    %c0_i32_1 = arith.constant 0 : i32
    return %c0_i32, %c0_i32_0 : i32, i32
  }
}

module attributes {stable_mosaic.version = 11 : i64} {
  func.func @_fused_bn_relu_deconv_kernel(%arg0: i32, %arg1: memref<1x16x128xf32, #tpu.memory_space<vmem>>, %arg2: memref<2x128xf32, #tpu.memory_space<vmem>>, %arg3: memref<128x2048xbf16, #tpu.memory_space<vmem>>, %arg4: memref<4x4x4x128xf32, #tpu.memory_space<vmem>>, %arg5: memref<1x2x128xf32, #tpu.memory_space<vmem>>, %arg6: memref<6x6x2048xf32, #tpu.memory_space<vmem>>) attributes {dimension_semantics = [#tpu.dimension_semantics<parallel>], iteration_bounds = array<i64: 2>, scalar_prefetch = 0 : i64, scratch_operands = 1 : i64, tpu.core_type = #tpu.core_type<tc>, window_params = [{transform_indices = @transform_0, window_bounds = array<i64: 1, 16, 128>}, {pipeline_mode = #tpu.pipeline_mode<synchronous>, transform_indices = @transform_1, window_bounds = array<i64: 2, 128>}, {pipeline_mode = #tpu.pipeline_mode<synchronous>, transform_indices = @transform_2, window_bounds = array<i64: 128, 2048>}, {transform_indices = @transform_3, window_bounds = array<i64: 4, 4, 4, 128>}, {transform_indices = @transform_4, window_bounds = array<i64: 1, 2, 128>}]} {
    %c0 = arith.constant 0 : index
    %c0_0 = arith.constant 0 : index
    %0 = vector.load %arg2[%c0, %c0_0] : memref<2x128xf32, #tpu.memory_space<vmem>>, vector<2x128xf32>
    %1 = vector.extract_strided_slice %0 {offsets = [0, 0], sizes = [1, 128], strides = [1, 1]} : vector<2x128xf32> to vector<1x128xf32>
    %2 = vector.extract_strided_slice %0 {offsets = [1, 0], sizes = [1, 128], strides = [1, 1]} : vector<2x128xf32> to vector<1x128xf32>
    %c0_1 = arith.constant 0 : index
    %c0_2 = arith.constant 0 : index
    %c0_3 = arith.constant 0 : index
    %3 = vector.load %arg1[%c0_1, %c0_2, %c0_3] : memref<1x16x128xf32, #tpu.memory_space<vmem>>, vector<1x16x128xf32>
    %4 = vector.shape_cast %3 : vector<1x16x128xf32> to vector<16x128xf32>
    %5 = vector.broadcast %1 : vector<1x128xf32> to vector<16x128xf32>
    %6 = arith.mulf %4, %5 : vector<16x128xf32>
    %7 = vector.broadcast %2 : vector<1x128xf32> to vector<16x128xf32>
    %8 = arith.addf %6, %7 : vector<16x128xf32>
    %cst = arith.constant 0.000000e+00 : f32
    %9 = vector.broadcast %cst : f32 to vector<16x128xf32>
    %10 = arith.maximumf %8, %9 : vector<16x128xf32>
    %11 = arith.truncf %10 : vector<16x128xf32> to vector<16x128xbf16>
    %c0_4 = arith.constant 0 : index
    %c0_5 = arith.constant 0 : index
    %12 = vector.load %arg3[%c0_4, %c0_5] : memref<128x2048xbf16, #tpu.memory_space<vmem>>, vector<128x2048xbf16>
    %cst_6 = arith.constant dense<0.000000e+00> : vector<16x2048xf32>
    %13 = tpu.matmul %11, %12, %cst_6 {dimension_numbers = #tpu.dot_dimension_numbers<[1], [0], [0], [1], [0, 0, 1, 1], [], []>} : vector<16x128xbf16>, vector<128x2048xbf16>, vector<16x2048xf32> -> vector<16x2048xf32>
    %cst_7 = arith.constant 0.000000e+00 : f32
    %14 = vector.broadcast %cst_7 : f32 to vector<1x6x2048xf32>
    %cst_8 = arith.constant 0.000000e+00 : f32
    %15 = vector.broadcast %cst_8 : f32 to vector<4x1x2048xf32>
    %c0_9 = arith.constant 0 : index
    %c0_10 = arith.constant 0 : index
    %c0_11 = arith.constant 0 : index
    %16 = vector.load %arg6[%c0_9, %c0_10, %c0_11] : memref<6x6x2048xf32, #tpu.memory_space<vmem>>, vector<1x6x2048xf32>
    tpu.vector_store %arg6[%c0_9, %c0_10, %c0_11], %14 {strides = array<i32>} : memref<6x6x2048xf32, #tpu.memory_space<vmem>>, vector<1x6x2048xf32>,
    %c5 = arith.constant 5 : index
    %c0_12 = arith.constant 0 : index
    %c0_13 = arith.constant 0 : index
    %17 = vector.load %arg6[%c5, %c0_12, %c0_13] : memref<6x6x2048xf32, #tpu.memory_space<vmem>>, vector<1x6x2048xf32>
    tpu.vector_store %arg6[%c5, %c0_12, %c0_13], %14 {strides = array<i32>} : memref<6x6x2048xf32, #tpu.memory_space<vmem>>, vector<1x6x2048xf32>,
    %c1 = arith.constant 1 : index
    %c0_14 = arith.constant 0 : index
    %c0_15 = arith.constant 0 : index
    %18 = vector.load %arg6[%c1, %c0_14, %c0_15] : memref<6x6x2048xf32, #tpu.memory_space<vmem>>, vector<4x1x2048xf32>
    tpu.vector_store %arg6[%c1, %c0_14, %c0_15], %15 {strides = array<i32>} : memref<6x6x2048xf32, #tpu.memory_space<vmem>>, vector<4x1x2048xf32>,
    %c1_16 = arith.constant 1 : index
    %c5_17 = arith.constant 5 : index
    %c0_18 = arith.constant 0 : index
    %19 = vector.load %arg6[%c1_16, %c5_17, %c0_18] : memref<6x6x2048xf32, #tpu.memory_space<vmem>>, vector<4x1x2048xf32>
    tpu.vector_store %arg6[%c1_16, %c5_17, %c0_18], %15 {strides = array<i32>} : memref<6x6x2048xf32, #tpu.memory_space<vmem>>, vector<4x1x2048xf32>,
    %20 = vector.extract_strided_slice %13 {offsets = [0, 0], sizes = [4, 2048], strides = [1, 1]} : vector<16x2048xf32> to vector<4x2048xf32>
    %c1_19 = arith.constant 1 : index
    %c1_20 = arith.constant 1 : index
    %c0_21 = arith.constant 0 : index
    %21 = vector.load %arg6[%c1_19, %c1_20, %c0_21] : memref<6x6x2048xf32, #tpu.memory_space<vmem>>, vector<1x4x2048xf32>
    %22 = vector.shape_cast %21 : vector<1x4x2048xf32> to vector<4x2048xf32>
    %23 = vector.shape_cast %20 : vector<4x2048xf32> to vector<1x4x2048xf32>
    tpu.vector_store %arg6[%c1_19, %c1_20, %c0_21], %23 {strides = array<i32>} : memref<6x6x2048xf32, #tpu.memory_space<vmem>>, vector<1x4x2048xf32>,
    %24 = vector.extract_strided_slice %13 {offsets = [4, 0], sizes = [4, 2048], strides = [1, 1]} : vector<16x2048xf32> to vector<4x2048xf32>
    %c2 = arith.constant 2 : index
    %c1_22 = arith.constant 1 : index
    %c0_23 = arith.constant 0 : index
    %25 = vector.load %arg6[%c2, %c1_22, %c0_23] : memref<6x6x2048xf32, #tpu.memory_space<vmem>>, vector<1x4x2048xf32>
    %26 = vector.shape_cast %25 : vector<1x4x2048xf32> to vector<4x2048xf32>
    %27 = vector.shape_cast %24 : vector<4x2048xf32> to vector<1x4x2048xf32>
    tpu.vector_store %arg6[%c2, %c1_22, %c0_23], %27 {strides = array<i32>} : memref<6x6x2048xf32, #tpu.memory_space<vmem>>, vector<1x4x2048xf32>,
    %28 = vector.extract_strided_slice %13 {offsets = [8, 0], sizes = [4, 2048], strides = [1, 1]} : vector<16x2048xf32> to vector<4x2048xf32>
    %c3 = arith.constant 3 : index
    %c1_24 = arith.constant 1 : index
    %c0_25 = arith.constant 0 : index
    %29 = vector.load %arg6[%c3, %c1_24, %c0_25] : memref<6x6x2048xf32, #tpu.memory_space<vmem>>, vector<1x4x2048xf32>
    %30 = vector.shape_cast %29 : vector<1x4x2048xf32> to vector<4x2048xf32>
    %31 = vector.shape_cast %28 : vector<4x2048xf32> to vector<1x4x2048xf32>
    tpu.vector_store %arg6[%c3, %c1_24, %c0_25], %31 {strides = array<i32>} : memref<6x6x2048xf32, #tpu.memory_space<vmem>>, vector<1x4x2048xf32>,
    %32 = vector.extract_strided_slice %13 {offsets = [12, 0], sizes = [4, 2048], strides = [1, 1]} : vector<16x2048xf32> to vector<4x2048xf32>
    %c4 = arith.constant 4 : index
    %c1_26 = arith.constant 1 : index
    %c0_27 = arith.constant 0 : index
    %33 = vector.load %arg6[%c4, %c1_26, %c0_27] : memref<6x6x2048xf32, #tpu.memory_space<vmem>>, vector<1x4x2048xf32>
    %34 = vector.shape_cast %33 : vector<1x4x2048xf32> to vector<4x2048xf32>
    %35 = vector.shape_cast %32 : vector<4x2048xf32> to vector<1x4x2048xf32>
    tpu.vector_store %arg6[%c4, %c1_26, %c0_27], %35 {strides = array<i32>} : memref<6x6x2048xf32, #tpu.memory_space<vmem>>, vector<1x4x2048xf32>,
    %cst_28 = arith.constant 0.000000e+00 : f32
    %36 = vector.broadcast %cst_28 : f32 to vector<1x1x128xf32>
    %cst_29 = arith.constant 0.000000e+00 : f32
    %37 = vector.broadcast %cst_29 : f32 to vector<1x1x128xf32>
    %cst_30 = arith.constant 0.000000e+00 : f32
    %38 = vector.broadcast %cst_30 : f32 to vector<4x4x128xf32>
    %c1_31 = arith.constant 1 : index
    %c1_32 = arith.constant 1 : index
    %c640 = arith.constant 640 : index
    %39 = vector.load %arg6[%c1_31, %c1_32, %c640] : memref<6x6x2048xf32, #tpu.memory_space<vmem>>, vector<4x4x128xf32>
    %40 = arith.addf %38, %39 : vector<4x4x128xf32>
    %c1_33 = arith.constant 1 : index
    %c0_34 = arith.constant 0 : index
    %c896 = arith.constant 896 : index
    %41 = vector.load %arg6[%c1_33, %c0_34, %c896] : memref<6x6x2048xf32, #tpu.memory_space<vmem>>, vector<4x4x128xf32>
    %42 = arith.addf %40, %41 : vector<4x4x128xf32>
    %c0_35 = arith.constant 0 : index
    %c1_36 = arith.constant 1 : index
    %c1664 = arith.constant 1664 : index
    %43 = vector.load %arg6[%c0_35, %c1_36, %c1664] : memref<6x6x2048xf32, #tpu.memory_space<vmem>>, vector<4x4x128xf32>
    %44 = arith.addf %42, %43 : vector<4x4x128xf32>
    %c0_37 = arith.constant 0 : index
    %c0_38 = arith.constant 0 : index
    %c1920 = arith.constant 1920 : index
    %45 = vector.load %arg6[%c0_37, %c0_38, %c1920] : memref<6x6x2048xf32, #tpu.memory_space<vmem>>, vector<4x4x128xf32>
    %46 = arith.addf %44, %45 : vector<4x4x128xf32>
    %c0_39 = arith.constant 0 : index
    %c0_40 = arith.constant 0 : index
    %c0_41 = arith.constant 0 : index
    %c0_42 = arith.constant 0 : index
    %47 = vector.load %arg4[%c0_39, %c0_40, %c0_41, %c0_42] : memref<4x4x4x128xf32, #tpu.memory_space<vmem>>, vector<1x4x4x128xf32>
    %48 = vector.shape_cast %47 : vector<1x4x4x128xf32> to vector<4x4x128xf32>
    %49 = vector.shape_cast %46 : vector<4x4x128xf32> to vector<1x4x4x128xf32>
    tpu.vector_store %arg4[%c0_39, %c0_40, %c0_41, %c0_42], %49 {strides = array<i32>} : memref<4x4x4x128xf32, #tpu.memory_space<vmem>>, vector<1x4x4x128xf32>,
    %cst_43 = arith.constant dense<0.000000e+00> : vector<128xf32>
    %50 = vector.multi_reduction <add>, %46, %cst_43 [0, 1] : vector<4x4x128xf32> to vector<128xf32>
    %51 = vector.shape_cast %50 : vector<128xf32> to vector<1x1x128xf32>
    %52 = arith.addf %36, %51 : vector<1x1x128xf32>
    %53 = arith.mulf %46, %46 : vector<4x4x128xf32>
    %cst_44 = arith.constant dense<0.000000e+00> : vector<128xf32>
    %54 = vector.multi_reduction <add>, %53, %cst_44 [0, 1] : vector<4x4x128xf32> to vector<128xf32>
    %55 = vector.shape_cast %54 : vector<128xf32> to vector<1x1x128xf32>
    %56 = arith.addf %37, %55 : vector<1x1x128xf32>
    %cst_45 = arith.constant 0.000000e+00 : f32
    %57 = vector.broadcast %cst_45 : f32 to vector<4x4x128xf32>
    %c1_46 = arith.constant 1 : index
    %c2_47 = arith.constant 2 : index
    %c512 = arith.constant 512 : index
    %58 = vector.load %arg6[%c1_46, %c2_47, %c512] : memref<6x6x2048xf32, #tpu.memory_space<vmem>>, vector<4x4x128xf32>
    %59 = arith.addf %57, %58 : vector<4x4x128xf32>
    %c1_48 = arith.constant 1 : index
    %c1_49 = arith.constant 1 : index
    %c768 = arith.constant 768 : index
    %60 = vector.load %arg6[%c1_48, %c1_49, %c768] : memref<6x6x2048xf32, #tpu.memory_space<vmem>>, vector<4x4x128xf32>
    %61 = arith.addf %59, %60 : vector<4x4x128xf32>
    %c0_50 = arith.constant 0 : index
    %c2_51 = arith.constant 2 : index
    %c1536 = arith.constant 1536 : index
    %62 = vector.load %arg6[%c0_50, %c2_51, %c1536] : memref<6x6x2048xf32, #tpu.memory_space<vmem>>, vector<4x4x128xf32>
    %63 = arith.addf %61, %62 : vector<4x4x128xf32>
    %c0_52 = arith.constant 0 : index
    %c1_53 = arith.constant 1 : index
    %c1792 = arith.constant 1792 : index
    %64 = vector.load %arg6[%c0_52, %c1_53, %c1792] : memref<6x6x2048xf32, #tpu.memory_space<vmem>>, vector<4x4x128xf32>
    %65 = arith.addf %63, %64 : vector<4x4x128xf32>
    %c1_54 = arith.constant 1 : index
    %c0_55 = arith.constant 0 : index
    %c0_56 = arith.constant 0 : index
    %c0_57 = arith.constant 0 : index
    %66 = vector.load %arg4[%c1_54, %c0_55, %c0_56, %c0_57] : memref<4x4x4x128xf32, #tpu.memory_space<vmem>>, vector<1x4x4x128xf32>
    %67 = vector.shape_cast %66 : vector<1x4x4x128xf32> to vector<4x4x128xf32>
    %68 = vector.shape_cast %65 : vector<4x4x128xf32> to vector<1x4x4x128xf32>
    tpu.vector_store %arg4[%c1_54, %c0_55, %c0_56, %c0_57], %68 {strides = array<i32>} : memref<4x4x4x128xf32, #tpu.memory_space<vmem>>, vector<1x4x4x128xf32>,
    %cst_58 = arith.constant dense<0.000000e+00> : vector<128xf32>
    %69 = vector.multi_reduction <add>, %65, %cst_58 [0, 1] : vector<4x4x128xf32> to vector<128xf32>
    %70 = vector.shape_cast %69 : vector<128xf32> to vector<1x1x128xf32>
    %71 = arith.addf %52, %70 : vector<1x1x128xf32>
    %72 = arith.mulf %65, %65 : vector<4x4x128xf32>
    %cst_59 = arith.constant dense<0.000000e+00> : vector<128xf32>
    %73 = vector.multi_reduction <add>, %72, %cst_59 [0, 1] : vector<4x4x128xf32> to vector<128xf32>
    %74 = vector.shape_cast %73 : vector<128xf32> to vector<1x1x128xf32>
    %75 = arith.addf %56, %74 : vector<1x1x128xf32>
    %cst_60 = arith.constant 0.000000e+00 : f32
    %76 = vector.broadcast %cst_60 : f32 to vector<4x4x128xf32>
    %c2_61 = arith.constant 2 : index
    %c1_62 = arith.constant 1 : index
    %c128 = arith.constant 128 : index
    %77 = vector.load %arg6[%c2_61, %c1_62, %c128] : memref<6x6x2048xf32, #tpu.memory_space<vmem>>, vector<4x4x128xf32>
    %78 = arith.addf %76, %77 : vector<4x4x128xf32>
    %c2_63 = arith.constant 2 : index
    %c0_64 = arith.constant 0 : index
    %c384 = arith.constant 384 : index
    %79 = vector.load %arg6[%c2_63, %c0_64, %c384] : memref<6x6x2048xf32, #tpu.memory_space<vmem>>, vector<4x4x128xf32>
    %80 = arith.addf %78, %79 : vector<4x4x128xf32>
    %c1_65 = arith.constant 1 : index
    %c1_66 = arith.constant 1 : index
    %c1152 = arith.constant 1152 : index
    %81 = vector.load %arg6[%c1_65, %c1_66, %c1152] : memref<6x6x2048xf32, #tpu.memory_space<vmem>>, vector<4x4x128xf32>
    %82 = arith.addf %80, %81 : vector<4x4x128xf32>
    %c1_67 = arith.constant 1 : index
    %c0_68 = arith.constant 0 : index
    %c1408 = arith.constant 1408 : index
    %83 = vector.load %arg6[%c1_67, %c0_68, %c1408] : memref<6x6x2048xf32, #tpu.memory_space<vmem>>, vector<4x4x128xf32>
    %84 = arith.addf %82, %83 : vector<4x4x128xf32>
    %c2_69 = arith.constant 2 : index
    %c0_70 = arith.constant 0 : index
    %c0_71 = arith.constant 0 : index
    %c0_72 = arith.constant 0 : index
    %85 = vector.load %arg4[%c2_69, %c0_70, %c0_71, %c0_72] : memref<4x4x4x128xf32, #tpu.memory_space<vmem>>, vector<1x4x4x128xf32>
    %86 = vector.shape_cast %85 : vector<1x4x4x128xf32> to vector<4x4x128xf32>
    %87 = vector.shape_cast %84 : vector<4x4x128xf32> to vector<1x4x4x128xf32>
    tpu.vector_store %arg4[%c2_69, %c0_70, %c0_71, %c0_72], %87 {strides = array<i32>} : memref<4x4x4x128xf32, #tpu.memory_space<vmem>>, vector<1x4x4x128xf32>,
    %cst_73 = arith.constant dense<0.000000e+00> : vector<128xf32>
    %88 = vector.multi_reduction <add>, %84, %cst_73 [0, 1] : vector<4x4x128xf32> to vector<128xf32>
    %89 = vector.shape_cast %88 : vector<128xf32> to vector<1x1x128xf32>
    %90 = arith.addf %71, %89 : vector<1x1x128xf32>
    %91 = arith.mulf %84, %84 : vector<4x4x128xf32>
    %cst_74 = arith.constant dense<0.000000e+00> : vector<128xf32>
    %92 = vector.multi_reduction <add>, %91, %cst_74 [0, 1] : vector<4x4x128xf32> to vector<128xf32>
    %93 = vector.shape_cast %92 : vector<128xf32> to vector<1x1x128xf32>
    %94 = arith.addf %75, %93 : vector<1x1x128xf32>
    %cst_75 = arith.constant 0.000000e+00 : f32
    %95 = vector.broadcast %cst_75 : f32 to vector<4x4x128xf32>
    %c2_76 = arith.constant 2 : index
    %c2_77 = arith.constant 2 : index
    %c0_78 = arith.constant 0 : index
    %96 = vector.load %arg6[%c2_76, %c2_77, %c0_78] : memref<6x6x2048xf32, #tpu.memory_space<vmem>>, vector<4x4x128xf32>
    %97 = arith.addf %95, %96 : vector<4x4x128xf32>
    %c2_79 = arith.constant 2 : index
    %c1_80 = arith.constant 1 : index
    %c256 = arith.constant 256 : index
    %98 = vector.load %arg6[%c2_79, %c1_80, %c256] : memref<6x6x2048xf32, #tpu.memory_space<vmem>>, vector<4x4x128xf32>
    %99 = arith.addf %97, %98 : vector<4x4x128xf32>
    %c1_81 = arith.constant 1 : index
    %c2_82 = arith.constant 2 : index
    %c1024 = arith.constant 1024 : index
    %100 = vector.load %arg6[%c1_81, %c2_82, %c1024] : memref<6x6x2048xf32, #tpu.memory_space<vmem>>, vector<4x4x128xf32>
    %101 = arith.addf %99, %100 : vector<4x4x128xf32>
    %c1_83 = arith.constant 1 : index
    %c1_84 = arith.constant 1 : index
    %c1280 = arith.constant 1280 : index
    %102 = vector.load %arg6[%c1_83, %c1_84, %c1280] : memref<6x6x2048xf32, #tpu.memory_space<vmem>>, vector<4x4x128xf32>
    %103 = arith.addf %101, %102 : vector<4x4x128xf32>
    %c3_85 = arith.constant 3 : index
    %c0_86 = arith.constant 0 : index
    %c0_87 = arith.constant 0 : index
    %c0_88 = arith.constant 0 : index
    %104 = vector.load %arg4[%c3_85, %c0_86, %c0_87, %c0_88] : memref<4x4x4x128xf32, #tpu.memory_space<vmem>>, vector<1x4x4x128xf32>
    %105 = vector.shape_cast %104 : vector<1x4x4x128xf32> to vector<4x4x128xf32>
    %106 = vector.shape_cast %103 : vector<4x4x128xf32> to vector<1x4x4x128xf32>
    tpu.vector_store %arg4[%c3_85, %c0_86, %c0_87, %c0_88], %106 {strides = array<i32>} : memref<4x4x4x128xf32, #tpu.memory_space<vmem>>, vector<1x4x4x128xf32>,
    %cst_89 = arith.constant dense<0.000000e+00> : vector<128xf32>
    %107 = vector.multi_reduction <add>, %103, %cst_89 [0, 1] : vector<4x4x128xf32> to vector<128xf32>
    %108 = vector.shape_cast %107 : vector<128xf32> to vector<1x1x128xf32>
    %109 = arith.addf %90, %108 : vector<1x1x128xf32>
    %110 = arith.mulf %103, %103 : vector<4x4x128xf32>
    %cst_90 = arith.constant dense<0.000000e+00> : vector<128xf32>
    %111 = vector.multi_reduction <add>, %110, %cst_90 [0, 1] : vector<4x4x128xf32> to vector<128xf32>
    %112 = vector.shape_cast %111 : vector<128xf32> to vector<1x1x128xf32>
    %113 = arith.addf %94, %112 : vector<1x1x128xf32>
    %114 = tpu.concatenate %109, %113 in 1 : vector<1x1x128xf32>, vector<1x1x128xf32> -> vector<1x2x128xf32>
    %c0_91 = arith.constant 0 : index
    %c0_92 = arith.constant 0 : index
    %c0_93 = arith.constant 0 : index
    %115 = vector.load %arg5[%c0_91, %c0_92, %c0_93] : memref<1x2x128xf32, #tpu.memory_space<vmem>>, vector<1x2x128xf32>
    tpu.vector_store %arg5[%c0_91, %c0_92, %c0_93], %114 {strides = array<i32>} : memref<1x2x128xf32, #tpu.memory_space<vmem>>, vector<1x2x128xf32>,
    return
  }
  func.func @transform_0(%arg0: i32) -> (i32, i32, i32) {
    %c0_i32 = arith.constant 0 : i32
    %c0_i32_0 = arith.constant 0 : i32
    %c0_i32_1 = arith.constant 0 : i32
    return %arg0, %c0_i32, %c0_i32_0 : i32, i32, i32
  }
  func.func @transform_1(%arg0: i32) -> (i32, i32) {
    %c0_i32 = arith.constant 0 : i32
    %c0_i32_0 = arith.constant 0 : i32
    %c0_i32_1 = arith.constant 0 : i32
    return %c0_i32, %c0_i32_0 : i32, i32
  }
  func.func @transform_2(%arg0: i32) -> (i32, i32) {
    %c0_i32 = arith.constant 0 : i32
    %c0_i32_0 = arith.constant 0 : i32
    %c0_i32_1 = arith.constant 0 : i32
    return %c0_i32, %c0_i32_0 : i32, i32
  }
  func.func @transform_3(%arg0: i32) -> (i32, i32, i32, i32) {
    %c0_i32 = arith.constant 0 : i32
    %c0_i32_0 = arith.constant 0 : i32
    %c0_i32_1 = arith.constant 0 : i32
    %c0_i32_2 = arith.constant 0 : i32
    return %arg0, %c0_i32, %c0_i32_0, %c0_i32_1 : i32, i32, i32, i32
  }
  func.func @transform_4(%arg0: i32) -> (i32, i32, i32) {
    %c0_i32 = arith.constant 0 : i32
    %c0_i32_0 = arith.constant 0 : i32
    %c0_i32_1 = arith.constant 0 : i32
    return %arg0, %c0_i32, %c0_i32_0 : i32, i32, i32
  }
}

module attributes {stable_mosaic.version = 11 : i64} {
  func.func @_fused_bn_relu_deconv_kernel(%arg0: i32, %arg1: memref<1x64x128xf32, #tpu.memory_space<vmem>>, %arg2: memref<2x128xf32, #tpu.memory_space<vmem>>, %arg3: memref<128x2048xbf16, #tpu.memory_space<vmem>>, %arg4: memref<4x8x8x128xf32, #tpu.memory_space<vmem>>, %arg5: memref<10x10x2048xf32, #tpu.memory_space<vmem>>) attributes {dimension_semantics = [#tpu.dimension_semantics<parallel>], iteration_bounds = array<i64: 2>, scalar_prefetch = 0 : i64, scratch_operands = 1 : i64, tpu.core_type = #tpu.core_type<tc>, window_params = [{transform_indices = @transform_0, window_bounds = array<i64: 1, 64, 128>}, {pipeline_mode = #tpu.pipeline_mode<synchronous>, transform_indices = @transform_1, window_bounds = array<i64: 2, 128>}, {pipeline_mode = #tpu.pipeline_mode<synchronous>, transform_indices = @transform_2, window_bounds = array<i64: 128, 2048>}, {transform_indices = @transform_3, window_bounds = array<i64: 4, 8, 8, 128>}]} {
    %c0 = arith.constant 0 : index
    %c0_0 = arith.constant 0 : index
    %0 = vector.load %arg2[%c0, %c0_0] : memref<2x128xf32, #tpu.memory_space<vmem>>, vector<2x128xf32>
    %1 = vector.extract_strided_slice %0 {offsets = [0, 0], sizes = [1, 128], strides = [1, 1]} : vector<2x128xf32> to vector<1x128xf32>
    %2 = vector.extract_strided_slice %0 {offsets = [1, 0], sizes = [1, 128], strides = [1, 1]} : vector<2x128xf32> to vector<1x128xf32>
    %c0_1 = arith.constant 0 : index
    %c0_2 = arith.constant 0 : index
    %c0_3 = arith.constant 0 : index
    %3 = vector.load %arg1[%c0_1, %c0_2, %c0_3] : memref<1x64x128xf32, #tpu.memory_space<vmem>>, vector<1x64x128xf32>
    %4 = vector.shape_cast %3 : vector<1x64x128xf32> to vector<64x128xf32>
    %5 = vector.broadcast %1 : vector<1x128xf32> to vector<64x128xf32>
    %6 = arith.mulf %4, %5 : vector<64x128xf32>
    %7 = vector.broadcast %2 : vector<1x128xf32> to vector<64x128xf32>
    %8 = arith.addf %6, %7 : vector<64x128xf32>
    %cst = arith.constant 0.000000e+00 : f32
    %9 = vector.broadcast %cst : f32 to vector<64x128xf32>
    %10 = arith.maximumf %8, %9 : vector<64x128xf32>
    %11 = arith.truncf %10 : vector<64x128xf32> to vector<64x128xbf16>
    %c0_4 = arith.constant 0 : index
    %c0_5 = arith.constant 0 : index
    %12 = vector.load %arg3[%c0_4, %c0_5] : memref<128x2048xbf16, #tpu.memory_space<vmem>>, vector<128x2048xbf16>
    %cst_6 = arith.constant dense<0.000000e+00> : vector<64x2048xf32>
    %13 = tpu.matmul %11, %12, %cst_6 {dimension_numbers = #tpu.dot_dimension_numbers<[1], [0], [0], [1], [0, 0, 1, 1], [], []>} : vector<64x128xbf16>, vector<128x2048xbf16>, vector<64x2048xf32> -> vector<64x2048xf32>
    %cst_7 = arith.constant 0.000000e+00 : f32
    %14 = vector.broadcast %cst_7 : f32 to vector<1x10x2048xf32>
    %cst_8 = arith.constant 0.000000e+00 : f32
    %15 = vector.broadcast %cst_8 : f32 to vector<8x1x2048xf32>
    %c0_9 = arith.constant 0 : index
    %c0_10 = arith.constant 0 : index
    %c0_11 = arith.constant 0 : index
    %16 = vector.load %arg5[%c0_9, %c0_10, %c0_11] : memref<10x10x2048xf32, #tpu.memory_space<vmem>>, vector<1x10x2048xf32>
    tpu.vector_store %arg5[%c0_9, %c0_10, %c0_11], %14 {strides = array<i32>} : memref<10x10x2048xf32, #tpu.memory_space<vmem>>, vector<1x10x2048xf32>,
    %c9 = arith.constant 9 : index
    %c0_12 = arith.constant 0 : index
    %c0_13 = arith.constant 0 : index
    %17 = vector.load %arg5[%c9, %c0_12, %c0_13] : memref<10x10x2048xf32, #tpu.memory_space<vmem>>, vector<1x10x2048xf32>
    tpu.vector_store %arg5[%c9, %c0_12, %c0_13], %14 {strides = array<i32>} : memref<10x10x2048xf32, #tpu.memory_space<vmem>>, vector<1x10x2048xf32>,
    %c1 = arith.constant 1 : index
    %c0_14 = arith.constant 0 : index
    %c0_15 = arith.constant 0 : index
    %18 = vector.load %arg5[%c1, %c0_14, %c0_15] : memref<10x10x2048xf32, #tpu.memory_space<vmem>>, vector<8x1x2048xf32>
    tpu.vector_store %arg5[%c1, %c0_14, %c0_15], %15 {strides = array<i32>} : memref<10x10x2048xf32, #tpu.memory_space<vmem>>, vector<8x1x2048xf32>,
    %c1_16 = arith.constant 1 : index
    %c9_17 = arith.constant 9 : index
    %c0_18 = arith.constant 0 : index
    %19 = vector.load %arg5[%c1_16, %c9_17, %c0_18] : memref<10x10x2048xf32, #tpu.memory_space<vmem>>, vector<8x1x2048xf32>
    tpu.vector_store %arg5[%c1_16, %c9_17, %c0_18], %15 {strides = array<i32>} : memref<10x10x2048xf32, #tpu.memory_space<vmem>>, vector<8x1x2048xf32>,
    %20 = vector.extract_strided_slice %13 {offsets = [0, 0], sizes = [8, 2048], strides = [1, 1]} : vector<64x2048xf32> to vector<8x2048xf32>
    %c1_19 = arith.constant 1 : index
    %c1_20 = arith.constant 1 : index
    %c0_21 = arith.constant 0 : index
    %21 = vector.load %arg5[%c1_19, %c1_20, %c0_21] : memref<10x10x2048xf32, #tpu.memory_space<vmem>>, vector<1x8x2048xf32>
    %22 = vector.shape_cast %21 : vector<1x8x2048xf32> to vector<8x2048xf32>
    %23 = vector.shape_cast %20 : vector<8x2048xf32> to vector<1x8x2048xf32>
    tpu.vector_store %arg5[%c1_19, %c1_20, %c0_21], %23 {strides = array<i32>} : memref<10x10x2048xf32, #tpu.memory_space<vmem>>, vector<1x8x2048xf32>,
    %24 = vector.extract_strided_slice %13 {offsets = [8, 0], sizes = [8, 2048], strides = [1, 1]} : vector<64x2048xf32> to vector<8x2048xf32>
    %c2 = arith.constant 2 : index
    %c1_22 = arith.constant 1 : index
    %c0_23 = arith.constant 0 : index
    %25 = vector.load %arg5[%c2, %c1_22, %c0_23] : memref<10x10x2048xf32, #tpu.memory_space<vmem>>, vector<1x8x2048xf32>
    %26 = vector.shape_cast %25 : vector<1x8x2048xf32> to vector<8x2048xf32>
    %27 = vector.shape_cast %24 : vector<8x2048xf32> to vector<1x8x2048xf32>
    tpu.vector_store %arg5[%c2, %c1_22, %c0_23], %27 {strides = array<i32>} : memref<10x10x2048xf32, #tpu.memory_space<vmem>>, vector<1x8x2048xf32>,
    %28 = vector.extract_strided_slice %13 {offsets = [16, 0], sizes = [8, 2048], strides = [1, 1]} : vector<64x2048xf32> to vector<8x2048xf32>
    %c3 = arith.constant 3 : index
    %c1_24 = arith.constant 1 : index
    %c0_25 = arith.constant 0 : index
    %29 = vector.load %arg5[%c3, %c1_24, %c0_25] : memref<10x10x2048xf32, #tpu.memory_space<vmem>>, vector<1x8x2048xf32>
    %30 = vector.shape_cast %29 : vector<1x8x2048xf32> to vector<8x2048xf32>
    %31 = vector.shape_cast %28 : vector<8x2048xf32> to vector<1x8x2048xf32>
    tpu.vector_store %arg5[%c3, %c1_24, %c0_25], %31 {strides = array<i32>} : memref<10x10x2048xf32, #tpu.memory_space<vmem>>, vector<1x8x2048xf32>,
    %32 = vector.extract_strided_slice %13 {offsets = [24, 0], sizes = [8, 2048], strides = [1, 1]} : vector<64x2048xf32> to vector<8x2048xf32>
    %c4 = arith.constant 4 : index
    %c1_26 = arith.constant 1 : index
    %c0_27 = arith.constant 0 : index
    %33 = vector.load %arg5[%c4, %c1_26, %c0_27] : memref<10x10x2048xf32, #tpu.memory_space<vmem>>, vector<1x8x2048xf32>
    %34 = vector.shape_cast %33 : vector<1x8x2048xf32> to vector<8x2048xf32>
    %35 = vector.shape_cast %32 : vector<8x2048xf32> to vector<1x8x2048xf32>
    tpu.vector_store %arg5[%c4, %c1_26, %c0_27], %35 {strides = array<i32>} : memref<10x10x2048xf32, #tpu.memory_space<vmem>>, vector<1x8x2048xf32>,
    %36 = vector.extract_strided_slice %13 {offsets = [32, 0], sizes = [8, 2048], strides = [1, 1]} : vector<64x2048xf32> to vector<8x2048xf32>
    %c5 = arith.constant 5 : index
    %c1_28 = arith.constant 1 : index
    %c0_29 = arith.constant 0 : index
    %37 = vector.load %arg5[%c5, %c1_28, %c0_29] : memref<10x10x2048xf32, #tpu.memory_space<vmem>>, vector<1x8x2048xf32>
    %38 = vector.shape_cast %37 : vector<1x8x2048xf32> to vector<8x2048xf32>
    %39 = vector.shape_cast %36 : vector<8x2048xf32> to vector<1x8x2048xf32>
    tpu.vector_store %arg5[%c5, %c1_28, %c0_29], %39 {strides = array<i32>} : memref<10x10x2048xf32, #tpu.memory_space<vmem>>, vector<1x8x2048xf32>,
    %40 = vector.extract_strided_slice %13 {offsets = [40, 0], sizes = [8, 2048], strides = [1, 1]} : vector<64x2048xf32> to vector<8x2048xf32>
    %c6 = arith.constant 6 : index
    %c1_30 = arith.constant 1 : index
    %c0_31 = arith.constant 0 : index
    %41 = vector.load %arg5[%c6, %c1_30, %c0_31] : memref<10x10x2048xf32, #tpu.memory_space<vmem>>, vector<1x8x2048xf32>
    %42 = vector.shape_cast %41 : vector<1x8x2048xf32> to vector<8x2048xf32>
    %43 = vector.shape_cast %40 : vector<8x2048xf32> to vector<1x8x2048xf32>
    tpu.vector_store %arg5[%c6, %c1_30, %c0_31], %43 {strides = array<i32>} : memref<10x10x2048xf32, #tpu.memory_space<vmem>>, vector<1x8x2048xf32>,
    %44 = vector.extract_strided_slice %13 {offsets = [48, 0], sizes = [8, 2048], strides = [1, 1]} : vector<64x2048xf32> to vector<8x2048xf32>
    %c7 = arith.constant 7 : index
    %c1_32 = arith.constant 1 : index
    %c0_33 = arith.constant 0 : index
    %45 = vector.load %arg5[%c7, %c1_32, %c0_33] : memref<10x10x2048xf32, #tpu.memory_space<vmem>>, vector<1x8x2048xf32>
    %46 = vector.shape_cast %45 : vector<1x8x2048xf32> to vector<8x2048xf32>
    %47 = vector.shape_cast %44 : vector<8x2048xf32> to vector<1x8x2048xf32>
    tpu.vector_store %arg5[%c7, %c1_32, %c0_33], %47 {strides = array<i32>} : memref<10x10x2048xf32, #tpu.memory_space<vmem>>, vector<1x8x2048xf32>,
    %48 = vector.extract_strided_slice %13 {offsets = [56, 0], sizes = [8, 2048], strides = [1, 1]} : vector<64x2048xf32> to vector<8x2048xf32>
    %c8 = arith.constant 8 : index
    %c1_34 = arith.constant 1 : index
    %c0_35 = arith.constant 0 : index
    %49 = vector.load %arg5[%c8, %c1_34, %c0_35] : memref<10x10x2048xf32, #tpu.memory_space<vmem>>, vector<1x8x2048xf32>
    %50 = vector.shape_cast %49 : vector<1x8x2048xf32> to vector<8x2048xf32>
    %51 = vector.shape_cast %48 : vector<8x2048xf32> to vector<1x8x2048xf32>
    tpu.vector_store %arg5[%c8, %c1_34, %c0_35], %51 {strides = array<i32>} : memref<10x10x2048xf32, #tpu.memory_space<vmem>>, vector<1x8x2048xf32>,
    %cst_36 = arith.constant 0.000000e+00 : f32
    %52 = vector.broadcast %cst_36 : f32 to vector<8x8x128xf32>
    %c1_37 = arith.constant 1 : index
    %c1_38 = arith.constant 1 : index
    %c640 = arith.constant 640 : index
    %53 = vector.load %arg5[%c1_37, %c1_38, %c640] : memref<10x10x2048xf32, #tpu.memory_space<vmem>>, vector<8x8x128xf32>
    %54 = arith.addf %52, %53 : vector<8x8x128xf32>
    %c1_39 = arith.constant 1 : index
    %c0_40 = arith.constant 0 : index
    %c896 = arith.constant 896 : index
    %55 = vector.load %arg5[%c1_39, %c0_40, %c896] : memref<10x10x2048xf32, #tpu.memory_space<vmem>>, vector<8x8x128xf32>
    %56 = arith.addf %54, %55 : vector<8x8x128xf32>
    %c0_41 = arith.constant 0 : index
    %c1_42 = arith.constant 1 : index
    %c1664 = arith.constant 1664 : index
    %57 = vector.load %arg5[%c0_41, %c1_42, %c1664] : memref<10x10x2048xf32, #tpu.memory_space<vmem>>, vector<8x8x128xf32>
    %58 = arith.addf %56, %57 : vector<8x8x128xf32>
    %c0_43 = arith.constant 0 : index
    %c0_44 = arith.constant 0 : index
    %c1920 = arith.constant 1920 : index
    %59 = vector.load %arg5[%c0_43, %c0_44, %c1920] : memref<10x10x2048xf32, #tpu.memory_space<vmem>>, vector<8x8x128xf32>
    %60 = arith.addf %58, %59 : vector<8x8x128xf32>
    %61 = math.tanh %60 : vector<8x8x128xf32>
    %c0_45 = arith.constant 0 : index
    %c0_46 = arith.constant 0 : index
    %c0_47 = arith.constant 0 : index
    %c0_48 = arith.constant 0 : index
    %62 = vector.load %arg4[%c0_45, %c0_46, %c0_47, %c0_48] : memref<4x8x8x128xf32, #tpu.memory_space<vmem>>, vector<1x8x8x128xf32>
    %63 = vector.shape_cast %62 : vector<1x8x8x128xf32> to vector<8x8x128xf32>
    %64 = vector.shape_cast %61 : vector<8x8x128xf32> to vector<1x8x8x128xf32>
    tpu.vector_store %arg4[%c0_45, %c0_46, %c0_47, %c0_48], %64 {strides = array<i32>} : memref<4x8x8x128xf32, #tpu.memory_space<vmem>>, vector<1x8x8x128xf32>,
    %cst_49 = arith.constant 0.000000e+00 : f32
    %65 = vector.broadcast %cst_49 : f32 to vector<8x8x128xf32>
    %c1_50 = arith.constant 1 : index
    %c2_51 = arith.constant 2 : index
    %c512 = arith.constant 512 : index
    %66 = vector.load %arg5[%c1_50, %c2_51, %c512] : memref<10x10x2048xf32, #tpu.memory_space<vmem>>, vector<8x8x128xf32>
    %67 = arith.addf %65, %66 : vector<8x8x128xf32>
    %c1_52 = arith.constant 1 : index
    %c1_53 = arith.constant 1 : index
    %c768 = arith.constant 768 : index
    %68 = vector.load %arg5[%c1_52, %c1_53, %c768] : memref<10x10x2048xf32, #tpu.memory_space<vmem>>, vector<8x8x128xf32>
    %69 = arith.addf %67, %68 : vector<8x8x128xf32>
    %c0_54 = arith.constant 0 : index
    %c2_55 = arith.constant 2 : index
    %c1536 = arith.constant 1536 : index
    %70 = vector.load %arg5[%c0_54, %c2_55, %c1536] : memref<10x10x2048xf32, #tpu.memory_space<vmem>>, vector<8x8x128xf32>
    %71 = arith.addf %69, %70 : vector<8x8x128xf32>
    %c0_56 = arith.constant 0 : index
    %c1_57 = arith.constant 1 : index
    %c1792 = arith.constant 1792 : index
    %72 = vector.load %arg5[%c0_56, %c1_57, %c1792] : memref<10x10x2048xf32, #tpu.memory_space<vmem>>, vector<8x8x128xf32>
    %73 = arith.addf %71, %72 : vector<8x8x128xf32>
    %74 = math.tanh %73 : vector<8x8x128xf32>
    %c1_58 = arith.constant 1 : index
    %c0_59 = arith.constant 0 : index
    %c0_60 = arith.constant 0 : index
    %c0_61 = arith.constant 0 : index
    %75 = vector.load %arg4[%c1_58, %c0_59, %c0_60, %c0_61] : memref<4x8x8x128xf32, #tpu.memory_space<vmem>>, vector<1x8x8x128xf32>
    %76 = vector.shape_cast %75 : vector<1x8x8x128xf32> to vector<8x8x128xf32>
    %77 = vector.shape_cast %74 : vector<8x8x128xf32> to vector<1x8x8x128xf32>
    tpu.vector_store %arg4[%c1_58, %c0_59, %c0_60, %c0_61], %77 {strides = array<i32>} : memref<4x8x8x128xf32, #tpu.memory_space<vmem>>, vector<1x8x8x128xf32>,
    %cst_62 = arith.constant 0.000000e+00 : f32
    %78 = vector.broadcast %cst_62 : f32 to vector<8x8x128xf32>
    %c2_63 = arith.constant 2 : index
    %c1_64 = arith.constant 1 : index
    %c128 = arith.constant 128 : index
    %79 = vector.load %arg5[%c2_63, %c1_64, %c128] : memref<10x10x2048xf32, #tpu.memory_space<vmem>>, vector<8x8x128xf32>
    %80 = arith.addf %78, %79 : vector<8x8x128xf32>
    %c2_65 = arith.constant 2 : index
    %c0_66 = arith.constant 0 : index
    %c384 = arith.constant 384 : index
    %81 = vector.load %arg5[%c2_65, %c0_66, %c384] : memref<10x10x2048xf32, #tpu.memory_space<vmem>>, vector<8x8x128xf32>
    %82 = arith.addf %80, %81 : vector<8x8x128xf32>
    %c1_67 = arith.constant 1 : index
    %c1_68 = arith.constant 1 : index
    %c1152 = arith.constant 1152 : index
    %83 = vector.load %arg5[%c1_67, %c1_68, %c1152] : memref<10x10x2048xf32, #tpu.memory_space<vmem>>, vector<8x8x128xf32>
    %84 = arith.addf %82, %83 : vector<8x8x128xf32>
    %c1_69 = arith.constant 1 : index
    %c0_70 = arith.constant 0 : index
    %c1408 = arith.constant 1408 : index
    %85 = vector.load %arg5[%c1_69, %c0_70, %c1408] : memref<10x10x2048xf32, #tpu.memory_space<vmem>>, vector<8x8x128xf32>
    %86 = arith.addf %84, %85 : vector<8x8x128xf32>
    %87 = math.tanh %86 : vector<8x8x128xf32>
    %c2_71 = arith.constant 2 : index
    %c0_72 = arith.constant 0 : index
    %c0_73 = arith.constant 0 : index
    %c0_74 = arith.constant 0 : index
    %88 = vector.load %arg4[%c2_71, %c0_72, %c0_73, %c0_74] : memref<4x8x8x128xf32, #tpu.memory_space<vmem>>, vector<1x8x8x128xf32>
    %89 = vector.shape_cast %88 : vector<1x8x8x128xf32> to vector<8x8x128xf32>
    %90 = vector.shape_cast %87 : vector<8x8x128xf32> to vector<1x8x8x128xf32>
    tpu.vector_store %arg4[%c2_71, %c0_72, %c0_73, %c0_74], %90 {strides = array<i32>} : memref<4x8x8x128xf32, #tpu.memory_space<vmem>>, vector<1x8x8x128xf32>,
    %cst_75 = arith.constant 0.000000e+00 : f32
    %91 = vector.broadcast %cst_75 : f32 to vector<8x8x128xf32>
    %c2_76 = arith.constant 2 : index
    %c2_77 = arith.constant 2 : index
    %c0_78 = arith.constant 0 : index
    %92 = vector.load %arg5[%c2_76, %c2_77, %c0_78] : memref<10x10x2048xf32, #tpu.memory_space<vmem>>, vector<8x8x128xf32>
    %93 = arith.addf %91, %92 : vector<8x8x128xf32>
    %c2_79 = arith.constant 2 : index
    %c1_80 = arith.constant 1 : index
    %c256 = arith.constant 256 : index
    %94 = vector.load %arg5[%c2_79, %c1_80, %c256] : memref<10x10x2048xf32, #tpu.memory_space<vmem>>, vector<8x8x128xf32>
    %95 = arith.addf %93, %94 : vector<8x8x128xf32>
    %c1_81 = arith.constant 1 : index
    %c2_82 = arith.constant 2 : index
    %c1024 = arith.constant 1024 : index
    %96 = vector.load %arg5[%c1_81, %c2_82, %c1024] : memref<10x10x2048xf32, #tpu.memory_space<vmem>>, vector<8x8x128xf32>
    %97 = arith.addf %95, %96 : vector<8x8x128xf32>
    %c1_83 = arith.constant 1 : index
    %c1_84 = arith.constant 1 : index
    %c1280 = arith.constant 1280 : index
    %98 = vector.load %arg5[%c1_83, %c1_84, %c1280] : memref<10x10x2048xf32, #tpu.memory_space<vmem>>, vector<8x8x128xf32>
    %99 = arith.addf %97, %98 : vector<8x8x128xf32>
    %100 = math.tanh %99 : vector<8x8x128xf32>
    %c3_85 = arith.constant 3 : index
    %c0_86 = arith.constant 0 : index
    %c0_87 = arith.constant 0 : index
    %c0_88 = arith.constant 0 : index
    %101 = vector.load %arg4[%c3_85, %c0_86, %c0_87, %c0_88] : memref<4x8x8x128xf32, #tpu.memory_space<vmem>>, vector<1x8x8x128xf32>
    %102 = vector.shape_cast %101 : vector<1x8x8x128xf32> to vector<8x8x128xf32>
    %103 = vector.shape_cast %100 : vector<8x8x128xf32> to vector<1x8x8x128xf32>
    tpu.vector_store %arg4[%c3_85, %c0_86, %c0_87, %c0_88], %103 {strides = array<i32>} : memref<4x8x8x128xf32, #tpu.memory_space<vmem>>, vector<1x8x8x128xf32>,
    return
  }
  func.func @transform_0(%arg0: i32) -> (i32, i32, i32) {
    %c0_i32 = arith.constant 0 : i32
    %c0_i32_0 = arith.constant 0 : i32
    %c0_i32_1 = arith.constant 0 : i32
    return %arg0, %c0_i32, %c0_i32_0 : i32, i32, i32
  }
  func.func @transform_1(%arg0: i32) -> (i32, i32) {
    %c0_i32 = arith.constant 0 : i32
    %c0_i32_0 = arith.constant 0 : i32
    %c0_i32_1 = arith.constant 0 : i32
    return %c0_i32, %c0_i32_0 : i32, i32
  }
  func.func @transform_2(%arg0: i32) -> (i32, i32) {
    %c0_i32 = arith.constant 0 : i32
    %c0_i32_0 = arith.constant 0 : i32
    %c0_i32_1 = arith.constant 0 : i32
    return %c0_i32, %c0_i32_0 : i32, i32
  }
  func.func @transform_3(%arg0: i32) -> (i32, i32, i32, i32) {
    %c0_i32 = arith.constant 0 : i32
    %c0_i32_0 = arith.constant 0 : i32
    %c0_i32_1 = arith.constant 0 : i32
    %c0_i32_2 = arith.constant 0 : i32
    return %arg0, %c0_i32, %c0_i32_0, %c0_i32_1 : i32, i32, i32, i32
  }
}

</mosaic_0001>

<llo_original>
// kernel: dcgan_g_forward.3
$region0: #{dcgan_g_forward.3}
  #allocation0 [shape = 'u32[]', space=smem, size = 0x4, offset = 0x4, fixed_abs, tag = 'smem constant byte address 0x4 - core index']
  #allocation1 [shape = 'u32[72,128]{1,0:T(1,128)}', space=vmem, size = 0x9000, scoped, tag = 'internal scratch']
  %s0 = inlined_call_operand.vmem [shape: bf16[2,128], index: 0, kind: input, shape index: {}]
  %s1 = inlined_call_operand.vmem [shape: bf16[128,2048], index: 1, kind: input, shape index: {}]
  %s2 = inlined_call_operand.vmem [shape: f32[2,2048], index: 2, kind: output, shape index: {}]
  %s3 = sld [smem:[#allocation0]]
  $region18: #{dcgan_g_forward.3} parent=0
    _
  %s5 = ssub.s32 1, %s3
  %s6 = scalar_select 0, %s5, %s3
  // Predicated region
  $region2: #{dcgan_g_forward.3} parent=0 // pred_check
    _
  $region3: #{dcgan_g_forward.3} parent=0 // pred_check_branch
    %8 = sbr.rel (0) target = $region5
  $region4: #{dcgan_g_forward.3} parent=0 // pred_region
    _
  $region5: #{dcgan_g_forward.3} parent=0 // pred_fallthru
    _
  // Predicated region
  $region6: #{dcgan_g_forward.3} parent=0 // pred_check
    _
  $region7: #{dcgan_g_forward.3} parent=0 // pred_check_branch
    %10 = sbr.rel (0) target = $region9
  $region8: #{dcgan_g_forward.3} parent=0 // pred_region
    _
  $region9: #{dcgan_g_forward.3} parent=0 // pred_fallthru
    _
  %v11 = vld [vmem:[%s0] sm:$0x1]
  %v12 = vld [vmem:[%s1] sm:$0xff]
  %v13 = vld [vmem:[%s1 + $0x8] sm:$0xff]
  %v14 = vld [vmem:[%s1 + $0x10] sm:$0xff]
  %v15 = vld [vmem:[%s1 + $0x18] sm:$0xff]
  %v16 = vld [vmem:[%s1 + $0x20] sm:$0xff]
  %v17 = vld [vmem:[%s1 + $0x28] sm:$0xff]
  %v18 = vld [vmem:[%s1 + $0x30] sm:$0xff]
  %v19 = vld [vmem:[%s1 + $0x38] sm:$0xff]
  %v20 = vld [vmem:[%s1 + $0x40] sm:$0xff]
  %v21 = vld [vmem:[%s1 + $0x48] sm:$0xff]
  %v22 = vld [vmem:[%s1 + $0x50] sm:$0xff]
  %v23 = vld [vmem:[%s1 + $0x58] sm:$0xff]
  %v24 = vld [vmem:[%s1 + $0x60] sm:$0xff]
  %v25 = vld [vmem:[%s1 + $0x68] sm:$0xff]
  %v26 = vld [vmem:[%s1 + $0x70] sm:$0xff]
  %v27 = vld [vmem:[%s1 + $0x78] sm:$0xff]
  %v28 = vld [vmem:[%s1 + $0x80] sm:$0xff]
  %v29 = vld [vmem:[%s1 + $0x88] sm:$0xff]
  %v30 = vld [vmem:[%s1 + $0x90] sm:$0xff]
  %v31 = vld [vmem:[%s1 + $0x98] sm:$0xff]
  %v32 = vld [vmem:[%s1 + $0xa0] sm:$0xff]
  %v33 = vld [vmem:[%s1 + $0xa8] sm:$0xff]
  %v34 = vld [vmem:[%s1 + $0xb0] sm:$0xff]
  %v35 = vld [vmem:[%s1 + $0xb8] sm:$0xff]
  %v36 = vld [vmem:[%s1 + $0xc0] sm:$0xff]
  %v37 = vld [vmem:[%s1 + $0xc8] sm:$0xff]
  %v38 = vld [vmem:[%s1 + $0xd0] sm:$0xff]
  %v39 = vld [vmem:[%s1 + $0xd8] sm:$0xff]
  %v40 = vld [vmem:[%s1 + $0xe0] sm:$0xff]
  %v41 = vld [vmem:[%s1 + $0xe8] sm:$0xff]
  %v42 = vld [vmem:[%s1 + $0xf0] sm:$0xff]
  %v43 = vld [vmem:[%s1 + $0xf8] sm:$0xff]
  %v44 = vld [vmem:[%s1 + $0x100] sm:$0xff]
  %v45 = vld [vmem:[%s1 + $0x108] sm:$0xff]
  %v46 = vld [vmem:[%s1 + $0x110] sm:$0xff]
  %v47 = vld [vmem:[%s1 + $0x118] sm:$0xff]
  %v48 = vld [vmem:[%s1 + $0x120] sm:$0xff]
  %v49 = vld [vmem:[%s1 + $0x128] sm:$0xff]
  %v50 = vld [vmem:[%s1 + $0x130] sm:$0xff]
  %v51 = vld [vmem:[%s1 + $0x138] sm:$0xff]
  %v52 = vld [vmem:[%s1 + $0x140] sm:$0xff]
  %v53 = vld [vmem:[%s1 + $0x148] sm:$0xff]
  %v54 = vld [vmem:[%s1 + $0x150] sm:$0xff]
  %v55 = vld [vmem:[%s1 + $0x158] sm:$0xff]
  %v56 = vld [vmem:[%s1 + $0x160] sm:$0xff]
  %v57 = vld [vmem:[%s1 + $0x168] sm:$0xff]
  %v58 = vld [vmem:[%s1 + $0x170] sm:$0xff]
  %v59 = vld [vmem:[%s1 + $0x178] sm:$0xff]
  %v60 = vld [vmem:[%s1 + $0x180] sm:$0xff]
  %v61 = vld [vmem:[%s1 + $0x188] sm:$0xff]
  %v62 = vld [vmem:[%s1 + $0x190] sm:$0xff]
  %v63 = vld [vmem:[%s1 + $0x198] sm:$0xff]
  %v64 = vld [vmem:[%s1 + $0x1a0] sm:$0xff]
  %v65 = vld [vmem:[%s1 + $0x1a8] sm:$0xff]
  %v66 = vld [vmem:[%s1 + $0x1b0] sm:$0xff]
  %v67 = vld [vmem:[%s1 + $0x1b8] sm:$0xff]
  %v68 = vld [vmem:[%s1 + $0x1c0] sm:$0xff]
  %v69 = vld [vmem:[%s1 + $0x1c8] sm:$0xff]
  %v70 = vld [vmem:[%s1 + $0x1d0] sm:$0xff]
  %v71 = vld [vmem:[%s1 + $0x1d8] sm:$0xff]
  %v72 = vld [vmem:[%s1 + $0x1e0] sm:$0xff]
  %v73 = vld [vmem:[%s1 + $0x1e8] sm:$0xff]
  %v74 = vld [vmem:[%s1 + $0x1f0] sm:$0xff]
  %v75 = vld [vmem:[%s1 + $0x1f8] sm:$0xff]
  %v76 = vld [vmem:[%s1 + $0x200] sm:$0xff]
  %v77 = vld [vmem:[%s1 + $0x208] sm:$0xff]
  %v78 = vld [vmem:[%s1 + $0x210] sm:$0xff]
  %v79 = vld [vmem:[%s1 + $0x218] sm:$0xff]
  %v80 = vld [vmem:[%s1 + $0x220] sm:$0xff]
  %v81 = vld [vmem:[%s1 + $0x228] sm:$0xff]
  %v82 = vld [vmem:[%s1 + $0x230] sm:$0xff]
  %v83 = vld [vmem:[%s1 + $0x238] sm:$0xff]
  %v84 = vld [vmem:[%s1 + $0x240] sm:$0xff]
  %v85 = vld [vmem:[%s1 + $0x248] sm:$0xff]
  %v86 = vld [vmem:[%s1 + $0x250] sm:$0xff]
  %v87 = vld [vmem:[%s1 + $0x258] sm:$0xff]
  %v88 = vld [vmem:[%s1 + $0x260] sm:$0xff]
  %v89 = vld [vmem:[%s1 + $0x268] sm:$0xff]
  %v90 = vld [vmem:[%s1 + $0x270] sm:$0xff]
  %v91 = vld [vmem:[%s1 + $0x278] sm:$0xff]
  %v92 = vld [vmem:[%s1 + $0x280] sm:$0xff]
  %v93 = vld [vmem:[%s1 + $0x288] sm:$0xff]
  %v94 = vld [vmem:[%s1 + $0x290] sm:$0xff]
  %v95 = vld [vmem:[%s1 + $0x298] sm:$0xff]
  %v96 = vld [vmem:[%s1 + $0x2a0] sm:$0xff]
  %v97 = vld [vmem:[%s1 + $0x2a8] sm:$0xff]
  %v98 = vld [vmem:[%s1 + $0x2b0] sm:$0xff]
  %v99 = vld [vmem:[%s1 + $0x2b8] sm:$0xff]
  %v100 = vld [vmem:[%s1 + $0x2c0] sm:$0xff]
  %v101 = vld [vmem:[%s1 + $0x2c8] sm:$0xff]
  %v102 = vld [vmem:[%s1 + $0x2d0] sm:$0xff]
  %v103 = vld [vmem:[%s1 + $0x2d8] sm:$0xff]
  %v104 = vld [vmem:[%s1 + $0x2e0] sm:$0xff]
  %v105 = vld [vmem:[%s1 + $0x2e8] sm:$0xff]
  %v106 = vld [vmem:[%s1 + $0x2f0] sm:$0xff]
  %v107 = vld [vmem:[%s1 + $0x2f8] sm:$0xff]
  %v108 = vld [vmem:[%s1 + $0x300] sm:$0xff]
  %v109 = vld [vmem:[%s1 + $0x308] sm:$0xff]
  %v110 = vld [vmem:[%s1 + $0x310] sm:$0xff]
  %v111 = vld [vmem:[%s1 + $0x318] sm:$0xff]
  %v112 = vld [vmem:[%s1 + $0x320] sm:$0xff]
  %v113 = vld [vmem:[%s1 + $0x328] sm:$0xff]
  %v114 = vld [vmem:[%s1 + $0x330] sm:$0xff]
  %v115 = vld [vmem:[%s1 + $0x338] sm:$0xff]
  %v116 = vld [vmem:[%s1 + $0x340] sm:$0xff]
  %v117 = vld [vmem:[%s1 + $0x348] sm:$0xff]
  %v118 = vld [vmem:[%s1 + $0x350] sm:$0xff]
  %v119 = vld [vmem:[%s1 + $0x358] sm:$0xff]
  %v120 = vld [vmem:[%s1 + $0x360] sm:$0xff]
  %v121 = vld [vmem:[%s1 + $0x368] sm:$0xff]
  %v122 = vld [vmem:[%s1 + $0x370] sm:$0xff]
  %v123 = vld [vmem:[%s1 + $0x378] sm:$0xff]
  %v124 = vld [vmem:[%s1 + $0x380] sm:$0xff]
  %v125 = vld [vmem:[%s1 + $0x388] sm:$0xff]
  %v126 = vld [vmem:[%s1 + $0x390] sm:$0xff]
  %v127 = vld [vmem:[%s1 + $0x398] sm:$0xff]
  %v128 = vld [vmem:[%s1 + $0x3a0] sm:$0xff]
  %v129 = vld [vmem:[%s1 + $0x3a8] sm:$0xff]
  %v130 = vld [vmem:[%s1 + $0x3b0] sm:$0xff]
  %v131 = vld [vmem:[%s1 + $0x3b8] sm:$0xff]
  %v132 = vld [vmem:[%s1 + $0x3c0] sm:$0xff]
  %v133 = vld [vmem:[%s1 + $0x3c8] sm:$0xff]
  %v134 = vld [vmem:[%s1 + $0x3d0] sm:$0xff]
  %v135 = vld [vmem:[%s1 + $0x3d8] sm:$0xff]
  %v136 = vld [vmem:[%s1 + $0x3e0] sm:$0xff]
  %v137 = vld [vmem:[%s1 + $0x3e8] sm:$0xff]
  %v138 = vld [vmem:[%s1 + $0x3f0] sm:$0xff]
  %v139 = vld [vmem:[%s1 + $0x3f8] sm:$0xff]
  %v268 = vunpack.c.l.b16 %v12
  %v269 = vunpack.c.h.b16 %v12
  %v270 = vunpack.c.l.b16 %v13
  %v271 = vunpack.c.h.b16 %v13
  %v272 = vunpack.c.l.b16 %v14
  %v273 = vunpack.c.h.b16 %v14
  %v274 = vunpack.c.l.b16 %v15
  %v275 = vunpack.c.h.b16 %v15
  %v276 = vunpack.c.l.b16 %v16
  %v277 = vunpack.c.h.b16 %v16
  %v278 = vunpack.c.l.b16 %v17
  %v279 = vunpack.c.h.b16 %v17
  %v280 = vunpack.c.l.b16 %v18
  %v281 = vunpack.c.h.b16 %v18
  %v282 = vunpack.c.l.b16 %v19
  %v283 = vunpack.c.h.b16 %v19
  %v284 = vunpack.c.l.b16 %v20
  %v285 = vunpack.c.h.b16 %v20
  %v286 = vunpack.c.l.b16 %v21
  %v287 = vunpack.c.h.b16 %v21
  %v288 = vunpack.c.l.b16 %v22
  %v289 = vunpack.c.h.b16 %v22
  %v290 = vunpack.c.l.b16 %v23
  %v291 = vunpack.c.h.b16 %v23
  %v292 = vunpack.c.l.b16 %v24
  %v293 = vunpack.c.h.b16 %v24
  %v294 = vunpack.c.l.b16 %v25
  %v295 = vunpack.c.h.b16 %v25
  %v296 = vunpack.c.l.b16 %v26
  %v297 = vunpack.c.h.b16 %v26
  %v298 = vunpack.c.l.b16 %v27
  %v299 = vunpack.c.h.b16 %v27
  %v300 = vunpack.c.l.b16 %v28
  %v301 = vunpack.c.h.b16 %v28
  %v302 = vunpack.c.l.b16 %v29
  %v303 = vunpack.c.h.b16 %v29
  %v304 = vunpack.c.l.b16 %v30
  %v305 = vunpack.c.h.b16 %v30
  %v306 = vunpack.c.l.b16 %v31
  %v307 = vunpack.c.h.b16 %v31
  %v308 = vunpack.c.l.b16 %v32
  %v309 = vunpack.c.h.b16 %v32
  %v310 = vunpack.c.l.b16 %v33
  %v311 = vunpack.c.h.b16 %v33
  %v312 = vunpack.c.l.b16 %v34
  %v313 = vunpack.c.h.b16 %v34
  %v314 = vunpack.c.l.b16 %v35
  %v315 = vunpack.c.h.b16 %v35
  %v316 = vunpack.c.l.b16 %v36
  %v317 = vunpack.c.h.b16 %v36
  %v318 = vunpack.c.l.b16 %v37
  %v319 = vunpack.c.h.b16 %v37
  %v320 = vunpack.c.l.b16 %v38
  %v321 = vunpack.c.h.b16 %v38
  %v322 = vunpack.c.l.b16 %v39
  %v323 = vunpack.c.h.b16 %v39
  %v324 = vunpack.c.l.b16 %v40
  %v325 = vunpack.c.h.b16 %v40
  %v326 = vunpack.c.l.b16 %v41
  %v327 = vunpack.c.h.b16 %v41
  %v328 = vunpack.c.l.b16 %v42
  %v329 = vunpack.c.h.b16 %v42
  %v330 = vunpack.c.l.b16 %v43
  %v331 = vunpack.c.h.b16 %v43
  %v332 = vunpack.c.l.b16 %v44
  %v333 = vunpack.c.h.b16 %v44
  %v334 = vunpack.c.l.b16 %v45
  %v335 = vunpack.c.h.b16 %v45
  %v336 = vunpack.c.l.b16 %v46
  %v337 = vunpack.c.h.b16 %v46
  %v338 = vunpack.c.l.b16 %v47
  %v339 = vunpack.c.h.b16 %v47
  %v340 = vunpack.c.l.b16 %v48
  %v341 = vunpack.c.h.b16 %v48
  %v342 = vunpack.c.l.b16 %v49
  %v343 = vunpack.c.h.b16 %v49
  %v344 = vunpack.c.l.b16 %v50
  %v345 = vunpack.c.h.b16 %v50
  %v346 = vunpack.c.l.b16 %v51
  %v347 = vunpack.c.h.b16 %v51
  %v348 = vunpack.c.l.b16 %v52
  %v349 = vunpack.c.h.b16 %v52
  %v350 = vunpack.c.l.b16 %v53
  %v351 = vunpack.c.h.b16 %v53
  %v352 = vunpack.c.l.b16 %v54
  %v353 = vunpack.c.h.b16 %v54
  %v354 = vunpack.c.l.b16 %v55
  %v355 = vunpack.c.h.b16 %v55
  %v356 = vunpack.c.l.b16 %v56
  %v357 = vunpack.c.h.b16 %v56
  %v358 = vunpack.c.l.b16 %v57
  %v359 = vunpack.c.h.b16 %v57
  %v360 = vunpack.c.l.b16 %v58
  %v361 = vunpack.c.h.b16 %v58
  %v362 = vunpack.c.l.b16 %v59
  %v363 = vunpack.c.h.b16 %v59
  %v364 = vunpack.c.l.b16 %v60
  %v365 = vunpack.c.h.b16 %v60
  %v366 = vunpack.c.l.b16 %v61
  %v367 = vunpack.c.h.b16 %v61
  %v368 = vunpack.c.l.b16 %v62
  %v369 = vunpack.c.h.b16 %v62
  %v370 = vunpack.c.l.b16 %v63
  %v371 = vunpack.c.h.b16 %v63
  %v372 = vunpack.c.l.b16 %v64
  %v373 = vunpack.c.h.b16 %v64
  %v374 = vunpack.c.l.b16 %v65
  %v375 = vunpack.c.h.b16 %v65
  %v376 = vunpack.c.l.b16 %v66
  %v377 = vunpack.c.h.b16 %v66
  %v378 = vunpack.c.l.b16 %v67
  %v379 = vunpack.c.h.b16 %v67
  %v380 = vunpack.c.l.b16 %v68
  %v381 = vunpack.c.h.b16 %v68
  %v382 = vunpack.c.l.b16 %v69
  %v383 = vunpack.c.h.b16 %v69
  %v384 = vunpack.c.l.b16 %v70
  %v385 = vunpack.c.h.b16 %v70
  %v386 = vunpack.c.l.b16 %v71
  %v387 = vunpack.c.h.b16 %v71
  %v388 = vunpack.c.l.b16 %v72
  %v389 = vunpack.c.h.b16 %v72
  %v390 = vunpack.c.l.b16 %v73
  %v391 = vunpack.c.h.b16 %v73
  %v392 = vunpack.c.l.b16 %v74
  %v393 = vunpack.c.h.b16 %v74
  %v394 = vunpack.c.l.b16 %v75
  %v395 = vunpack.c.h.b16 %v75
  %v396 = vunpack.c.l.b16 %v76
  %v397 = vunpack.c.h.b16 %v76
  %v398 = vunpack.c.l.b16 %v77
  %v399 = vunpack.c.h.b16 %v77
  %v400 = vunpack.c.l.b16 %v78
  %v401 = vunpack.c.h.b16 %v78
  %v402 = vunpack.c.l.b16 %v79
  %v403 = vunpack.c.h.b16 %v79
  %v404 = vunpack.c.l.b16 %v80
  %v405 = vunpack.c.h.b16 %v80
  %v406 = vunpack.c.l.b16 %v81
  %v407 = vunpack.c.h.b16 %v81
  %v408 = vunpack.c.l.b16 %v82
  %v409 = vunpack.c.h.b16 %v82
  %v410 = vunpack.c.l.b16 %v83
  %v411 = vunpack.c.h.b16 %v83
  %v412 = vunpack.c.l.b16 %v84
  %v413 = vunpack.c.h.b16 %v84
  %v414 = vunpack.c.l.b16 %v85
  %v415 = vunpack.c.h.b16 %v85
  %v416 = vunpack.c.l.b16 %v86
  %v417 = vunpack.c.h.b16 %v86
  %v418 = vunpack.c.l.b16 %v87
  %v419 = vunpack.c.h.b16 %v87
  %v420 = vunpack.c.l.b16 %v88
  %v421 = vunpack.c.h.b16 %v88
  %v422 = vunpack.c.l.b16 %v89
  %v423 = vunpack.c.h.b16 %v89
  %v424 = vunpack.c.l.b16 %v90
  %v425 = vunpack.c.h.b16 %v90
  %v426 = vunpack.c.l.b16 %v91
  %v427 = vunpack.c.h.b16 %v91
  %v428 = vunpack.c.l.b16 %v92
  %v429 = vunpack.c.h.b16 %v92
  %v430 = vunpack.c.l.b16 %v93
  %v431 = vunpack.c.h.b16 %v93
  %v432 = vunpack.c.l.b16 %v94
  %v433 = vunpack.c.h.b16 %v94
  %v434 = vunpack.c.l.b16 %v95
  %v435 = vunpack.c.h.b16 %v95
  %v436 = vunpack.c.l.b16 %v96
  %v437 = vunpack.c.h.b16 %v96
  %v438 = vunpack.c.l.b16 %v97
  %v439 = vunpack.c.h.b16 %v97
  %v440 = vunpack.c.l.b16 %v98
  %v441 = vunpack.c.h.b16 %v98
  %v442 = vunpack.c.l.b16 %v99
  %v443 = vunpack.c.h.b16 %v99
  %v444 = vunpack.c.l.b16 %v100
  %v445 = vunpack.c.h.b16 %v100
  %v446 = vunpack.c.l.b16 %v101
  %v447 = vunpack.c.h.b16 %v101
  %v448 = vunpack.c.l.b16 %v102
  %v449 = vunpack.c.h.b16 %v102
  %v450 = vunpack.c.l.b16 %v103
  %v451 = vunpack.c.h.b16 %v103
  %v452 = vunpack.c.l.b16 %v104
  %v453 = vunpack.c.h.b16 %v104
  %v454 = vunpack.c.l.b16 %v105
  %v455 = vunpack.c.h.b16 %v105
  %v456 = vunpack.c.l.b16 %v106
  %v457 = vunpack.c.h.b16 %v106
  %v458 = vunpack.c.l.b16 %v107
  %v459 = vunpack.c.h.b16 %v107
  %v460 = vunpack.c.l.b16 %v108
  %v461 = vunpack.c.h.b16 %v108
  %v462 = vunpack.c.l.b16 %v109
  %v463 = vunpack.c.h.b16 %v109
  %v464 = vunpack.c.l.b16 %v110
  %v465 = vunpack.c.h.b16 %v110
  %v466 = vunpack.c.l.b16 %v111
  %v467 = vunpack.c.h.b16 %v111
  %v468 = vunpack.c.l.b16 %v112
  %v469 = vunpack.c.h.b16 %v112
  %v470 = vunpack.c.l.b16 %v113
  %v471 = vunpack.c.h.b16 %v113
  %v472 = vunpack.c.l.b16 %v114
  %v473 = vunpack.c.h.b16 %v114
  %v474 = vunpack.c.l.b16 %v115
  %v475 = vunpack.c.h.b16 %v115
  %v476 = vunpack.c.l.b16 %v116
  %v477 = vunpack.c.h.b16 %v116
  %v478 = vunpack.c.l.b16 %v117
  %v479 = vunpack.c.h.b16 %v117
  %v480 = vunpack.c.l.b16 %v118
  %v481 = vunpack.c.h.b16 %v118
  %v482 = vunpack.c.l.b16 %v119
  %v483 = vunpack.c.h.b16 %v119
  %v484 = vunpack.c.l.b16 %v120
  %v485 = vunpack.c.h.b16 %v120
  %v486 = vunpack.c.l.b16 %v121
  %v487 = vunpack.c.h.b16 %v121
  %v488 = vunpack.c.l.b16 %v122
  %v489 = vunpack.c.h.b16 %v122
  %v490 = vunpack.c.l.b16 %v123
  %v491 = vunpack.c.h.b16 %v123
  %v492 = vunpack.c.l.b16 %v124
  %v493 = vunpack.c.h.b16 %v124
  %v494 = vunpack.c.l.b16 %v125
  %v495 = vunpack.c.h.b16 %v125
  %v496 = vunpack.c.l.b16 %v126
  %v497 = vunpack.c.h.b16 %v126
  %v498 = vunpack.c.l.b16 %v127
  %v499 = vunpack.c.h.b16 %v127
  %v500 = vunpack.c.l.b16 %v128
  %v501 = vunpack.c.h.b16 %v128
  %v502 = vunpack.c.l.b16 %v129
  %v503 = vunpack.c.h.b16 %v129
  %v504 = vunpack.c.l.b16 %v130
  %v505 = vunpack.c.h.b16 %v130
  %v506 = vunpack.c.l.b16 %v131
  %v507 = vunpack.c.h.b16 %v131
  %v508 = vunpack.c.l.b16 %v132
  %v509 = vunpack.c.h.b16 %v132
  %v510 = vunpack.c.l.b16 %v133
  %v511 = vunpack.c.h.b16 %v133
  %v512 = vunpack.c.l.b16 %v134
  %v513 = vunpack.c.h.b16 %v134
  %v514 = vunpack.c.l.b16 %v135
  %v515 = vunpack.c.h.b16 %v135
  %v516 = vunpack.c.l.b16 %v136
  %v517 = vunpack.c.h.b16 %v136
  %v518 = vunpack.c.l.b16 %v137
  %v519 = vunpack.c.h.b16 %v137
  %v520 = vunpack.c.l.b16 %v138
  %v521 = vunpack.c.h.b16 %v138
  %v522 = vunpack.c.l.b16 %v139
  %v523 = vunpack.c.h.b16 %v139
  %v524 = vpack.c.b16 %v284, %v268
  %v525 = vpack.c.b16 %v285, %v269
  %v526 = vpack.c.b16 %v286, %v270
  %v527 = vpack.c.b16 %v287, %v271
  %v528 = vpack.c.b16 %v288, %v272
  %v529 = vpack.c.b16 %v289, %v273
  %v530 = vpack.c.b16 %v290, %v274
  %v531 = vpack.c.b16 %v291, %v275
  %v532 = vpack.c.b16 %v292, %v276
  %v533 = vpack.c.b16 %v293, %v277
  %v534 = vpack.c.b16 %v294, %v278
  %v535 = vpack.c.b16 %v295, %v279
  %v536 = vpack.c.b16 %v296, %v280
  %v537 = vpack.c.b16 %v297, %v281
  %v538 = vpack.c.b16 %v298, %v282
  %v539 = vpack.c.b16 %v299, %v283
  %v540 = vpack.c.b16 %v316, %v300
  %v541 = vpack.c.b16 %v317, %v301
  %v542 = vpack.c.b16 %v318, %v302
  %v543 = vpack.c.b16 %v319, %v303
  %v544 = vpack.c.b16 %v320, %v304
  %v545 = vpack.c.b16 %v321, %v305
  %v546 = vpack.c.b16 %v322, %v306
  %v547 = vpack.c.b16 %v323, %v307
  %v548 = vpack.c.b16 %v324, %v308
  %v549 = vpack.c.b16 %v325, %v309
  %v550 = vpack.c.b16 %v326, %v310
  %v551 = vpack.c.b16 %v327, %v311
  %v552 = vpack.c.b16 %v328, %v312
  %v553 = vpack.c.b16 %v329, %v313
  %v554 = vpack.c.b16 %v330, %v314
  %v555 = vpack.c.b16 %v331, %v315
  %v556 = vpack.c.b16 %v348, %v332
  %v557 = vpack.c.b16 %v349, %v333
  %v558 = vpack.c.b16 %v350, %v334
  %v559 = vpack.c.b16 %v351, %v335
  %v560 = vpack.c.b16 %v352, %v336
  %v561 = vpack.c.b16 %v353, %v337
  %v562 = vpack.c.b16 %v354, %v338
  %v563 = vpack.c.b16 %v355, %v339
  %v564 = vpack.c.b16 %v356, %v340
  %v565 = vpack.c.b16 %v357, %v341
  %v566 = vpack.c.b16 %v358, %v342
  %v567 = vpack.c.b16 %v359, %v343
  %v568 = vpack.c.b16 %v360, %v344
  %v569 = vpack.c.b16 %v361, %v345
  %v570 = vpack.c.b16 %v362, %v346
  %v571 = vpack.c.b16 %v363, %v347
  %v572 = vpack.c.b16 %v380, %v364
  %v573 = vpack.c.b16 %v381, %v365
  %v574 = vpack.c.b16 %v382, %v366
  %v575 = vpack.c.b16 %v383, %v367
  %v576 = vpack.c.b16 %v384, %v368
  %v577 = vpack.c.b16 %v385, %v369
  %v578 = vpack.c.b16 %v386, %v370
  %v579 = vpack.c.b16 %v387, %v371
  %v580 = vpack.c.b16 %v388, %v372
  %v581 = vpack.c.b16 %v389, %v373
  %v582 = vpack.c.b16 %v390, %v374
  %v583 = vpack.c.b16 %v391, %v375
  %v584 = vpack.c.b16 %v392, %v376
  %v585 = vpack.c.b16 %v393, %v377
  %v586 = vpack.c.b16 %v394, %v378
  %v587 = vpack.c.b16 %v395, %v379
  %v588 = vpack.c.b16 %v412, %v396
  %v589 = vpack.c.b16 %v413, %v397
  %v590 = vpack.c.b16 %v414, %v398
  %v591 = vpack.c.b16 %v415, %v399
  %v592 = vpack.c.b16 %v416, %v400
  %v593 = vpack.c.b16 %v417, %v401
  %v594 = vpack.c.b16 %v418, %v402
  %v595 = vpack.c.b16 %v419, %v403
  %v596 = vpack.c.b16 %v420, %v404
  %v597 = vpack.c.b16 %v421, %v405
  %v598 = vpack.c.b16 %v422, %v406
  %v599 = vpack.c.b16 %v423, %v407
  %v600 = vpack.c.b16 %v424, %v408
  %v601 = vpack.c.b16 %v425, %v409
  %v602 = vpack.c.b16 %v426, %v410
  %v603 = vpack.c.b16 %v427, %v411
  %v604 = vpack.c.b16 %v444, %v428
  %v605 = vpack.c.b16 %v445, %v429
  %v606 = vpack.c.b16 %v446, %v430
  %v607 = vpack.c.b16 %v447, %v431
  %v608 = vpack.c.b16 %v448, %v432
  %v609 = vpack.c.b16 %v449, %v433
  %v610 = vpack.c.b16 %v450, %v434
  %v611 = vpack.c.b16 %v451, %v435
  %v612 = vpack.c.b16 %v452, %v436
  %v613 = vpack.c.b16 %v453, %v437
  %v614 = vpack.c.b16 %v454, %v438
  %v615 = vpack.c.b16 %v455, %v439
  %v616 = vpack.c.b16 %v456, %v440
  %v617 = vpack.c.b16 %v457, %v441
  %v618 = vpack.c.b16 %v458, %v442
  %v619 = vpack.c.b16 %v459, %v443
  %v620 = vpack.c.b16 %v476, %v460
  %v621 = vpack.c.b16 %v477, %v461
  %v622 = vpack.c.b16 %v478, %v462
  %v623 = vpack.c.b16 %v479, %v463
  %v624 = vpack.c.b16 %v480, %v464
  %v625 = vpack.c.b16 %v481, %v465
  %v626 = vpack.c.b16 %v482, %v466
  %v627 = vpack.c.b16 %v483, %v467
  %v628 = vpack.c.b16 %v484, %v468
  %v629 = vpack.c.b16 %v485, %v469
  %v630 = vpack.c.b16 %v486, %v470
  %v631 = vpack.c.b16 %v487, %v471
  %v632 = vpack.c.b16 %v488, %v472
  %v633 = vpack.c.b16 %v489, %v473
  %v634 = vpack.c.b16 %v490, %v474
  %v635 = vpack.c.b16 %v491, %v475
  %v636 = vpack.c.b16 %v508, %v492
  %v637 = vpack.c.b16 %v509, %v493
  %v638 = vpack.c.b16 %v510, %v494
  %v639 = vpack.c.b16 %v511, %v495
  %v640 = vpack.c.b16 %v512, %v496
  %v641 = vpack.c.b16 %v513, %v497
  %v642 = vpack.c.b16 %v514, %v498
  %v643 = vpack.c.b16 %v515, %v499
  %v644 = vpack.c.b16 %v516, %v500
  %v645 = vpack.c.b16 %v517, %v501
  %v646 = vpack.c.b16 %v518, %v502
  %v647 = vpack.c.b16 %v519, %v503
  %v648 = vpack.c.b16 %v520, %v504
  %v649 = vpack.c.b16 %v521, %v505
  %v650 = vpack.c.b16 %v522, %v506
  %v651 = vpack.c.b16 %v523, %v507
  %780 = vmatpush.bf16.msra.mxu0 %v636
  %781 = vmatpush.bf16.msra.mxu0 %v620
  %782 = vmatpush.bf16.msra.mxu0 %v604
  %783 = vmatpush.bf16.msra.mxu0 %v588
  %784 = vmatpush.bf16.msra.mxu0 %v572
  %785 = vmatpush.bf16.msra.mxu0 %v556
  %786 = vmatpush.bf16.msra.mxu0 %v540
  %787 = vmatpush.bf16.msra.mxu0 %v524
  %788 = vmatmul.bf16.gmra.mxu0 %v11
  %v789 = vpop.f32.mrf.mxu0
  %v790 = vadd.f32 0.0, %v789
  %v791 = vpop.f32.mrf.mxu0
  %792 = vdwg.mxu0
  %793 = vmatpush.bf16.msra.mxu0 %v637
  %794 = vmatpush.bf16.msra.mxu0 %v621
  %795 = vmatpush.bf16.msra.mxu0 %v605
  %796 = vmatpush.bf16.msra.mxu0 %v589
  %797 = vmatpush.bf16.msra.mxu0 %v573
  %798 = vmatpush.bf16.msra.mxu0 %v557
  %799 = vmatpush.bf16.msra.mxu0 %v541
  %800 = vmatpush.bf16.msra.mxu0 %v525
  %801 = vmatmul.bf16.gmra.mxu0 %v11
  %v802 = vpop.f32.mrf.mxu0
  %v803 = vadd.f32 0.0, %v802
  %v804 = vpop.f32.mrf.mxu0
  %805 = vdwg.mxu0
  %806 = vmatpush.bf16.msra.mxu0 %v638
  %807 = vmatpush.bf16.msra.mxu0 %v622
  %808 = vmatpush.bf16.msra.mxu0 %v606
  %809 = vmatpush.bf16.msra.mxu0 %v590
  %810 = vmatpush.bf16.msra.mxu0 %v574
  %811 = vmatpush.bf16.msra.mxu0 %v558
  %812 = vmatpush.bf16.msra.mxu0 %v542
  %813 = vmatpush.bf16.msra.mxu0 %v526
  %814 = vmatmul.bf16.gmra.mxu0 %v11
  %v815 = vpop.f32.mrf.mxu0
  %v816 = vadd.f32 0.0, %v815
  %v817 = vpop.f32.mrf.mxu0
  %818 = vdwg.mxu0
  %819 = vmatpush.bf16.msra.mxu0 %v639
  %820 = vmatpush.bf16.msra.mxu0 %v623
  %821 = vmatpush.bf16.msra.mxu0 %v607
  %822 = vmatpush.bf16.msra.mxu0 %v591
  %823 = vmatpush.bf16.msra.mxu0 %v575
  %824 = vmatpush.bf16.msra.mxu0 %v559
  %825 = vmatpush.bf16.msra.mxu0 %v543
  %826 = vmatpush.bf16.msra.mxu0 %v527
  %827 = vmatmul.bf16.gmra.mxu0 %v11
  %v828 = vpop.f32.mrf.mxu0
  %v829 = vadd.f32 0.0, %v828
  %v830 = vpop.f32.mrf.mxu0
  %831 = vdwg.mxu0
  %832 = vmatpush.bf16.msra.mxu0 %v640
  %833 = vmatpush.bf16.msra.mxu0 %v624
  %834 = vmatpush.bf16.msra.mxu0 %v608
  %835 = vmatpush.bf16.msra.mxu0 %v592
  %836 = vmatpush.bf16.msra.mxu0 %v576
  %837 = vmatpush.bf16.msra.mxu0 %v560
  %838 = vmatpush.bf16.msra.mxu0 %v544
  %839 = vmatpush.bf16.msra.mxu0 %v528
  %840 = vmatmul.bf16.gmra.mxu0 %v11
  %v841 = vpop.f32.mrf.mxu0
  %v842 = vadd.f32 0.0, %v841
  %v843 = vpop.f32.mrf.mxu0
  %844 = vdwg.mxu0
  %845 = vmatpush.bf16.msra.mxu0 %v641
  %846 = vmatpush.bf16.msra.mxu0 %v625
  %847 = vmatpush.bf16.msra.mxu0 %v609
  %848 = vmatpush.bf16.msra.mxu0 %v593
  %849 = vmatpush.bf16.msra.mxu0 %v577
  %850 = vmatpush.bf16.msra.mxu0 %v561
  %851 = vmatpush.bf16.msra.mxu0 %v545
  %852 = vmatpush.bf16.msra.mxu0 %v529
  %853 = vmatmul.bf16.gmra.mxu0 %v11
  %v854 = vpop.f32.mrf.mxu0
  %v855 = vadd.f32 0.0, %v854
  %v856 = vpop.f32.mrf.mxu0
  %857 = vdwg.mxu0
  %858 = vmatpush.bf16.msra.mxu0 %v642
  %859 = vmatpush.bf16.msra.mxu0 %v626
  %860 = vmatpush.bf16.msra.mxu0 %v610
  %861 = vmatpush.bf16.msra.mxu0 %v594
  %862 = vmatpush.bf16.msra.mxu0 %v578
  %863 = vmatpush.bf16.msra.mxu0 %v562
  %864 = vmatpush.bf16.msra.mxu0 %v546
  %865 = vmatpush.bf16.msra.mxu0 %v530
  %866 = vmatmul.bf16.gmra.mxu0 %v11
  %v867 = vpop.f32.mrf.mxu0
  %v868 = vadd.f32 0.0, %v867
  %v869 = vpop.f32.mrf.mxu0
  %870 = vdwg.mxu0
  %871 = vmatpush.bf16.msra.mxu0 %v643
  %872 = vmatpush.bf16.msra.mxu0 %v627
  %873 = vmatpush.bf16.msra.mxu0 %v611
  %874 = vmatpush.bf16.msra.mxu0 %v595
  %875 = vmatpush.bf16.msra.mxu0 %v579
  %876 = vmatpush.bf16.msra.mxu0 %v563
  %877 = vmatpush.bf16.msra.mxu0 %v547
  %878 = vmatpush.bf16.msra.mxu0 %v531
  %879 = vmatmul.bf16.gmra.mxu0 %v11
  %v880 = vpop.f32.mrf.mxu0
  %v881 = vadd.f32 0.0, %v880
  %v882 = vpop.f32.mrf.mxu0
  %883 = vdwg.mxu0
  %884 = vmatpush.bf16.msra.mxu0 %v644
  %885 = vmatpush.bf16.msra.mxu0 %v628
  %886 = vmatpush.bf16.msra.mxu0 %v612
  %887 = vmatpush.bf16.msra.mxu0 %v596
  %888 = vmatpush.bf16.msra.mxu0 %v580
  %889 = vmatpush.bf16.msra.mxu0 %v564
  %890 = vmatpush.bf16.msra.mxu0 %v548
  %891 = vmatpush.bf16.msra.mxu0 %v532
  %892 = vmatmul.bf16.gmra.mxu0 %v11
  %v893 = vpop.f32.mrf.mxu0
  %v894 = vadd.f32 0.0, %v893
  %v895 = vpop.f32.mrf.mxu0
  %896 = vdwg.mxu0
  %897 = vmatpush.bf16.msra.mxu0 %v645
  %898 = vmatpush.bf16.msra.mxu0 %v629
  %899 = vmatpush.bf16.msra.mxu0 %v613
  %900 = vmatpush.bf16.msra.mxu0 %v597
  %901 = vmatpush.bf16.msra.mxu0 %v581
  %902 = vmatpush.bf16.msra.mxu0 %v565
  %903 = vmatpush.bf16.msra.mxu0 %v549
  %904 = vmatpush.bf16.msra.mxu0 %v533
  %905 = vmatmul.bf16.gmra.mxu0 %v11
  %v906 = vpop.f32.mrf.mxu0
  %v907 = vadd.f32 0.0, %v906
  %v908 = vpop.f32.mrf.mxu0
  %909 = vdwg.mxu0
  %910 = vmatpush.bf16.msra.mxu0 %v646
  %911 = vmatpush.bf16.msra.mxu0 %v630
  %912 = vmatpush.bf16.msra.mxu0 %v614
  %913 = vmatpush.bf16.msra.mxu0 %v598
  %914 = vmatpush.bf16.msra.mxu0 %v582
  %915 = vmatpush.bf16.msra.mxu0 %v566
  %916 = vmatpush.bf16.msra.mxu0 %v550
  %917 = vmatpush.bf16.msra.mxu0 %v534
  %918 = vmatmul.bf16.gmra.mxu0 %v11
  %v919 = vpop.f32.mrf.mxu0
  %v920 = vadd.f32 0.0, %v919
  %v921 = vpop.f32.mrf.mxu0
  %922 = vdwg.mxu0
  %923 = vmatpush.bf16.msra.mxu0 %v647
  %924 = vmatpush.bf16.msra.mxu0 %v631
  %925 = vmatpush.bf16.msra.mxu0 %v615
  %926 = vmatpush.bf16.msra.mxu0 %v599
  %927 = vmatpush.bf16.msra.mxu0 %v583
  %928 = vmatpush.bf16.msra.mxu0 %v567
  %929 = vmatpush.bf16.msra.mxu0 %v551
  %930 = vmatpush.bf16.msra.mxu0 %v535
  %931 = vmatmul.bf16.gmra.mxu0 %v11
  %v932 = vpop.f32.mrf.mxu0
  %v933 = vadd.f32 0.0, %v932
  %v934 = vpop.f32.mrf.mxu0
  %935 = vdwg.mxu0
  %936 = vmatpush.bf16.msra.mxu0 %v648
  %937 = vmatpush.bf16.msra.mxu0 %v632
  %938 = vmatpush.bf16.msra.mxu0 %v616
  %939 = vmatpush.bf16.msra.mxu0 %v600
  %940 = vmatpush.bf16.msra.mxu0 %v584
  %941 = vmatpush.bf16.msra.mxu0 %v568
  %942 = vmatpush.bf16.msra.mxu0 %v552
  %943 = vmatpush.bf16.msra.mxu0 %v536
  %944 = vmatmul.bf16.gmra.mxu0 %v11
  %v945 = vpop.f32.mrf.mxu0
  %v946 = vadd.f32 0.0, %v945
  %v947 = vpop.f32.mrf.mxu0
  %948 = vdwg.mxu0
  %949 = vmatpush.bf16.msra.mxu0 %v649
  %950 = vmatpush.bf16.msra.mxu0 %v633
  %951 = vmatpush.bf16.msra.mxu0 %v617
  %952 = vmatpush.bf16.msra.mxu0 %v601
  %953 = vmatpush.bf16.msra.mxu0 %v585
  %954 = vmatpush.bf16.msra.mxu0 %v569
  %955 = vmatpush.bf16.msra.mxu0 %v553
  %956 = vmatpush.bf16.msra.mxu0 %v537
  %957 = vmatmul.bf16.gmra.mxu0 %v11
  %v958 = vpop.f32.mrf.mxu0
  %v959 = vadd.f32 0.0, %v958
  %v960 = vpop.f32.mrf.mxu0
  %961 = vdwg.mxu0
  %962 = vmatpush.bf16.msra.mxu0 %v650
  %963 = vmatpush.bf16.msra.mxu0 %v634
  %964 = vmatpush.bf16.msra.mxu0 %v618
  %965 = vmatpush.bf16.msra.mxu0 %v602
  %966 = vmatpush.bf16.msra.mxu0 %v586
  %967 = vmatpush.bf16.msra.mxu0 %v570
  %968 = vmatpush.bf16.msra.mxu0 %v554
  %969 = vmatpush.bf16.msra.mxu0 %v538
  %970 = vmatmul.bf16.gmra.mxu0 %v11
  %v971 = vpop.f32.mrf.mxu0
  %v972 = vadd.f32 0.0, %v971
  %v973 = vpop.f32.mrf.mxu0
  %974 = vdwg.mxu0
  %975 = vmatpush.bf16.msra.mxu0 %v651
  %976 = vmatpush.bf16.msra.mxu0 %v635
  %977 = vmatpush.bf16.msra.mxu0 %v619
  %978 = vmatpush.bf16.msra.mxu0 %v603
  %979 = vmatpush.bf16.msra.mxu0 %v587
  %980 = vmatpush.bf16.msra.mxu0 %v571
  %981 = vmatpush.bf16.msra.mxu0 %v555
  %982 = vmatpush.bf16.msra.mxu0 %v539
  %983 = vmatmul.bf16.gmra.mxu0 %v11
  %v984 = vpop.f32.mrf.mxu0
  %v985 = vadd.f32 0.0, %v984
  %v986 = vpop.f32.mrf.mxu0
  %987 = vdwg.mxu0
  %v1004 = vrot.slane %v803, 6
  %v1005 = vrot.slane %v816, 4
  %v1006 = vrot.slane %v829, 2
  %v1007 = vrot.slane %v855, 6
  %v1008 = vrot.slane %v868, 4
  %v1009 = vrot.slane %v881, 2
  %v1010 = vrot.slane %v907, 6
  %v1011 = vrot.slane %v920, 4
  %v1012 = vrot.slane %v933, 2
  %v1013 = vrot.slane %v959, 6
  %v1014 = vrot.slane %v972, 4
  %v1015 = vrot.slane %v985, 2
  %vm1016 = vcmask 1041408
  %v1017 = vsel %vm1016, %v790, %v1004
  %vm1018 = vcmask 1045508
  %v1019 = vsel %vm1018, %v1005, %v1006
  %vm1020 = vcmask 1043456
  %v1021 = vsel %vm1020, %v1017, %v1019
  %v1022 = vsel %vm1016, %v842, %v1007
  %v1023 = vsel %vm1018, %v1008, %v1009
  %v1024 = vsel %vm1020, %v1022, %v1023
  %v1025 = vsel %vm1016, %v894, %v1010
  %v1026 = vsel %vm1018, %v1011, %v1012
  %v1027 = vsel %vm1020, %v1025, %v1026
  %v1028 = vsel %vm1016, %v946, %v1013
  %v1029 = vsel %vm1018, %v1014, %v1015
  %v1030 = vsel %vm1020, %v1028, %v1029
  %1035 = vst [vmem:[%s2] sm:$0xff] %v1021
  %1036 = vst [vmem:[%s2 + $0x8] sm:$0xff] %v1024
  %1037 = vst [vmem:[%s2 + $0x10] sm:$0xff] %v1027
  %1038 = vst [vmem:[%s2 + $0x18] sm:$0xff] %v1030
  // Predicated region
  $region10: #{dcgan_g_forward.3} parent=0 // pred_check
    _
  $region11: #{dcgan_g_forward.3} parent=0 // pred_check_branch
    %1040 = sbr.rel (0) target = $region13
  $region12: #{dcgan_g_forward.3} parent=0 // pred_region
    _
  $region13: #{dcgan_g_forward.3} parent=0 // pred_fallthru
    _
  // Predicated region
  $region14: #{dcgan_g_forward.3} parent=0 // pred_check
    _
  $region15: #{dcgan_g_forward.3} parent=0 // pred_check_branch
    %1042 = sbr.rel (0) target = $region17
  $region16: #{dcgan_g_forward.3} parent=0 // pred_region
    _
  $region17: #{dcgan_g_forward.3} parent=0 // pred_fallthru
    _

// kernel: dcgan_g_forward.4
$region0: #{dcgan_g_forward.4}
  #allocation0 [shape = 'u32[]', space=smem, size = 0x4, offset = 0x4, fixed_abs, tag = 'smem constant byte address 0x4 - core index']
  #allocation1 [shape = 'u32[72,128]{1,0:T(1,128)}', space=vmem, size = 0x9000, scoped, tag = 'internal scratch']
  #allocation2 [shape = 'f32[6,6,2048]{2,1,0:T(8,128)}', space=vmem, size = 0x60000, scoped, tag = 'scratch operand']
  %s0 = inlined_call_operand.vmem [shape: f32[2,16,128], index: 0, kind: input, shape index: {}]
  %s1 = inlined_call_operand.vmem [shape: f32[2,128], index: 1, kind: input, shape index: {}]
  %s2 = inlined_call_operand.vmem [shape: bf16[128,2048], index: 2, kind: input, shape index: {}]
  %s3 = inlined_call_operand.vmem [shape: f32[8,4,4,128], index: 3, kind: output, shape index: {0}]
  %s4 = inlined_call_operand.vmem [shape: f32[2,2,128], index: 4, kind: output, shape index: {1}]
  %5 = xla_tuple %s3, %s4
  %s6 = sld [smem:[#allocation0]]
  $region53: #{dcgan_g_forward.4} parent=0
    _
  %s8 = ssub.s32 1, %s6
  %s9 = scalar_select 0, %s8, %s6
  loop: start=0, step=1, limit=4
  $region2: #{dcgan_g_forward.4} parent=0 // loop_pre_header
    _
  $region3: #{dcgan_g_forward.4} parent=0 // loop_header
    %s11 = sphi 0, %s15
    %p12 = scmp.ge.s32.totalorder %s11, 4
    %s21 = sphi 0, %s23
    %s24 = sphi 0, %s21
    %s25 = sphi 0, %s24
    %s41 = sphi 0, %s25
    %s45 = sphi 0, %s45
    %s47 = sphi 0, %s45
    %s48 = sphi 0, %s47
    %s62 = sphi 0, %s48
    %s66 = sphi 0, %s66
    %s68 = sphi 0, %s66
    %s69 = sphi 0, %s68
    %s83 = sphi 0, %s69
    %s89 = sphi 0, %s91
    %s92 = sphi 0, %s89
    %s93 = sphi 0, %s92
    %s109 = sphi 0, %s93
    %s115 = sphi 0, %s117
    %s118 = sphi 0, %s115
    %s119 = sphi 0, %s118
    %s135 = sphi 0, %s119
  $region4: #{dcgan_g_forward.4} parent=0 // loop_header_branch
    %14 = sbr.rel (%p12) target = $region8
  $region5: #{dcgan_g_forward.4} parent=0 // loop_body
    %s16 = ssub.s32 %s11, 1
    %s17 = ssub.s32 %s11, 2
    %s18 = sadd.s32 %s11, 1
    %s19 = ssub.s32 %s11, %s18
    %p20 = scmp.eq.s32.totalorder %s19, 0
    %s22 = sadd.s32 %s21, 1
    %s23 = scalar_select %p20, %s21, %s22
    %p26 = pneg %p20
    %p27 = scmp.eq.s32.totalorder %s11, 1
    %p28 = por %p26, %p27
    %p29 = scmp.ne.s32.totalorder %s21, %s24
    %p30 = scmp.eq.s32.totalorder %s11, 0
    %p31 = por %p29, %p30
    %p32 = scmp.ne.s32.totalorder %s21, %s24
    %p33 = scmp.eq.s32.totalorder %s16, 1
    %p34 = por %p32, %p33
    %p35 = scmp.ne.s32.totalorder %s24, %s25
    %p36 = scmp.eq.s32.totalorder %s16, 0
    %p37 = por %p35, %p36
    %p38 = scmp.ne.s32.totalorder %s24, %s25
    %p39 = scmp.eq.s32.totalorder %s17, 1
    %p40 = por %p38, %p39
    %p42 = scmp.ne.s32.totalorder %s25, %s41
    %p43 = scmp.eq.s32.totalorder %s17, 0
    %p44 = por %p42, %p43
    %s46 = sadd.s32 %s45, 1
    %p49 = scmp.eq.s32.totalorder %s11, 1
    %p50 = scmp.ne.s32.totalorder %s45, %s47
    %p51 = scmp.eq.s32.totalorder %s11, 0
    %p52 = por %p50, %p51
    %p53 = scmp.ne.s32.totalorder %s45, %s47
    %p54 = scmp.eq.s32.totalorder %s16, 1
    %p55 = por %p53, %p54
    %p56 = scmp.ne.s32.totalorder %s47, %s48
    %p57 = scmp.eq.s32.totalorder %s16, 0
    %p58 = por %p56, %p57
    %p59 = scmp.ne.s32.totalorder %s47, %s48
    %p60 = scmp.eq.s32.totalorder %s17, 1
    %p61 = por %p59, %p60
    %p63 = scmp.ne.s32.totalorder %s48, %s62
    %p64 = scmp.eq.s32.totalorder %s17, 0
    %p65 = por %p63, %p64
    %s67 = sadd.s32 %s66, 1
    %p70 = scmp.eq.s32.totalorder %s11, 1
    %p71 = scmp.ne.s32.totalorder %s66, %s68
    %p72 = scmp.eq.s32.totalorder %s11, 0
    %p73 = por %p71, %p72
    %p74 = scmp.ne.s32.totalorder %s66, %s68
    %p75 = scmp.eq.s32.totalorder %s16, 1
    %p76 = por %p74, %p75
    %p77 = scmp.ne.s32.totalorder %s68, %s69
    %p78 = scmp.eq.s32.totalorder %s16, 0
    %p79 = por %p77, %p78
    %p80 = scmp.ne.s32.totalorder %s68, %s69
    %p81 = scmp.eq.s32.totalorder %s17, 1
    %p82 = por %p80, %p81
    %p84 = scmp.ne.s32.totalorder %s69, %s83
    %p85 = scmp.eq.s32.totalorder %s17, 0
    %p86 = por %p84, %p85
    %s87 = ssub.s32 %s11, %s18
    %p88 = scmp.eq.s32.totalorder %s87, 0
    %s90 = sadd.s32 %s89, 1
    %s91 = scalar_select %p88, %s89, %s90
    %p94 = pneg %p88
    %p95 = scmp.eq.s32.totalorder %s11, 1
    %p96 = por %p94, %p95
    %p97 = scmp.ne.s32.totalorder %s89, %s92
    %p98 = scmp.eq.s32.totalorder %s11, 0
    %p99 = por %p97, %p98
    %p100 = scmp.ne.s32.totalorder %s89, %s92
    %p101 = scmp.eq.s32.totalorder %s16, 1
    %p102 = por %p100, %p101
    %p103 = scmp.ne.s32.totalorder %s92, %s93
    %p104 = scmp.eq.s32.totalorder %s16, 0
    %p105 = por %p103, %p104
    %p106 = scmp.ne.s32.totalorder %s92, %s93
    %p107 = scmp.eq.s32.totalorder %s17, 1
    %p108 = por %p106, %p107
    %p110 = scmp.ne.s32.totalorder %s93, %s109
    %p111 = scmp.eq.s32.totalorder %s17, 0
    %p112 = por %p110, %p111
    %s113 = ssub.s32 %s11, %s18
    %p114 = scmp.eq.s32.totalorder %s113, 0
    %s116 = sadd.s32 %s115, 1
    %s117 = scalar_select %p114, %s115, %s116
    %p120 = pneg %p114
    %p121 = scmp.eq.s32.totalorder %s11, 1
    %p122 = por %p120, %p121
    %p123 = scmp.ne.s32.totalorder %s115, %s118
    %p124 = scmp.eq.s32.totalorder %s11, 0
    %p125 = por %p123, %p124
    %p126 = scmp.ne.s32.totalorder %s115, %s118
    %p127 = scmp.eq.s32.totalorder %s16, 1
    %p128 = por %p126, %p127
    %p129 = scmp.ne.s32.totalorder %s118, %s119
    %p130 = scmp.eq.s32.totalorder %s16, 0
    %p131 = por %p129, %p130
    %p132 = scmp.ne.s32.totalorder %s118, %s119
    %p133 = scmp.eq.s32.totalorder %s17, 1
    %p134 = por %p132, %p133
    %p136 = scmp.ne.s32.totalorder %s119, %s135
    %p137 = scmp.eq.s32.totalorder %s17, 0
    %p138 = por %p136, %p137
    %p139 = scmp.le.s32.totalorder 1, %s11
    %p140 = scmp.lt.s32.totalorder %s11, 3
    %p141 = pnand %p139, %p140
    %p142 = pneg %p141
    // Predicated region
    $region9: #{dcgan_g_forward.4} parent=5 // pred_check
      _
    $region10: #{dcgan_g_forward.4} parent=5 // pred_check_branch
      %144 = sbr.rel (%p141) target = $region12
    $region11: #{dcgan_g_forward.4} parent=5 // pred_region
      %s145 = ssub.s32 %s11, 1
      // Predicated region
      $region13: #{dcgan_g_forward.4} parent=11 // pred_check
        %p146 = pneg %p58
      $region14: #{dcgan_g_forward.4} parent=11 // pred_check_branch
        %148 = sbr.rel (%p146) target = $region16
      $region15: #{dcgan_g_forward.4} parent=11 // pred_region
        _
      $region16: #{dcgan_g_forward.4} parent=11 // pred_fallthru
        _
      // Predicated region
      $region17: #{dcgan_g_forward.4} parent=11 // pred_check
        %p149 = pneg %p79
      $region18: #{dcgan_g_forward.4} parent=11 // pred_check_branch
        %151 = sbr.rel (%p149) target = $region20
      $region19: #{dcgan_g_forward.4} parent=11 // pred_region
        _
      $region20: #{dcgan_g_forward.4} parent=11 // pred_fallthru
        _
    $region12: #{dcgan_g_forward.4} parent=5 // pred_fallthru
      _
    %p152 = scmp.lt.s32.totalorder %s11, 2
    // Predicated region
    $region21: #{dcgan_g_forward.4} parent=5 // pred_check
      %p153 = pneg %p152
    $region22: #{dcgan_g_forward.4} parent=5 // pred_check_branch
      %155 = sbr.rel (%p153) target = $region24
    $region23: #{dcgan_g_forward.4} parent=5 // pred_region
      // Predicated region
      $region25: #{dcgan_g_forward.4} parent=23 // pred_check
        %p156 = pneg %p31
      $region26: #{dcgan_g_forward.4} parent=23 // pred_check_branch
        %158 = sbr.rel (%p156) target = $region28
      $region27: #{dcgan_g_forward.4} parent=23 // pred_region
        %p159 = scmp.lt.s32.totalorder %s11, 1
        %s160 = scalar_select %p159, %s11, 1
        %s161 = smul.addr %s160, 2
        %s162 = smul.addr %s161, 8
        %s163 = scalar_lea.vmem %s0, %s162
      $region28: #{dcgan_g_forward.4} parent=23 // pred_fallthru
        _
    $region24: #{dcgan_g_forward.4} parent=5 // pred_fallthru
      _
    %p164 = scmp.le.s32.totalorder 1, %s11
    %p165 = scmp.lt.s32.totalorder %s11, 3
    %p166 = pnand %p164, %p165
    %p167 = pneg %p166
    // Predicated region
    $region29: #{dcgan_g_forward.4} parent=5 // pred_check
      _
    $region30: #{dcgan_g_forward.4} parent=5 // pred_check_branch
      %169 = sbr.rel (%p166) target = $region32
    $region31: #{dcgan_g_forward.4} parent=5 // pred_region
      %s170 = ssub.s32 %s11, 1
      %p171 = scmp.lt.s32.totalorder %s16, 1
      %s172 = scalar_select %p171, %s16, 1
      %s173 = smul.addr %s172, 2
      %s174 = smul.addr %s173, 8
      %s175 = scalar_lea.vmem %s0, %s174
      %p176 = pneg %p37
      %p177 = pneg %p34
      %p178 = pneg %p58
      %p179 = pneg %p55
      %p180 = pneg %p79
      %p181 = pneg %p76
      %p182 = pneg %p105
      %p183 = pneg %p102
      %s184 = smul.u32 4, %s16
      %p185 = scmp.lt.s32.totalorder %s184, 7
      %s186 = scalar_select %p185, %s184, 7
      %s187 = smul.addr %s186, 4
      %s188 = smul.addr %s187, 4
      %s189 = scalar_lea.vmem %s3, %s188
      %p190 = pneg %p131
      %p191 = pneg %p128
      %p192 = scmp.lt.s32.totalorder %s16, 1
      %s193 = scalar_select %p192, %s16, 1
      %s194 = smul.addr %s193, 2
      %s195 = scalar_lea.vmem %s4, %s194
      %p196 = scmp.lt.s32.totalorder %s16, 1
      %s197 = scalar_select %p196, %s16, 1
      %s198 = smul.addr %s197, 2
      %s199 = smul.addr %s198, 8
      %s200 = scalar_lea.vmem %s0, %s199
      %s201 = smul.u32 4, %s16
      %p202 = scmp.lt.s32.totalorder %s201, 7
      %s203 = scalar_select %p202, %s201, 7
      %s204 = smul.addr %s203, 4
      %s205 = smul.addr %s204, 4
      %s206 = scalar_lea.vmem %s3, %s205
      %s207 = smul.u32 4, %s16
      %p208 = scmp.lt.s32.totalorder %s16, 1
      %s209 = scalar_select %p208, %s16, 1
      %s210 = smul.addr %s209, 2
      %s211 = scalar_lea.vmem %s4, %s210
      %v212 = vld [vmem:[%s1] sm:$0x3]
      %v213 = vld [vmem:[%s200] sm:$0xff]
      %v214 = vld [vmem:[%s200 + $0x8] sm:$0xff]
      %v215 = vperm.slane %v212, 0
      %v216 = vmul.f32 %v213, %v215
      %v217 = vmul.f32 %v214, %v215
      %v218 = vperm.slane %v212, 1
      %v219 = vadd.f32 %v216, %v218
      %v220 = vadd.f32 %v217, %v218
      %v221 = vmax.f32 %v219, 0.0
      %v222 = vmax.f32 %v220, 0.0
      %v223 = vpack.c.bf16 %v222, %v221
      %v224 = vld [vmem:[%s2] sm:$0xff]
      %v225 = vld [vmem:[%s2 + $0x8] sm:$0xff]
      %v226 = vld [vmem:[%s2 + $0x10] sm:$0xff]
      %v227 = vld [vmem:[%s2 + $0x18] sm:$0xff]
      %v228 = vld [vmem:[%s2 + $0x20] sm:$0xff]
      %v229 = vld [vmem:[%s2 + $0x28] sm:$0xff]
      %v230 = vld [vmem:[%s2 + $0x30] sm:$0xff]
      %v231 = vld [vmem:[%s2 + $0x38] sm:$0xff]
      %v232 = vld [vmem:[%s2 + $0x40] sm:$0xff]
      %v233 = vld [vmem:[%s2 + $0x48] sm:$0xff]
      %v234 = vld [vmem:[%s2 + $0x50] sm:$0xff]
      %v235 = vld [vmem:[%s2 + $0x58] sm:$0xff]
      %v236 = vld [vmem:[%s2 + $0x60] sm:$0xff]
      %v237 = vld [vmem:[%s2 + $0x68] sm:$0xff]
      %v238 = vld [vmem:[%s2 + $0x70] sm:$0xff]
      %v239 = vld [vmem:[%s2 + $0x78] sm:$0xff]
      %v240 = vld [vmem:[%s2 + $0x80] sm:$0xff]
      %v241 = vld [vmem:[%s2 + $0x88] sm:$0xff]
      %v242 = vld [vmem:[%s2 + $0x90] sm:$0xff]
      %v243 = vld [vmem:[%s2 + $0x98] sm:$0xff]
      %v244 = vld [vmem:[%s2 + $0xa0] sm:$0xff]
      %v245 = vld [vmem:[%s2 + $0xa8] sm:$0xff]
      %v246 = vld [vmem:[%s2 + $0xb0] sm:$0xff]
      %v247 = vld [vmem:[%s2 + $0xb8] sm:$0xff]
      %v248 = vld [vmem:[%s2 + $0xc0] sm:$0xff]
      %v249 = vld [vmem:[%s2 + $0xc8] sm:$0xff]
      %v250 = vld [vmem:[%s2 + $0xd0] sm:$0xff]
      %v251 = vld [vmem:[%s2 + $0xd8] sm:$0xff]
      %v252 = vld [vmem:[%s2 + $0xe0] sm:$0xff]
      %v253 = vld [vmem:[%s2 + $0xe8] sm:$0xff]
      %v254 = vld [vmem:[%s2 + $0xf0] sm:$0xff]
      %v255 = vld [vmem:[%s2 + $0xf8] sm:$0xff]
      %v256 = vld [vmem:[%s2 + $0x100] sm:$0xff]
      %v257 = vld [vmem:[%s2 + $0x108] sm:$0xff]
      %v258 = vld [vmem:[%s2 + $0x110] sm:$0xff]
      %v259 = vld [vmem:[%s2 + $0x118] sm:$0xff]
      %v260 = vld [vmem:[%s2 + $0x120] sm:$0xff]
      %v261 = vld [vmem:[%s2 + $0x128] sm:$0xff]
      %v262 = vld [vmem:[%s2 + $0x130] sm:$0xff]
      %v263 = vld [vmem:[%s2 + $0x138] sm:$0xff]
      %v264 = vld [vmem:[%s2 + $0x140] sm:$0xff]
      %v265 = vld [vmem:[%s2 + $0x148] sm:$0xff]
      %v266 = vld [vmem:[%s2 + $0x150] sm:$0xff]
      %v267 = vld [vmem:[%s2 + $0x158] sm:$0xff]
      %v268 = vld [vmem:[%s2 + $0x160] sm:$0xff]
      %v269 = vld [vmem:[%s2 + $0x168] sm:$0xff]
      %v270 = vld [vmem:[%s2 + $0x170] sm:$0xff]
      %v271 = vld [vmem:[%s2 + $0x178] sm:$0xff]
      %v272 = vld [vmem:[%s2 + $0x180] sm:$0xff]
      %v273 = vld [vmem:[%s2 + $0x188] sm:$0xff]
      %v274 = vld [vmem:[%s2 + $0x190] sm:$0xff]
      %v275 = vld [vmem:[%s2 + $0x198] sm:$0xff]
      %v276 = vld [vmem:[%s2 + $0x1a0] sm:$0xff]
      %v277 = vld [vmem:[%s2 + $0x1a8] sm:$0xff]
      %v278 = vld [vmem:[%s2 + $0x1b0] sm:$0xff]
      %v279 = vld [vmem:[%s2 + $0x1b8] sm:$0xff]
      %v280 = vld [vmem:[%s2 + $0x1c0] sm:$0xff]
      %v281 = vld [vmem:[%s2 + $0x1c8] sm:$0xff]
      %v282 = vld [vmem:[%s2 + $0x1d0] sm:$0xff]
      %v283 = vld [vmem:[%s2 + $0x1d8] sm:$0xff]
      %v284 = vld [vmem:[%s2 + $0x1e0] sm:$0xff]
      %v285 = vld [vmem:[%s2 + $0x1e8] sm:$0xff]
      %v286 = vld [vmem:[%s2 + $0x1f0] sm:$0xff]
      %v287 = vld [vmem:[%s2 + $0x1f8] sm:$0xff]
      %v288 = vld [vmem:[%s2 + $0x200] sm:$0xff]
      %v289 = vld [vmem:[%s2 + $0x208] sm:$0xff]
      %v290 = vld [vmem:[%s2 + $0x210] sm:$0xff]
      %v291 = vld [vmem:[%s2 + $0x218] sm:$0xff]
      %v292 = vld [vmem:[%s2 + $0x220] sm:$0xff]
      %v293 = vld [vmem:[%s2 + $0x228] sm:$0xff]
      %v294 = vld [vmem:[%s2 + $0x230] sm:$0xff]
      %v295 = vld [vmem:[%s2 + $0x238] sm:$0xff]
      %v296 = vld [vmem:[%s2 + $0x240] sm:$0xff]
      %v297 = vld [vmem:[%s2 + $0x248] sm:$0xff]
      %v298 = vld [vmem:[%s2 + $0x250] sm:$0xff]
      %v299 = vld [vmem:[%s2 + $0x258] sm:$0xff]
      %v300 = vld [vmem:[%s2 + $0x260] sm:$0xff]
      %v301 = vld [vmem:[%s2 + $0x268] sm:$0xff]
      %v302 = vld [vmem:[%s2 + $0x270] sm:$0xff]
      %v303 = vld [vmem:[%s2 + $0x278] sm:$0xff]
      %v304 = vld [vmem:[%s2 + $0x280] sm:$0xff]
      %v305 = vld [vmem:[%s2 + $0x288] sm:$0xff]
      %v306 = vld [vmem:[%s2 + $0x290] sm:$0xff]
      %v307 = vld [vmem:[%s2 + $0x298] sm:$0xff]
      %v308 = vld [vmem:[%s2 + $0x2a0] sm:$0xff]
      %v309 = vld [vmem:[%s2 + $0x2a8] sm:$0xff]
      %v310 = vld [vmem:[%s2 + $0x2b0] sm:$0xff]
      %v311 = vld [vmem:[%s2 + $0x2b8] sm:$0xff]
      %v312 = vld [vmem:[%s2 + $0x2c0] sm:$0xff]
      %v313 = vld [vmem:[%s2 + $0x2c8] sm:$0xff]
      %v314 = vld [vmem:[%s2 + $0x2d0] sm:$0xff]
      %v315 = vld [vmem:[%s2 + $0x2d8] sm:$0xff]
      %v316 = vld [vmem:[%s2 + $0x2e0] sm:$0xff]
      %v317 = vld [vmem:[%s2 + $0x2e8] sm:$0xff]
      %v318 = vld [vmem:[%s2 + $0x2f0] sm:$0xff]
      %v319 = vld [vmem:[%s2 + $0x2f8] sm:$0xff]
      %v320 = vld [vmem:[%s2 + $0x300] sm:$0xff]
      %v321 = vld [vmem:[%s2 + $0x308] sm:$0xff]
      %v322 = vld [vmem:[%s2 + $0x310] sm:$0xff]
      %v323 = vld [vmem:[%s2 + $0x318] sm:$0xff]
      %v324 = vld [vmem:[%s2 + $0x320] sm:$0xff]
      %v325 = vld [vmem:[%s2 + $0x328] sm:$0xff]
      %v326 = vld [vmem:[%s2 + $0x330] sm:$0xff]
      %v327 = vld [vmem:[%s2 + $0x338] sm:$0xff]
      %v328 = vld [vmem:[%s2 + $0x340] sm:$0xff]
      %v329 = vld [vmem:[%s2 + $0x348] sm:$0xff]
      %v330 = vld [vmem:[%s2 + $0x350] sm:$0xff]
      %v331 = vld [vmem:[%s2 + $0x358] sm:$0xff]
      %v332 = vld [vmem:[%s2 + $0x360] sm:$0xff]
      %v333 = vld [vmem:[%s2 + $0x368] sm:$0xff]
      %v334 = vld [vmem:[%s2 + $0x370] sm:$0xff]
      %v335 = vld [vmem:[%s2 + $0x378] sm:$0xff]
      %v336 = vld [vmem:[%s2 + $0x380] sm:$0xff]
      %v337 = vld [vmem:[%s2 + $0x388] sm:$0xff]
      %v338 = vld [vmem:[%s2 + $0x390] sm:$0xff]
      %v339 = vld [vmem:[%s2 + $0x398] sm:$0xff]
      %v340 = vld [vmem:[%s2 + $0x3a0] sm:$0xff]
      %v341 = vld [vmem:[%s2 + $0x3a8] sm:$0xff]
      %v342 = vld [vmem:[%s2 + $0x3b0] sm:$0xff]
      %v343 = vld [vmem:[%s2 + $0x3b8] sm:$0xff]
      %v344 = vld [vmem:[%s2 + $0x3c0] sm:$0xff]
      %v345 = vld [vmem:[%s2 + $0x3c8] sm:$0xff]
      %v346 = vld [vmem:[%s2 + $0x3d0] sm:$0xff]
      %v347 = vld [vmem:[%s2 + $0x3d8] sm:$0xff]
      %v348 = vld [vmem:[%s2 + $0x3e0] sm:$0xff]
      %v349 = vld [vmem:[%s2 + $0x3e8] sm:$0xff]
      %v350 = vld [vmem:[%s2 + $0x3f0] sm:$0xff]
      %v351 = vld [vmem:[%s2 + $0x3f8] sm:$0xff]
      %v480 = vunpack.c.l.b16 %v224
      %v481 = vunpack.c.h.b16 %v224
      %v482 = vunpack.c.l.b16 %v225
      %v483 = vunpack.c.h.b16 %v225
      %v484 = vunpack.c.l.b16 %v226
      %v485 = vunpack.c.h.b16 %v226
      %v486 = vunpack.c.l.b16 %v227
      %v487 = vunpack.c.h.b16 %v227
      %v488 = vunpack.c.l.b16 %v228
      %v489 = vunpack.c.h.b16 %v228
      %v490 = vunpack.c.l.b16 %v229
      %v491 = vunpack.c.h.b16 %v229
      %v492 = vunpack.c.l.b16 %v230
      %v493 = vunpack.c.h.b16 %v230
      %v494 = vunpack.c.l.b16 %v231
      %v495 = vunpack.c.h.b16 %v231
      %v496 = vunpack.c.l.b16 %v232
      %v497 = vunpack.c.h.b16 %v232
      %v498 = vunpack.c.l.b16 %v233
      %v499 = vunpack.c.h.b16 %v233
      %v500 = vunpack.c.l.b16 %v234
      %v501 = vunpack.c.h.b16 %v234
      %v502 = vunpack.c.l.b16 %v235
      %v503 = vunpack.c.h.b16 %v235
      %v504 = vunpack.c.l.b16 %v236
      %v505 = vunpack.c.h.b16 %v236
      %v506 = vunpack.c.l.b16 %v237
      %v507 = vunpack.c.h.b16 %v237
      %v508 = vunpack.c.l.b16 %v238
      %v509 = vunpack.c.h.b16 %v238
      %v510 = vunpack.c.l.b16 %v239
      %v511 = vunpack.c.h.b16 %v239
      %v512 = vunpack.c.l.b16 %v240
      %v513 = vunpack.c.h.b16 %v240
      %v514 = vunpack.c.l.b16 %v241
      %v515 = vunpack.c.h.b16 %v241
      %v516 = vunpack.c.l.b16 %v242
      %v517 = vunpack.c.h.b16 %v242
      %v518 = vunpack.c.l.b16 %v243
      %v519 = vunpack.c.h.b16 %v243
      %v520 = vunpack.c.l.b16 %v244
      %v521 = vunpack.c.h.b16 %v244
      %v522 = vunpack.c.l.b16 %v245
      %v523 = vunpack.c.h.b16 %v245
      %v524 = vunpack.c.l.b16 %v246
      %v525 = vunpack.c.h.b16 %v246
      %v526 = vunpack.c.l.b16 %v247
      %v527 = vunpack.c.h.b16 %v247
      %v528 = vunpack.c.l.b16 %v248
      %v529 = vunpack.c.h.b16 %v248
      %v530 = vunpack.c.l.b16 %v249
      %v531 = vunpack.c.h.b16 %v249
      %v532 = vunpack.c.l.b16 %v250
      %v533 = vunpack.c.h.b16 %v250
      %v534 = vunpack.c.l.b16 %v251
      %v535 = vunpack.c.h.b16 %v251
      %v536 = vunpack.c.l.b16 %v252
      %v537 = vunpack.c.h.b16 %v252
      %v538 = vunpack.c.l.b16 %v253
      %v539 = vunpack.c.h.b16 %v253
      %v540 = vunpack.c.l.b16 %v254
      %v541 = vunpack.c.h.b16 %v254
      %v542 = vunpack.c.l.b16 %v255
      %v543 = vunpack.c.h.b16 %v255
      %v544 = vunpack.c.l.b16 %v256
      %v545 = vunpack.c.h.b16 %v256
      %v546 = vunpack.c.l.b16 %v257
      %v547 = vunpack.c.h.b16 %v257
      %v548 = vunpack.c.l.b16 %v258
      %v549 = vunpack.c.h.b16 %v258
      %v550 = vunpack.c.l.b16 %v259
      %v551 = vunpack.c.h.b16 %v259
      %v552 = vunpack.c.l.b16 %v260
      %v553 = vunpack.c.h.b16 %v260
      %v554 = vunpack.c.l.b16 %v261
      %v555 = vunpack.c.h.b16 %v261
      %v556 = vunpack.c.l.b16 %v262
      %v557 = vunpack.c.h.b16 %v262
      %v558 = vunpack.c.l.b16 %v263
      %v559 = vunpack.c.h.b16 %v263
      %v560 = vunpack.c.l.b16 %v264
      %v561 = vunpack.c.h.b16 %v264
      %v562 = vunpack.c.l.b16 %v265
      %v563 = vunpack.c.h.b16 %v265
      %v564 = vunpack.c.l.b16 %v266
      %v565 = vunpack.c.h.b16 %v266
      %v566 = vunpack.c.l.b16 %v267
      %v567 = vunpack.c.h.b16 %v267
      %v568 = vunpack.c.l.b16 %v268
      %v569 = vunpack.c.h.b16 %v268
      %v570 = vunpack.c.l.b16 %v269
      %v571 = vunpack.c.h.b16 %v269
      %v572 = vunpack.c.l.b16 %v270
      %v573 = vunpack.c.h.b16 %v270
      %v574 = vunpack.c.l.b16 %v271
      %v575 = vunpack.c.h.b16 %v271
      %v576 = vunpack.c.l.b16 %v272
      %v577 = vunpack.c.h.b16 %v272
      %v578 = vunpack.c.l.b16 %v273
      %v579 = vunpack.c.h.b16 %v273
      %v580 = vunpack.c.l.b16 %v274
      %v581 = vunpack.c.h.b16 %v274
      %v582 = vunpack.c.l.b16 %v275
      %v583 = vunpack.c.h.b16 %v275
      %v584 = vunpack.c.l.b16 %v276
      %v585 = vunpack.c.h.b16 %v276
      %v586 = vunpack.c.l.b16 %v277
      %v587 = vunpack.c.h.b16 %v277
      %v588 = vunpack.c.l.b16 %v278
      %v589 = vunpack.c.h.b16 %v278
      %v590 = vunpack.c.l.b16 %v279
      %v591 = vunpack.c.h.b16 %v279
      %v592 = vunpack.c.l.b16 %v280
      %v593 = vunpack.c.h.b16 %v280
      %v594 = vunpack.c.l.b16 %v281
      %v595 = vunpack.c.h.b16 %v281
      %v596 = vunpack.c.l.b16 %v282
      %v597 = vunpack.c.h.b16 %v282
      %v598 = vunpack.c.l.b16 %v283
      %v599 = vunpack.c.h.b16 %v283
      %v600 = vunpack.c.l.b16 %v284
      %v601 = vunpack.c.h.b16 %v284
      %v602 = vunpack.c.l.b16 %v285
      %v603 = vunpack.c.h.b16 %v285
      %v604 = vunpack.c.l.b16 %v286
      %v605 = vunpack.c.h.b16 %v286
      %v606 = vunpack.c.l.b16 %v287
      %v607 = vunpack.c.h.b16 %v287
      %v608 = vunpack.c.l.b16 %v288
      %v609 = vunpack.c.h.b16 %v288
      %v610 = vunpack.c.l.b16 %v289
      %v611 = vunpack.c.h.b16 %v289
      %v612 = vunpack.c.l.b16 %v290
      %v613 = vunpack.c.h.b16 %v290
      %v614 = vunpack.c.l.b16 %v291
      %v615 = vunpack.c.h.b16 %v291
      %v616 = vunpack.c.l.b16 %v292
      %v617 = vunpack.c.h.b16 %v292
      %v618 = vunpack.c.l.b16 %v293
      %v619 = vunpack.c.h.b16 %v293
      %v620 = vunpack.c.l.b16 %v294
      %v621 = vunpack.c.h.b16 %v294
      %v622 = vunpack.c.l.b16 %v295
      %v623 = vunpack.c.h.b16 %v295
      %v624 = vunpack.c.l.b16 %v296
      %v625 = vunpack.c.h.b16 %v296
      %v626 = vunpack.c.l.b16 %v297
      %v627 = vunpack.c.h.b16 %v297
      %v628 = vunpack.c.l.b16 %v298
      %v629 = vunpack.c.h.b16 %v298
      %v630 = vunpack.c.l.b16 %v299
      %v631 = vunpack.c.h.b16 %v299
      %v632 = vunpack.c.l.b16 %v300
      %v633 = vunpack.c.h.b16 %v300
      %v634 = vunpack.c.l.b16 %v301
      %v635 = vunpack.c.h.b16 %v301
      %v636 = vunpack.c.l.b16 %v302
      %v637 = vunpack.c.h.b16 %v302
      %v638 = vunpack.c.l.b16 %v303
      %v639 = vunpack.c.h.b16 %v303
      %v640 = vunpack.c.l.b16 %v304
      %v641 = vunpack.c.h.b16 %v304
      %v642 = vunpack.c.l.b16 %v305
      %v643 = vunpack.c.h.b16 %v305
      %v644 = vunpack.c.l.b16 %v306
      %v645 = vunpack.c.h.b16 %v306
      %v646 = vunpack.c.l.b16 %v307
      %v647 = vunpack.c.h.b16 %v307
      %v648 = vunpack.c.l.b16 %v308
      %v649 = vunpack.c.h.b16 %v308
      %v650 = vunpack.c.l.b16 %v309
      %v651 = vunpack.c.h.b16 %v309
      %v652 = vunpack.c.l.b16 %v310
      %v653 = vunpack.c.h.b16 %v310
      %v654 = vunpack.c.l.b16 %v311
      %v655 = vunpack.c.h.b16 %v311
      %v656 = vunpack.c.l.b16 %v312
      %v657 = vunpack.c.h.b16 %v312
      %v658 = vunpack.c.l.b16 %v313
      %v659 = vunpack.c.h.b16 %v313
      %v660 = vunpack.c.l.b16 %v314
      %v661 = vunpack.c.h.b16 %v314
      %v662 = vunpack.c.l.b16 %v315
      %v663 = vunpack.c.h.b16 %v315
      %v664 = vunpack.c.l.b16 %v316
      %v665 = vunpack.c.h.b16 %v316
      %v666 = vunpack.c.l.b16 %v317
      %v667 = vunpack.c.h.b16 %v317
      %v668 = vunpack.c.l.b16 %v318
      %v669 = vunpack.c.h.b16 %v318
      %v670 = vunpack.c.l.b16 %v319
      %v671 = vunpack.c.h.b16 %v319
      %v672 = vunpack.c.l.b16 %v320
      %v673 = vunpack.c.h.b16 %v320
      %v674 = vunpack.c.l.b16 %v321
      %v675 = vunpack.c.h.b16 %v321
      %v676 = vunpack.c.l.b16 %v322
      %v677 = vunpack.c.h.b16 %v322
      %v678 = vunpack.c.l.b16 %v323
      %v679 = vunpack.c.h.b16 %v323
      %v680 = vunpack.c.l.b16 %v324
      %v681 = vunpack.c.h.b16 %v324
      %v682 = vunpack.c.l.b16 %v325
      %v683 = vunpack.c.h.b16 %v325
      %v684 = vunpack.c.l.b16 %v326
      %v685 = vunpack.c.h.b16 %v326
      %v686 = vunpack.c.l.b16 %v327
      %v687 = vunpack.c.h.b16 %v327
      %v688 = vunpack.c.l.b16 %v328
      %v689 = vunpack.c.h.b16 %v328
      %v690 = vunpack.c.l.b16 %v329
      %v691 = vunpack.c.h.b16 %v329
      %v692 = vunpack.c.l.b16 %v330
      %v693 = vunpack.c.h.b16 %v330
      %v694 = vunpack.c.l.b16 %v331
      %v695 = vunpack.c.h.b16 %v331
      %v696 = vunpack.c.l.b16 %v332
      %v697 = vunpack.c.h.b16 %v332
      %v698 = vunpack.c.l.b16 %v333
      %v699 = vunpack.c.h.b16 %v333
      %v700 = vunpack.c.l.b16 %v334
      %v701 = vunpack.c.h.b16 %v334
      %v702 = vunpack.c.l.b16 %v335
      %v703 = vunpack.c.h.b16 %v335
      %v704 = vunpack.c.l.b16 %v336
      %v705 = vunpack.c.h.b16 %v336
      %v706 = vunpack.c.l.b16 %v337
      %v707 = vunpack.c.h.b16 %v337
      %v708 = vunpack.c.l.b16 %v338
      %v709 = vunpack.c.h.b16 %v338
      %v710 = vunpack.c.l.b16 %v339
      %v711 = vunpack.c.h.b16 %v339
      %v712 = vunpack.c.l.b16 %v340
      %v713 = vunpack.c.h.b16 %v340
      %v714 = vunpack.c.l.b16 %v341
      %v715 = vunpack.c.h.b16 %v341
      %v716 = vunpack.c.l.b16 %v342
      %v717 = vunpack.c.h.b16 %v342
      %v718 = vunpack.c.l.b16 %v343
      %v719 = vunpack.c.h.b16 %v343
      %v720 = vunpack.c.l.b16 %v344
      %v721 = vunpack.c.h.b16 %v344
      %v722 = vunpack.c.l.b16 %v345
      %v723 = vunpack.c.h.b16 %v345
      %v724 = vunpack.c.l.b16 %v346
      %v725 = vunpack.c.h.b16 %v346
      %v726 = vunpack.c.l.b16 %v347
      %v727 = vunpack.c.h.b16 %v347
      %v728 = vunpack.c.l.b16 %v348
      %v729 = vunpack.c.h.b16 %v348
      %v730 = vunpack.c.l.b16 %v349
      %v731 = vunpack.c.h.b16 %v349
      %v732 = vunpack.c.l.b16 %v350
      %v733 = vunpack.c.h.b16 %v350
      %v734 = vunpack.c.l.b16 %v351
      %v735 = vunpack.c.h.b16 %v351
      %v736 = vpack.c.b16 %v496, %v480
      %v737 = vpack.c.b16 %v497, %v481
      %v738 = vpack.c.b16 %v498, %v482
      %v739 = vpack.c.b16 %v499, %v483
      %v740 = vpack.c.b16 %v500, %v484
      %v741 = vpack.c.b16 %v501, %v485
      %v742 = vpack.c.b16 %v502, %v486
      %v743 = vpack.c.b16 %v503, %v487
      %v744 = vpack.c.b16 %v504, %v488
      %v745 = vpack.c.b16 %v505, %v489
      %v746 = vpack.c.b16 %v506, %v490
      %v747 = vpack.c.b16 %v507, %v491
      %v748 = vpack.c.b16 %v508, %v492
      %v749 = vpack.c.b16 %v509, %v493
      %v750 = vpack.c.b16 %v510, %v494
      %v751 = vpack.c.b16 %v511, %v495
      %v752 = vpack.c.b16 %v528, %v512
      %v753 = vpack.c.b16 %v529, %v513
      %v754 = vpack.c.b16 %v530, %v514
      %v755 = vpack.c.b16 %v531, %v515
      %v756 = vpack.c.b16 %v532, %v516
      %v757 = vpack.c.b16 %v533, %v517
      %v758 = vpack.c.b16 %v534, %v518
      %v759 = vpack.c.b16 %v535, %v519
      %v760 = vpack.c.b16 %v536, %v520
      %v761 = vpack.c.b16 %v537, %v521
      %v762 = vpack.c.b16 %v538, %v522
      %v763 = vpack.c.b16 %v539, %v523
      %v764 = vpack.c.b16 %v540, %v524
      %v765 = vpack.c.b16 %v541, %v525
      %v766 = vpack.c.b16 %v542, %v526
      %v767 = vpack.c.b16 %v543, %v527
      %v768 = vpack.c.b16 %v560, %v544
      %v769 = vpack.c.b16 %v561, %v545
      %v770 = vpack.c.b16 %v562, %v546
      %v771 = vpack.c.b16 %v563, %v547
      %v772 = vpack.c.b16 %v564, %v548
      %v773 = vpack.c.b16 %v565, %v549
      %v774 = vpack.c.b16 %v566, %v550
      %v775 = vpack.c.b16 %v567, %v551
      %v776 = vpack.c.b16 %v568, %v552
      %v777 = vpack.c.b16 %v569, %v553
      %v778 = vpack.c.b16 %v570, %v554
      %v779 = vpack.c.b16 %v571, %v555
      %v780 = vpack.c.b16 %v572, %v556
      %v781 = vpack.c.b16 %v573, %v557
      %v782 = vpack.c.b16 %v574, %v558
      %v783 = vpack.c.b16 %v575, %v559
      %v784 = vpack.c.b16 %v592, %v576
      %v785 = vpack.c.b16 %v593, %v577
      %v786 = vpack.c.b16 %v594, %v578
      %v787 = vpack.c.b16 %v595, %v579
      %v788 = vpack.c.b16 %v596, %v580
      %v789 = vpack.c.b16 %v597, %v581
      %v790 = vpack.c.b16 %v598, %v582
      %v791 = vpack.c.b16 %v599, %v583
      %v792 = vpack.c.b16 %v600, %v584
      %v793 = vpack.c.b16 %v601, %v585
      %v794 = vpack.c.b16 %v602, %v586
      %v795 = vpack.c.b16 %v603, %v587
      %v796 = vpack.c.b16 %v604, %v588
      %v797 = vpack.c.b16 %v605, %v589
      %v798 = vpack.c.b16 %v606, %v590
      %v799 = vpack.c.b16 %v607, %v591
      %v800 = vpack.c.b16 %v624, %v608
      %v801 = vpack.c.b16 %v625, %v609
      %v802 = vpack.c.b16 %v626, %v610
      %v803 = vpack.c.b16 %v627, %v611
      %v804 = vpack.c.b16 %v628, %v612
      %v805 = vpack.c.b16 %v629, %v613
      %v806 = vpack.c.b16 %v630, %v614
      %v807 = vpack.c.b16 %v631, %v615
      %v808 = vpack.c.b16 %v632, %v616
      %v809 = vpack.c.b16 %v633, %v617
      %v810 = vpack.c.b16 %v634, %v618
      %v811 = vpack.c.b16 %v635, %v619
      %v812 = vpack.c.b16 %v636, %v620
      %v813 = vpack.c.b16 %v637, %v621
      %v814 = vpack.c.b16 %v638, %v622
      %v815 = vpack.c.b16 %v639, %v623
      %v816 = vpack.c.b16 %v656, %v640
      %v817 = vpack.c.b16 %v657, %v641
      %v818 = vpack.c.b16 %v658, %v642
      %v819 = vpack.c.b16 %v659, %v643
      %v820 = vpack.c.b16 %v660, %v644
      %v821 = vpack.c.b16 %v661, %v645
      %v822 = vpack.c.b16 %v662, %v646
      %v823 = vpack.c.b16 %v663, %v647
      %v824 = vpack.c.b16 %v664, %v648
      %v825 = vpack.c.b16 %v665, %v649
      %v826 = vpack.c.b16 %v666, %v650
      %v827 = vpack.c.b16 %v667, %v651
      %v828 = vpack.c.b16 %v668, %v652
      %v829 = vpack.c.b16 %v669, %v653
      %v830 = vpack.c.b16 %v670, %v654
      %v831 = vpack.c.b16 %v671, %v655
      %v832 = vpack.c.b16 %v688, %v672
      %v833 = vpack.c.b16 %v689, %v673
      %v834 = vpack.c.b16 %v690, %v674
      %v835 = vpack.c.b16 %v691, %v675
      %v836 = vpack.c.b16 %v692, %v676
      %v837 = vpack.c.b16 %v693, %v677
      %v838 = vpack.c.b16 %v694, %v678
      %v839 = vpack.c.b16 %v695, %v679
      %v840 = vpack.c.b16 %v696, %v680
      %v841 = vpack.c.b16 %v697, %v681
      %v842 = vpack.c.b16 %v698, %v682
      %v843 = vpack.c.b16 %v699, %v683
      %v844 = vpack.c.b16 %v700, %v684
      %v845 = vpack.c.b16 %v701, %v685
      %v846 = vpack.c.b16 %v702, %v686
      %v847 = vpack.c.b16 %v703, %v687
      %v848 = vpack.c.b16 %v720, %v704
      %v849 = vpack.c.b16 %v721, %v705
      %v850 = vpack.c.b16 %v722, %v706
      %v851 = vpack.c.b16 %v723, %v707
      %v852 = vpack.c.b16 %v724, %v708
      %v853 = vpack.c.b16 %v725, %v709
      %v854 = vpack.c.b16 %v726, %v710
      %v855 = vpack.c.b16 %v727, %v711
      %v856 = vpack.c.b16 %v728, %v712
      %v857 = vpack.c.b16 %v729, %v713
      %v858 = vpack.c.b16 %v730, %v714
      %v859 = vpack.c.b16 %v731, %v715
      %v860 = vpack.c.b16 %v732, %v716
      %v861 = vpack.c.b16 %v733, %v717
      %v862 = vpack.c.b16 %v734, %v718
      %v863 = vpack.c.b16 %v735, %v719
      %992 = vmatpush.bf16.msra.mxu0 %v848
      %993 = vmatpush.bf16.msra.mxu0 %v832
      %994 = vmatpush.bf16.msra.mxu0 %v816
      %995 = vmatpush.bf16.msra.mxu0 %v800
      %996 = vmatpush.bf16.msra.mxu0 %v784
      %997 = vmatpush.bf16.msra.mxu0 %v768
      %998 = vmatpush.bf16.msra.mxu0 %v752
      %999 = vmatpush.bf16.msra.mxu0 %v736
      %1000 = vmatmul.bf16.gmra.mxu0 %v223
      %v1001 = vpop.f32.mrf.mxu0
      %v1002 = vadd.f32 0.0, %v1001
      %v1003 = vpop.f32.mrf.mxu0
      %v1004 = vadd.f32 0.0, %v1003
      %1005 = vdwg.mxu0
      %1006 = vmatpush.bf16.msra.mxu0 %v849
      %1007 = vmatpush.bf16.msra.mxu0 %v833
      %1008 = vmatpush.bf16.msra.mxu0 %v817
      %1009 = vmatpush.bf16.msra.mxu0 %v801
      %1010 = vmatpush.bf16.msra.mxu0 %v785
      %1011 = vmatpush.bf16.msra.mxu0 %v769
      %1012 = vmatpush.bf16.msra.mxu0 %v753
      %1013 = vmatpush.bf16.msra.mxu0 %v737
      %1014 = vmatmul.bf16.gmra.mxu0 %v223
      %v1015 = vpop.f32.mrf.mxu0
      %v1016 = vadd.f32 0.0, %v1015
      %v1017 = vpop.f32.mrf.mxu0
      %v1018 = vadd.f32 0.0, %v1017
      %1019 = vdwg.mxu0
      %1020 = vmatpush.bf16.msra.mxu0 %v850
      %1021 = vmatpush.bf16.msra.mxu0 %v834
      %1022 = vmatpush.bf16.msra.mxu0 %v818
      %1023 = vmatpush.bf16.msra.mxu0 %v802
      %1024 = vmatpush.bf16.msra.mxu0 %v786
      %1025 = vmatpush.bf16.msra.mxu0 %v770
      %1026 = vmatpush.bf16.msra.mxu0 %v754
      %1027 = vmatpush.bf16.msra.mxu0 %v738
      %1028 = vmatmul.bf16.gmra.mxu0 %v223
      %v1029 = vpop.f32.mrf.mxu0
      %v1030 = vadd.f32 0.0, %v1029
      %v1031 = vpop.f32.mrf.mxu0
      %v1032 = vadd.f32 0.0, %v1031
      %1033 = vdwg.mxu0
      %1034 = vmatpush.bf16.msra.mxu0 %v851
      %1035 = vmatpush.bf16.msra.mxu0 %v835
      %1036 = vmatpush.bf16.msra.mxu0 %v819
      %1037 = vmatpush.bf16.msra.mxu0 %v803
      %1038 = vmatpush.bf16.msra.mxu0 %v787
      %1039 = vmatpush.bf16.msra.mxu0 %v771
      %1040 = vmatpush.bf16.msra.mxu0 %v755
      %1041 = vmatpush.bf16.msra.mxu0 %v739
      %1042 = vmatmul.bf16.gmra.mxu0 %v223
      %v1043 = vpop.f32.mrf.mxu0
      %v1044 = vadd.f32 0.0, %v1043
      %v1045 = vpop.f32.mrf.mxu0
      %v1046 = vadd.f32 0.0, %v1045
      %1047 = vdwg.mxu0
      %1048 = vmatpush.bf16.msra.mxu0 %v852
      %1049 = vmatpush.bf16.msra.mxu0 %v836
      %1050 = vmatpush.bf16.msra.mxu0 %v820
      %1051 = vmatpush.bf16.msra.mxu0 %v804
      %1052 = vmatpush.bf16.msra.mxu0 %v788
      %1053 = vmatpush.bf16.msra.mxu0 %v772
      %1054 = vmatpush.bf16.msra.mxu0 %v756
      %1055 = vmatpush.bf16.msra.mxu0 %v740
      %1056 = vmatmul.bf16.gmra.mxu0 %v223
      %v1057 = vpop.f32.mrf.mxu0
      %v1058 = vadd.f32 0.0, %v1057
      %v1059 = vpop.f32.mrf.mxu0
      %v1060 = vadd.f32 0.0, %v1059
      %1061 = vdwg.mxu0
      %1062 = vmatpush.bf16.msra.mxu0 %v853
      %1063 = vmatpush.bf16.msra.mxu0 %v837
      %1064 = vmatpush.bf16.msra.mxu0 %v821
      %1065 = vmatpush.bf16.msra.mxu0 %v805
      %1066 = vmatpush.bf16.msra.mxu0 %v789
      %1067 = vmatpush.bf16.msra.mxu0 %v773
      %1068 = vmatpush.bf16.msra.mxu0 %v757
      %1069 = vmatpush.bf16.msra.mxu0 %v741
      %1070 = vmatmul.bf16.gmra.mxu0 %v223
      %v1071 = vpop.f32.mrf.mxu0
      %v1072 = vadd.f32 0.0, %v1071
      %v1073 = vpop.f32.mrf.mxu0
      %v1074 = vadd.f32 0.0, %v1073
      %1075 = vdwg.mxu0
      %1076 = vmatpush.bf16.msra.mxu0 %v854
      %1077 = vmatpush.bf16.msra.mxu0 %v838
      %1078 = vmatpush.bf16.msra.mxu0 %v822
      %1079 = vmatpush.bf16.msra.mxu0 %v806
      %1080 = vmatpush.bf16.msra.mxu0 %v790
      %1081 = vmatpush.bf16.msra.mxu0 %v774
      %1082 = vmatpush.bf16.msra.mxu0 %v758
      %1083 = vmatpush.bf16.msra.mxu0 %v742
      %1084 = vmatmul.bf16.gmra.mxu0 %v223
      %v1085 = vpop.f32.mrf.mxu0
      %v1086 = vadd.f32 0.0, %v1085
      %v1087 = vpop.f32.mrf.mxu0
      %v1088 = vadd.f32 0.0, %v1087
      %1089 = vdwg.mxu0
      %1090 = vmatpush.bf16.msra.mxu0 %v855
      %1091 = vmatpush.bf16.msra.mxu0 %v839
      %1092 = vmatpush.bf16.msra.mxu0 %v823
      %1093 = vmatpush.bf16.msra.mxu0 %v807
      %1094 = vmatpush.bf16.msra.mxu0 %v791
      %1095 = vmatpush.bf16.msra.mxu0 %v775
      %1096 = vmatpush.bf16.msra.mxu0 %v759
      %1097 = vmatpush.bf16.msra.mxu0 %v743
      %1098 = vmatmul.bf16.gmra.mxu0 %v223
      %v1099 = vpop.f32.mrf.mxu0
      %v1100 = vadd.f32 0.0, %v1099
      %v1101 = vpop.f32.mrf.mxu0
      %v1102 = vadd.f32 0.0, %v1101
      %1103 = vdwg.mxu0
      %1104 = vmatpush.bf16.msra.mxu0 %v856
      %1105 = vmatpush.bf16.msra.mxu0 %v840
      %1106 = vmatpush.bf16.msra.mxu0 %v824
      %1107 = vmatpush.bf16.msra.mxu0 %v808
      %1108 = vmatpush.bf16.msra.mxu0 %v792
      %1109 = vmatpush.bf16.msra.mxu0 %v776
      %1110 = vmatpush.bf16.msra.mxu0 %v760
      %1111 = vmatpush.bf16.msra.mxu0 %v744
      %1112 = vmatmul.bf16.gmra.mxu0 %v223
      %v1113 = vpop.f32.mrf.mxu0
      %v1114 = vadd.f32 0.0, %v1113
      %v1115 = vpop.f32.mrf.mxu0
      %v1116 = vadd.f32 0.0, %v1115
      %1117 = vdwg.mxu0
      %1118 = vmatpush.bf16.msra.mxu0 %v857
      %1119 = vmatpush.bf16.msra.mxu0 %v841
      %1120 = vmatpush.bf16.msra.mxu0 %v825
      %1121 = vmatpush.bf16.msra.mxu0 %v809
      %1122 = vmatpush.bf16.msra.mxu0 %v793
      %1123 = vmatpush.bf16.msra.mxu0 %v777
      %1124 = vmatpush.bf16.msra.mxu0 %v761
      %1125 = vmatpush.bf16.msra.mxu0 %v745
      %1126 = vmatmul.bf16.gmra.mxu0 %v223
      %v1127 = vpop.f32.mrf.mxu0
      %v1128 = vadd.f32 0.0, %v1127
      %v1129 = vpop.f32.mrf.mxu0
      %v1130 = vadd.f32 0.0, %v1129
      %1131 = vdwg.mxu0
      %1132 = vmatpush.bf16.msra.mxu0 %v858
      %1133 = vmatpush.bf16.msra.mxu0 %v842
      %1134 = vmatpush.bf16.msra.mxu0 %v826
      %1135 = vmatpush.bf16.msra.mxu0 %v810
      %1136 = vmatpush.bf16.msra.mxu0 %v794
      %1137 = vmatpush.bf16.msra.mxu0 %v778
      %1138 = vmatpush.bf16.msra.mxu0 %v762
      %1139 = vmatpush.bf16.msra.mxu0 %v746
      %1140 = vmatmul.bf16.gmra.mxu0 %v223
      %v1141 = vpop.f32.mrf.mxu0
      %v1142 = vadd.f32 0.0, %v1141
      %v1143 = vpop.f32.mrf.mxu0
      %v1144 = vadd.f32 0.0, %v1143
      %1145 = vdwg.mxu0
      %1146 = vmatpush.bf16.msra.mxu0 %v859
      %1147 = vmatpush.bf16.msra.mxu0 %v843
      %1148 = vmatpush.bf16.msra.mxu0 %v827
      %1149 = vmatpush.bf16.msra.mxu0 %v811
      %1150 = vmatpush.bf16.msra.mxu0 %v795
      %1151 = vmatpush.bf16.msra.mxu0 %v779
      %1152 = vmatpush.bf16.msra.mxu0 %v763
      %1153 = vmatpush.bf16.msra.mxu0 %v747
      %1154 = vmatmul.bf16.gmra.mxu0 %v223
      %v1155 = vpop.f32.mrf.mxu0
      %v1156 = vadd.f32 0.0, %v1155
      %v1157 = vpop.f32.mrf.mxu0
      %v1158 = vadd.f32 0.0, %v1157
      %1159 = vdwg.mxu0
      %1160 = vmatpush.bf16.msra.mxu0 %v860
      %1161 = vmatpush.bf16.msra.mxu0 %v844
      %1162 = vmatpush.bf16.msra.mxu0 %v828
      %1163 = vmatpush.bf16.msra.mxu0 %v812
      %1164 = vmatpush.bf16.msra.mxu0 %v796
      %1165 = vmatpush.bf16.msra.mxu0 %v780
      %1166 = vmatpush.bf16.msra.mxu0 %v764
      %1167 = vmatpush.bf16.msra.mxu0 %v748
      %1168 = vmatmul.bf16.gmra.mxu0 %v223
      %v1169 = vpop.f32.mrf.mxu0
      %v1170 = vadd.f32 0.0, %v1169
      %v1171 = vpop.f32.mrf.mxu0
      %v1172 = vadd.f32 0.0, %v1171
      %1173 = vdwg.mxu0
      %1174 = vmatpush.bf16.msra.mxu0 %v861
      %1175 = vmatpush.bf16.msra.mxu0 %v845
      %1176 = vmatpush.bf16.msra.mxu0 %v829
      %1177 = vmatpush.bf16.msra.mxu0 %v813
      %1178 = vmatpush.bf16.msra.mxu0 %v797
      %1179 = vmatpush.bf16.msra.mxu0 %v781
      %1180 = vmatpush.bf16.msra.mxu0 %v765
      %1181 = vmatpush.bf16.msra.mxu0 %v749
      %1182 = vmatmul.bf16.gmra.mxu0 %v223
      %v1183 = vpop.f32.mrf.mxu0
      %v1184 = vadd.f32 0.0, %v1183
      %v1185 = vpop.f32.mrf.mxu0
      %v1186 = vadd.f32 0.0, %v1185
      %1187 = vdwg.mxu0
      %1188 = vmatpush.bf16.msra.mxu0 %v862
      %1189 = vmatpush.bf16.msra.mxu0 %v846
      %1190 = vmatpush.bf16.msra.mxu0 %v830
      %1191 = vmatpush.bf16.msra.mxu0 %v814
      %1192 = vmatpush.bf16.msra.mxu0 %v798
      %1193 = vmatpush.bf16.msra.mxu0 %v782
      %1194 = vmatpush.bf16.msra.mxu0 %v766
      %1195 = vmatpush.bf16.msra.mxu0 %v750
      %1196 = vmatmul.bf16.gmra.mxu0 %v223
      %v1197 = vpop.f32.mrf.mxu0
      %v1198 = vadd.f32 0.0, %v1197
      %v1199 = vpop.f32.mrf.mxu0
      %v1200 = vadd.f32 0.0, %v1199
      %1201 = vdwg.mxu0
      %1202 = vmatpush.bf16.msra.mxu0 %v863
      %1203 = vmatpush.bf16.msra.mxu0 %v847
      %1204 = vmatpush.bf16.msra.mxu0 %v831
      %1205 = vmatpush.bf16.msra.mxu0 %v815
      %1206 = vmatpush.bf16.msra.mxu0 %v799
      %1207 = vmatpush.bf16.msra.mxu0 %v783
      %1208 = vmatpush.bf16.msra.mxu0 %v767
      %1209 = vmatpush.bf16.msra.mxu0 %v751
      %1210 = vmatmul.bf16.gmra.mxu0 %v223
      %v1211 = vpop.f32.mrf.mxu0
      %v1212 = vadd.f32 0.0, %v1211
      %v1213 = vpop.f32.mrf.mxu0
      %v1214 = vadd.f32 0.0, %v1213
      %1215 = vdwg.mxu0
      %1216 = vst [vmem:[#allocation2] sm:$0x3f] 0.0
      %1217 = vst [vmem:[#allocation2 + $0x8] sm:$0x3f] 0.0
      %1218 = vst [vmem:[#allocation2 + $0x10] sm:$0x3f] 0.0
      %1219 = vst [vmem:[#allocation2 + $0x18] sm:$0x3f] 0.0
      %1220 = vst [vmem:[#allocation2 + $0x20] sm:$0x3f] 0.0
      %1221 = vst [vmem:[#allocation2 + $0x28] sm:$0x3f] 0.0
      %1222 = vst [vmem:[#allocation2 + $0x30] sm:$0x3f] 0.0
      %1223 = vst [vmem:[#allocation2 + $0x38] sm:$0x3f] 0.0
      %1224 = vst [vmem:[#allocation2 + $0x40] sm:$0x3f] 0.0
      %1225 = vst [vmem:[#allocation2 + $0x48] sm:$0x3f] 0.0
      %1226 = vst [vmem:[#allocation2 + $0x50] sm:$0x3f] 0.0
      %1227 = vst [vmem:[#allocation2 + $0x58] sm:$0x3f] 0.0
      %1228 = vst [vmem:[#allocation2 + $0x60] sm:$0x3f] 0.0
      %1229 = vst [vmem:[#allocation2 + $0x68] sm:$0x3f] 0.0
      %1230 = vst [vmem:[#allocation2 + $0x70] sm:$0x3f] 0.0
      %1231 = vst [vmem:[#allocation2 + $0x78] sm:$0x3f] 0.0
      %s1232 = scalar_lea.vmem [#allocation2], 640
      %1233 = vst [vmem:[%s1232] sm:$0x3f] 0.0
      %1234 = vst [vmem:[%s1232 + $0x8] sm:$0x3f] 0.0
      %1235 = vst [vmem:[%s1232 + $0x10] sm:$0x3f] 0.0
      %1236 = vst [vmem:[%s1232 + $0x18] sm:$0x3f] 0.0
      %1237 = vst [vmem:[%s1232 + $0x20] sm:$0x3f] 0.0
      %1238 = vst [vmem:[%s1232 + $0x28] sm:$0x3f] 0.0
      %1239 = vst [vmem:[%s1232 + $0x30] sm:$0x3f] 0.0
      %1240 = vst [vmem:[%s1232 + $0x38] sm:$0x3f] 0.0
      %1241 = vst [vmem:[%s1232 + $0x40] sm:$0x3f] 0.0
      %1242 = vst [vmem:[%s1232 + $0x48] sm:$0x3f] 0.0
      %1243 = vst [vmem:[%s1232 + $0x50] sm:$0x3f] 0.0
      %1244 = vst [vmem:[%s1232 + $0x58] sm:$0x3f] 0.0
      %1245 = vst [vmem:[%s1232 + $0x60] sm:$0x3f] 0.0
      %1246 = vst [vmem:[%s1232 + $0x68] sm:$0x3f] 0.0
      %1247 = vst [vmem:[%s1232 + $0x70] sm:$0x3f] 0.0
      %1248 = vst [vmem:[%s1232 + $0x78] sm:$0x3f] 0.0
      %s1249 = scalar_lea.vmem [#allocation2], 128
      %1250 = vst [vmem:[%s1249] ss:$8 sm:$0xf] 0.0
      %1251 = vst [vmem:[%s1249] ss:$8 sm:$0xf0] 0.0
      %s1252 = scalar_lea.vmem %s1249, 64 [#allocation2]
      %1253 = vst [vmem:[%s1252] ss:$8 sm:$0xf] 0.0
      %1254 = vst [vmem:[%s1252] ss:$8 sm:$0xf0] 0.0
      %s1255 = scalar_lea.vmem %s1249, 128 [#allocation2]
      %1256 = vst [vmem:[%s1255] ss:$8 sm:$0xf] 0.0
      %1257 = vst [vmem:[%s1255] ss:$8 sm:$0xf0] 0.0
      %s1258 = scalar_lea.vmem %s1249, 192 [#allocation2]
      %1259 = vst [vmem:[%s1258] ss:$8 sm:$0xf] 0.0
      %1260 = vst [vmem:[%s1258] ss:$8 sm:$0xf0] 0.0
      %s1261 = scalar_lea.vmem %s1249, 256 [#allocation2]
      %1262 = vst [vmem:[%s1261] ss:$8 sm:$0xf] 0.0
      %1263 = vst [vmem:[%s1261] ss:$8 sm:$0xf0] 0.0
      %s1264 = scalar_lea.vmem %s1249, 320 [#allocation2]
      %1265 = vst [vmem:[%s1264] ss:$8 sm:$0xf] 0.0
      %1266 = vst [vmem:[%s1264] ss:$8 sm:$0xf0] 0.0
      %s1267 = scalar_lea.vmem %s1249, 384 [#allocation2]
      %1268 = vst [vmem:[%s1267] ss:$8 sm:$0xf] 0.0
      %1269 = vst [vmem:[%s1267] ss:$8 sm:$0xf0] 0.0
      %s1270 = scalar_lea.vmem %s1249, 448 [#allocation2]
      %1271 = vst [vmem:[%s1270] ss:$8 sm:$0xf] 0.0
      %1272 = vst [vmem:[%s1270] ss:$8 sm:$0xf0] 0.0
      %s1273 = scalar_lea.vmem %s1249, 5 [#allocation2]
      %1274 = vst [vmem:[%s1273] ss:$8 sm:$0xf] 0.0
      %1275 = vst [vmem:[%s1273] ss:$8 sm:$0xf0] 0.0
      %s1276 = scalar_lea.vmem %s1249, 69 [#allocation2]
      %1277 = vst [vmem:[%s1276] ss:$8 sm:$0xf] 0.0
      %1278 = vst [vmem:[%s1276] ss:$8 sm:$0xf0] 0.0
      %s1279 = scalar_lea.vmem %s1249, 133 [#allocation2]
      %1280 = vst [vmem:[%s1279] ss:$8 sm:$0xf] 0.0
      %1281 = vst [vmem:[%s1279] ss:$8 sm:$0xf0] 0.0
      %s1282 = scalar_lea.vmem %s1249, 197 [#allocation2]
      %1283 = vst [vmem:[%s1282] ss:$8 sm:$0xf] 0.0
      %1284 = vst [vmem:[%s1282] ss:$8 sm:$0xf0] 0.0
      %s1285 = scalar_lea.vmem %s1249, 261 [#allocation2]
      %1286 = vst [vmem:[%s1285] ss:$8 sm:$0xf] 0.0
      %1287 = vst [vmem:[%s1285] ss:$8 sm:$0xf0] 0.0
      %s1288 = scalar_lea.vmem %s1249, 325 [#allocation2]
      %1289 = vst [vmem:[%s1288] ss:$8 sm:$0xf] 0.0
      %1290 = vst [vmem:[%s1288] ss:$8 sm:$0xf0] 0.0
      %s1291 = scalar_lea.vmem %s1249, 389 [#allocation2]
      %1292 = vst [vmem:[%s1291] ss:$8 sm:$0xf] 0.0
      %1293 = vst [vmem:[%s1291] ss:$8 sm:$0xf0] 0.0
      %s1294 = scalar_lea.vmem %s1249, 453 [#allocation2]
      %1295 = vst [vmem:[%s1294] ss:$8 sm:$0xf] 0.0
      %1296 = vst [vmem:[%s1294] ss:$8 sm:$0xf0] 0.0
      %v1313 = vrot.slane %v1002, 7
      %v1314 = vrot.slane %v1016, 7
      %v1315 = vrot.slane %v1030, 7
      %v1316 = vrot.slane %v1044, 7
      %v1317 = vrot.slane %v1058, 7
      %v1318 = vrot.slane %v1072, 7
      %v1319 = vrot.slane %v1086, 7
      %v1320 = vrot.slane %v1100, 7
      %v1321 = vrot.slane %v1114, 7
      %v1322 = vrot.slane %v1128, 7
      %v1323 = vrot.slane %v1142, 7
      %v1324 = vrot.slane %v1156, 7
      %v1325 = vrot.slane %v1170, 7
      %v1326 = vrot.slane %v1184, 7
      %v1327 = vrot.slane %v1198, 7
      %v1328 = vrot.slane %v1212, 7
      %1345 = vst [vmem:[%s1249] sm:$0x1e] %v1313
      %1346 = vst [vmem:[%s1249 + $0x8] sm:$0x1e] %v1314
      %1347 = vst [vmem:[%s1249 + $0x10] sm:$0x1e] %v1315
      %1348 = vst [vmem:[%s1249 + $0x18] sm:$0x1e] %v1316
      %1349 = vst [vmem:[%s1249 + $0x20] sm:$0x1e] %v1317
      %1350 = vst [vmem:[%s1249 + $0x28] sm:$0x1e] %v1318
      %1351 = vst [vmem:[%s1249 + $0x30] sm:$0x1e] %v1319
      %1352 = vst [vmem:[%s1249 + $0x38] sm:$0x1e] %v1320
      %1353 = vst [vmem:[%s1249 + $0x40] sm:$0x1e] %v1321
      %1354 = vst [vmem:[%s1249 + $0x48] sm:$0x1e] %v1322
      %1355 = vst [vmem:[%s1249 + $0x50] sm:$0x1e] %v1323
      %1356 = vst [vmem:[%s1249 + $0x58] sm:$0x1e] %v1324
      %1357 = vst [vmem:[%s1249 + $0x60] sm:$0x1e] %v1325
      %1358 = vst [vmem:[%s1249 + $0x68] sm:$0x1e] %v1326
      %1359 = vst [vmem:[%s1249 + $0x70] sm:$0x1e] %v1327
      %1360 = vst [vmem:[%s1249 + $0x78] sm:$0x1e] %v1328
      %v1361 = vrot.slane %v1002, 3
      %v1362 = vrot.slane %v1016, 3
      %v1363 = vrot.slane %v1030, 3
      %v1364 = vrot.slane %v1044, 3
      %v1365 = vrot.slane %v1058, 3
      %v1366 = vrot.slane %v1072, 3
      %v1367 = vrot.slane %v1086, 3
      %v1368 = vrot.slane %v1100, 3
      %v1369 = vrot.slane %v1114, 3
      %v1370 = vrot.slane %v1128, 3
      %v1371 = vrot.slane %v1142, 3
      %v1372 = vrot.slane %v1156, 3
      %v1373 = vrot.slane %v1170, 3
      %v1374 = vrot.slane %v1184, 3
      %v1375 = vrot.slane %v1198, 3
      %v1376 = vrot.slane %v1212, 3
      %s1393 = scalar_lea.vmem [#allocation2], 256
      %1394 = vst [vmem:[%s1393] sm:$0x1e] %v1361
      %1395 = vst [vmem:[%s1393 + $0x8] sm:$0x1e] %v1362
      %1396 = vst [vmem:[%s1393 + $0x10] sm:$0x1e] %v1363
      %1397 = vst [vmem:[%s1393 + $0x18] sm:$0x1e] %v1364
      %1398 = vst [vmem:[%s1393 + $0x20] sm:$0x1e] %v1365
      %1399 = vst [vmem:[%s1393 + $0x28] sm:$0x1e] %v1366
      %1400 = vst [vmem:[%s1393 + $0x30] sm:$0x1e] %v1367
      %1401 = vst [vmem:[%s1393 + $0x38] sm:$0x1e] %v1368
      %1402 = vst [vmem:[%s1393 + $0x40] sm:$0x1e] %v1369
      %1403 = vst [vmem:[%s1393 + $0x48] sm:$0x1e] %v1370
      %1404 = vst [vmem:[%s1393 + $0x50] sm:$0x1e] %v1371
      %1405 = vst [vmem:[%s1393 + $0x58] sm:$0x1e] %v1372
      %1406 = vst [vmem:[%s1393 + $0x60] sm:$0x1e] %v1373
      %1407 = vst [vmem:[%s1393 + $0x68] sm:$0x1e] %v1374
      %1408 = vst [vmem:[%s1393 + $0x70] sm:$0x1e] %v1375
      %1409 = vst [vmem:[%s1393 + $0x78] sm:$0x1e] %v1376
      %v1426 = vrot.slane %v1004, 7
      %v1427 = vrot.slane %v1018, 7
      %v1428 = vrot.slane %v1032, 7
      %v1429 = vrot.slane %v1046, 7
      %v1430 = vrot.slane %v1060, 7
      %v1431 = vrot.slane %v1074, 7
      %v1432 = vrot.slane %v1088, 7
      %v1433 = vrot.slane %v1102, 7
      %v1434 = vrot.slane %v1116, 7
      %v1435 = vrot.slane %v1130, 7
      %v1436 = vrot.slane %v1144, 7
      %v1437 = vrot.slane %v1158, 7
      %v1438 = vrot.slane %v1172, 7
      %v1439 = vrot.slane %v1186, 7
      %v1440 = vrot.slane %v1200, 7
      %v1441 = vrot.slane %v1214, 7
      %s1458 = scalar_lea.vmem [#allocation2], 384
      %1459 = vst [vmem:[%s1458] sm:$0x1e] %v1426
      %1460 = vst [vmem:[%s1458 + $0x8] sm:$0x1e] %v1427
      %1461 = vst [vmem:[%s1458 + $0x10] sm:$0x1e] %v1428
      %1462 = vst [vmem:[%s1458 + $0x18] sm:$0x1e] %v1429
      %1463 = vst [vmem:[%s1458 + $0x20] sm:$0x1e] %v1430
      %1464 = vst [vmem:[%s1458 + $0x28] sm:$0x1e] %v1431
      %1465 = vst [vmem:[%s1458 + $0x30] sm:$0x1e] %v1432
      %1466 = vst [vmem:[%s1458 + $0x38] sm:$0x1e] %v1433
      %1467 = vst [vmem:[%s1458 + $0x40] sm:$0x1e] %v1434
      %1468 = vst [vmem:[%s1458 + $0x48] sm:$0x1e] %v1435
      %1469 = vst [vmem:[%s1458 + $0x50] sm:$0x1e] %v1436
      %1470 = vst [vmem:[%s1458 + $0x58] sm:$0x1e] %v1437
      %1471 = vst [vmem:[%s1458 + $0x60] sm:$0x1e] %v1438
      %1472 = vst [vmem:[%s1458 + $0x68] sm:$0x1e] %v1439
      %1473 = vst [vmem:[%s1458 + $0x70] sm:$0x1e] %v1440
      %1474 = vst [vmem:[%s1458 + $0x78] sm:$0x1e] %v1441
      %v1475 = vrot.slane %v1004, 3
      %v1476 = vrot.slane %v1018, 3
      %v1477 = vrot.slane %v1032, 3
      %v1478 = vrot.slane %v1046, 3
      %v1479 = vrot.slane %v1060, 3
      %v1480 = vrot.slane %v1074, 3
      %v1481 = vrot.slane %v1088, 3
      %v1482 = vrot.slane %v1102, 3
      %v1483 = vrot.slane %v1116, 3
      %v1484 = vrot.slane %v1130, 3
      %v1485 = vrot.slane %v1144, 3
      %v1486 = vrot.slane %v1158, 3
      %v1487 = vrot.slane %v1172, 3
      %v1488 = vrot.slane %v1186, 3
      %v1489 = vrot.slane %v1200, 3
      %v1490 = vrot.slane %v1214, 3
      %s1507 = scalar_lea.vmem [#allocation2], 512
      %1508 = vst [vmem:[%s1507] sm:$0x1e] %v1475
      %1509 = vst [vmem:[%s1507 + $0x8] sm:$0x1e] %v1476
      %1510 = vst [vmem:[%s1507 + $0x10] sm:$0x1e] %v1477
      %1511 = vst [vmem:[%s1507 + $0x18] sm:$0x1e] %v1478
      %1512 = vst [vmem:[%s1507 + $0x20] sm:$0x1e] %v1479
      %1513 = vst [vmem:[%s1507 + $0x28] sm:$0x1e] %v1480
      %1514 = vst [vmem:[%s1507 + $0x30] sm:$0x1e] %v1481
      %1515 = vst [vmem:[%s1507 + $0x38] sm:$0x1e] %v1482
      %1516 = vst [vmem:[%s1507 + $0x40] sm:$0x1e] %v1483
      %1517 = vst [vmem:[%s1507 + $0x48] sm:$0x1e] %v1484
      %1518 = vst [vmem:[%s1507 + $0x50] sm:$0x1e] %v1485
      %1519 = vst [vmem:[%s1507 + $0x58] sm:$0x1e] %v1486
      %1520 = vst [vmem:[%s1507 + $0x60] sm:$0x1e] %v1487
      %1521 = vst [vmem:[%s1507 + $0x68] sm:$0x1e] %v1488
      %1522 = vst [vmem:[%s1507 + $0x70] sm:$0x1e] %v1489
      %1523 = vst [vmem:[%s1507 + $0x78] sm:$0x1e] %v1490
      %v1524 = vld [vmem:[%s1249 + $0x28] sm:$0x1e]
      %v1525 = vld [vmem:[%s1249 + $0xa8] sm:$0x1e]
      %v1526 = vld [vmem:[%s1249 + $0x128] sm:$0x1e]
      %v1527 = vld [vmem:[%s1249 + $0x1a8] sm:$0x1e]
      %v1528 = vadd.f32 %v1524, 0.0
      %v1529 = vadd.f32 %v1525, 0.0
      %v1530 = vadd.f32 %v1526, 0.0
      %v1531 = vadd.f32 %v1527, 0.0
      %v1532 = vld [vmem:[%s1249 + $0x38] sm:$0xf]
      %v1533 = vld [vmem:[%s1249 + $0xb8] sm:$0xf]
      %v1534 = vld [vmem:[%s1249 + $0x138] sm:$0xf]
      %v1535 = vld [vmem:[%s1249 + $0x1b8] sm:$0xf]
      %v1540 = vrot.slane %v1532, 7
      %v1541 = vrot.slane %v1533, 7
      %v1542 = vrot.slane %v1534, 7
      %v1543 = vrot.slane %v1535, 7
      %v1548 = vadd.f32 %v1528, %v1540
      %v1549 = vadd.f32 %v1529, %v1541
      %v1550 = vadd.f32 %v1530, %v1542
      %v1551 = vadd.f32 %v1531, %v1543
      %v1552 = vld [vmem:[#allocation2 + $0x68] sm:$0x1e]
      %v1553 = vld [vmem:[#allocation2 + $0xe8] sm:$0x1e]
      %v1554 = vld [vmem:[#allocation2 + $0x168] sm:$0x1e]
      %v1555 = vld [vmem:[#allocation2 + $0x1e8] sm:$0x1e]
      %v1556 = vadd.f32 %v1548, %v1552
      %v1557 = vadd.f32 %v1549, %v1553
      %v1558 = vadd.f32 %v1550, %v1554
      %v1559 = vadd.f32 %v1551, %v1555
      %v1560 = vld [vmem:[#allocation2 + $0x78] sm:$0xf]
      %v1561 = vld [vmem:[#allocation2 + $0xf8] sm:$0xf]
      %v1562 = vld [vmem:[#allocation2 + $0x178] sm:$0xf]
      %v1563 = vld [vmem:[#allocation2 + $0x1f8] sm:$0xf]
      %v1568 = vrot.slane %v1560, 7
      %v1569 = vrot.slane %v1561, 7
      %v1570 = vrot.slane %v1562, 7
      %v1571 = vrot.slane %v1563, 7
      %v1576 = vadd.f32 %v1556, %v1568
      %v1577 = vadd.f32 %v1557, %v1569
      %v1578 = vadd.f32 %v1558, %v1570
      %v1579 = vadd.f32 %v1559, %v1571
      %1580 = vst [vmem:[%s206 - $0x1] sm:$0x1e] %v1576
      %1581 = vst [vmem:[%s206 + $0x3] sm:$0x1e] %v1577
      %1582 = vst [vmem:[%s206 + $0x7] sm:$0x1e] %v1578
      %1583 = vst [vmem:[%s206 + $0xb] sm:$0x1e] %v1579
      %v1588 = vrot.slane %v1576, 1
      %v1589 = vrot.slane %v1577, 1
      %v1590 = vrot.slane %v1578, 1
      %v1591 = vrot.slane %v1579, 1
      %vm1596 = vcmask 1043456
      %v1597 = vsel %vm1596, %v1588, 0.0
      %v1598 = vsel %vm1596, %v1589, 0.0
      %v1599 = vadd.f32 %v1597, %v1598
      %v1600 = vsel %vm1596, %v1590, 0.0
      %v1601 = vadd.f32 %v1599, %v1600
      %v1602 = vsel %vm1596, %v1591, 0.0
      %v1603 = vadd.f32 %v1601, %v1602
      %v1604 = vrot.slane %v1603, 4
      %v1605 = vadd.f32 %v1603, %v1604
      %v1606 = vrot.slane %v1605, 2
      %v1607 = vadd.f32 %v1605, %v1606
      %v1608 = vrot.slane %v1607, 1
      %v1609 = vadd.f32 %v1607, %v1608
      %v1610 = vadd.f32 %v1609, 0.0
      %v1611 = vmul.f32 %v1576, %v1576
      %v1612 = vmul.f32 %v1577, %v1577
      %v1613 = vmul.f32 %v1578, %v1578
      %v1614 = vmul.f32 %v1579, %v1579
      %v1619 = vrot.slane %v1611, 1
      %v1620 = vrot.slane %v1612, 1
      %v1621 = vrot.slane %v1613, 1
      %v1622 = vrot.slane %v1614, 1
      %v1627 = vsel %vm1596, %v1619, 0.0
      %v1628 = vsel %vm1596, %v1620, 0.0
      %v1629 = vadd.f32 %v1627, %v1628
      %v1630 = vsel %vm1596, %v1621, 0.0
      %v1631 = vadd.f32 %v1629, %v1630
      %v1632 = vsel %vm1596, %v1622, 0.0
      %v1633 = vadd.f32 %v1631, %v1632
      %v1634 = vrot.slane %v1633, 4
      %v1635 = vadd.f32 %v1633, %v1634
      %v1636 = vrot.slane %v1635, 2
      %v1637 = vadd.f32 %v1635, %v1636
      %v1638 = vrot.slane %v1637, 1
      %v1639 = vadd.f32 %v1637, %v1638
      %v1640 = vadd.f32 %v1639, 0.0
      %v1641 = vld [vmem:[%s1249 + $0x20] sm:$0x3c]
      %v1642 = vld [vmem:[%s1249 + $0xa0] sm:$0x3c]
      %v1643 = vld [vmem:[%s1249 + $0x120] sm:$0x3c]
      %v1644 = vld [vmem:[%s1249 + $0x1a0] sm:$0x3c]
      %v1645 = vadd.f32 %v1641, 0.0
      %v1646 = vadd.f32 %v1642, 0.0
      %v1647 = vadd.f32 %v1643, 0.0
      %v1648 = vadd.f32 %v1644, 0.0
      %v1649 = vld [vmem:[%s1249 + $0x30] sm:$0x1e]
      %v1650 = vld [vmem:[%s1249 + $0xb0] sm:$0x1e]
      %v1651 = vld [vmem:[%s1249 + $0x130] sm:$0x1e]
      %v1652 = vld [vmem:[%s1249 + $0x1b0] sm:$0x1e]
      %v1657 = vrot.slane %v1649, 7
      %v1658 = vrot.slane %v1650, 7
      %v1659 = vrot.slane %v1651, 7
      %v1660 = vrot.slane %v1652, 7
      %v1665 = vadd.f32 %v1645, %v1657
      %v1666 = vadd.f32 %v1646, %v1658
      %v1667 = vadd.f32 %v1647, %v1659
      %v1668 = vadd.f32 %v1648, %v1660
      %v1669 = vld [vmem:[#allocation2 + $0x60] sm:$0x3c]
      %v1670 = vld [vmem:[#allocation2 + $0xe0] sm:$0x3c]
      %v1671 = vld [vmem:[#allocation2 + $0x160] sm:$0x3c]
      %v1672 = vld [vmem:[#allocation2 + $0x1e0] sm:$0x3c]
      %v1673 = vadd.f32 %v1665, %v1669
      %v1674 = vadd.f32 %v1666, %v1670
      %v1675 = vadd.f32 %v1667, %v1671
      %v1676 = vadd.f32 %v1668, %v1672
      %v1677 = vld [vmem:[#allocation2 + $0x70] sm:$0x1e]
      %v1678 = vld [vmem:[#allocation2 + $0xf0] sm:$0x1e]
      %v1679 = vld [vmem:[#allocation2 + $0x170] sm:$0x1e]
      %v1680 = vld [vmem:[#allocation2 + $0x1f0] sm:$0x1e]
      %v1685 = vrot.slane %v1677, 7
      %v1686 = vrot.slane %v1678, 7
      %v1687 = vrot.slane %v1679, 7
      %v1688 = vrot.slane %v1680, 7
      %v1693 = vadd.f32 %v1673, %v1685
      %v1694 = vadd.f32 %v1674, %v1686
      %v1695 = vadd.f32 %v1675, %v1687
      %v1696 = vadd.f32 %v1676, %v1688
      %s1697 = scalar_lea.vmem %s206, 16
      %1698 = vst [vmem:[%s1697 - $0x2] sm:$0x3c] %v1693
      %1699 = vst [vmem:[%s1697 + $0x2] sm:$0x3c] %v1694
      %1700 = vst [vmem:[%s1697 + $0x6] sm:$0x3c] %v1695
      %1701 = vst [vmem:[%s1697 + $0xa] sm:$0x3c] %v1696
      %v1706 = vrot.slane %v1693, 2
      %v1707 = vrot.slane %v1694, 2
      %v1708 = vrot.slane %v1695, 2
      %v1709 = vrot.slane %v1696, 2
      %v1714 = vsel %vm1596, %v1706, 0.0
      %v1715 = vsel %vm1596, %v1707, 0.0
      %v1716 = vadd.f32 %v1714, %v1715
      %v1717 = vsel %vm1596, %v1708, 0.0
      %v1718 = vadd.f32 %v1716, %v1717
      %v1719 = vsel %vm1596, %v1709, 0.0
      %v1720 = vadd.f32 %v1718, %v1719
      %v1721 = vrot.slane %v1720, 4
      %v1722 = vadd.f32 %v1720, %v1721
      %v1723 = vrot.slane %v1722, 2
      %v1724 = vadd.f32 %v1722, %v1723
      %v1725 = vrot.slane %v1724, 1
      %v1726 = vadd.f32 %v1724, %v1725
      %v1727 = vadd.f32 %v1610, %v1726
      %v1728 = vmul.f32 %v1693, %v1693
      %v1729 = vmul.f32 %v1694, %v1694
      %v1730 = vmul.f32 %v1695, %v1695
      %v1731 = vmul.f32 %v1696, %v1696
      %v1736 = vrot.slane %v1728, 2
      %v1737 = vrot.slane %v1729, 2
      %v1738 = vrot.slane %v1730, 2
      %v1739 = vrot.slane %v1731, 2
      %v1744 = vsel %vm1596, %v1736, 0.0
      %v1745 = vsel %vm1596, %v1737, 0.0
      %v1746 = vadd.f32 %v1744, %v1745
      %v1747 = vsel %vm1596, %v1738, 0.0
      %v1748 = vadd.f32 %v1746, %v1747
      %v1749 = vsel %vm1596, %v1739, 0.0
      %v1750 = vadd.f32 %v1748, %v1749
      %v1751 = vrot.slane %v1750, 4
      %v1752 = vadd.f32 %v1750, %v1751
      %v1753 = vrot.slane %v1752, 2
      %v1754 = vadd.f32 %v1752, %v1753
      %v1755 = vrot.slane %v1754, 1
      %v1756 = vadd.f32 %v1754, %v1755
      %v1757 = vadd.f32 %v1640, %v1756
      %v1758 = vld [vmem:[%s1393 + $0x8] sm:$0x1e]
      %v1759 = vld [vmem:[%s1393 + $0x88] sm:$0x1e]
      %v1760 = vld [vmem:[%s1393 + $0x108] sm:$0x1e]
      %v1761 = vld [vmem:[%s1393 + $0x188] sm:$0x1e]
      %v1762 = vadd.f32 %v1758, 0.0
      %v1763 = vadd.f32 %v1759, 0.0
      %v1764 = vadd.f32 %v1760, 0.0
      %v1765 = vadd.f32 %v1761, 0.0
      %v1766 = vld [vmem:[%s1393 + $0x18] sm:$0xf]
      %v1767 = vld [vmem:[%s1393 + $0x98] sm:$0xf]
      %v1768 = vld [vmem:[%s1393 + $0x118] sm:$0xf]
      %v1769 = vld [vmem:[%s1393 + $0x198] sm:$0xf]
      %v1774 = vrot.slane %v1766, 7
      %v1775 = vrot.slane %v1767, 7
      %v1776 = vrot.slane %v1768, 7
      %v1777 = vrot.slane %v1769, 7
      %v1782 = vadd.f32 %v1762, %v1774
      %v1783 = vadd.f32 %v1763, %v1775
      %v1784 = vadd.f32 %v1764, %v1776
      %v1785 = vadd.f32 %v1765, %v1777
      %v1786 = vld [vmem:[%s1249 + $0x48] sm:$0x1e]
      %v1787 = vld [vmem:[%s1249 + $0xc8] sm:$0x1e]
      %v1788 = vld [vmem:[%s1249 + $0x148] sm:$0x1e]
      %v1789 = vld [vmem:[%s1249 + $0x1c8] sm:$0x1e]
      %v1790 = vadd.f32 %v1782, %v1786
      %v1791 = vadd.f32 %v1783, %v1787
      %v1792 = vadd.f32 %v1784, %v1788
      %v1793 = vadd.f32 %v1785, %v1789
      %v1794 = vld [vmem:[%s1249 + $0x58] sm:$0xf]
      %v1795 = vld [vmem:[%s1249 + $0xd8] sm:$0xf]
      %v1796 = vld [vmem:[%s1249 + $0x158] sm:$0xf]
      %v1797 = vld [vmem:[%s1249 + $0x1d8] sm:$0xf]
      %v1802 = vrot.slane %v1794, 7
      %v1803 = vrot.slane %v1795, 7
      %v1804 = vrot.slane %v1796, 7
      %v1805 = vrot.slane %v1797, 7
      %v1810 = vadd.f32 %v1790, %v1802
      %v1811 = vadd.f32 %v1791, %v1803
      %v1812 = vadd.f32 %v1792, %v1804
      %v1813 = vadd.f32 %v1793, %v1805
      %s1814 = scalar_lea.vmem %s206, 32
      %1815 = vst [vmem:[%s1814 - $0x1] sm:$0x1e] %v1810
      %1816 = vst [vmem:[%s1814 + $0x3] sm:$0x1e] %v1811
      %1817 = vst [vmem:[%s1814 + $0x7] sm:$0x1e] %v1812
      %1818 = vst [vmem:[%s1814 + $0xb] sm:$0x1e] %v1813
      %v1823 = vrot.slane %v1810, 1
      %v1824 = vrot.slane %v1811, 1
      %v1825 = vrot.slane %v1812, 1
      %v1826 = vrot.slane %v1813, 1
      %v1831 = vsel %vm1596, %v1823, 0.0
      %v1832 = vsel %vm1596, %v1824, 0.0
      %v1833 = vadd.f32 %v1831, %v1832
      %v1834 = vsel %vm1596, %v1825, 0.0
      %v1835 = vadd.f32 %v1833, %v1834
      %v1836 = vsel %vm1596, %v1826, 0.0
      %v1837 = vadd.f32 %v1835, %v1836
      %v1838 = vrot.slane %v1837, 4
      %v1839 = vadd.f32 %v1837, %v1838
      %v1840 = vrot.slane %v1839, 2
      %v1841 = vadd.f32 %v1839, %v1840
      %v1842 = vrot.slane %v1841, 1
      %v1843 = vadd.f32 %v1841, %v1842
      %v1844 = vadd.f32 %v1727, %v1843
      %v1845 = vmul.f32 %v1810, %v1810
      %v1846 = vmul.f32 %v1811, %v1811
      %v1847 = vmul.f32 %v1812, %v1812
      %v1848 = vmul.f32 %v1813, %v1813
      %v1853 = vrot.slane %v1845, 1
      %v1854 = vrot.slane %v1846, 1
      %v1855 = vrot.slane %v1847, 1
      %v1856 = vrot.slane %v1848, 1
      %v1861 = vsel %vm1596, %v1853, 0.0
      %v1862 = vsel %vm1596, %v1854, 0.0
      %v1863 = vadd.f32 %v1861, %v1862
      %v1864 = vsel %vm1596, %v1855, 0.0
      %v1865 = vadd.f32 %v1863, %v1864
      %v1866 = vsel %vm1596, %v1856, 0.0
      %v1867 = vadd.f32 %v1865, %v1866
      %v1868 = vrot.slane %v1867, 4
      %v1869 = vadd.f32 %v1867, %v1868
      %v1870 = vrot.slane %v1869, 2
      %v1871 = vadd.f32 %v1869, %v1870
      %v1872 = vrot.slane %v1871, 1
      %v1873 = vadd.f32 %v1871, %v1872
      %v1874 = vadd.f32 %v1757, %v1873
      %v1875 = vld [vmem:[%s1393] sm:$0x3c]
      %v1876 = vld [vmem:[%s1393 + $0x80] sm:$0x3c]
      %v1877 = vld [vmem:[%s1393 + $0x100] sm:$0x3c]
      %v1878 = vld [vmem:[%s1393 + $0x180] sm:$0x3c]
      %v1879 = vadd.f32 %v1875, 0.0
      %v1880 = vadd.f32 %v1876, 0.0
      %v1881 = vadd.f32 %v1877, 0.0
      %v1882 = vadd.f32 %v1878, 0.0
      %v1883 = vld [vmem:[%s1393 + $0x10] sm:$0x1e]
      %v1884 = vld [vmem:[%s1393 + $0x90] sm:$0x1e]
      %v1885 = vld [vmem:[%s1393 + $0x110] sm:$0x1e]
      %v1886 = vld [vmem:[%s1393 + $0x190] sm:$0x1e]
      %v1891 = vrot.slane %v1883, 7
      %v1892 = vrot.slane %v1884, 7
      %v1893 = vrot.slane %v1885, 7
      %v1894 = vrot.slane %v1886, 7
      %v1899 = vadd.f32 %v1879, %v1891
      %v1900 = vadd.f32 %v1880, %v1892
      %v1901 = vadd.f32 %v1881, %v1893
      %v1902 = vadd.f32 %v1882, %v1894
      %v1903 = vld [vmem:[%s1249 + $0x40] sm:$0x3c]
      %v1904 = vld [vmem:[%s1249 + $0xc0] sm:$0x3c]
      %v1905 = vld [vmem:[%s1249 + $0x140] sm:$0x3c]
      %v1906 = vld [vmem:[%s1249 + $0x1c0] sm:$0x3c]
      %v1907 = vadd.f32 %v1899, %v1903
      %v1908 = vadd.f32 %v1900, %v1904
      %v1909 = vadd.f32 %v1901, %v1905
      %v1910 = vadd.f32 %v1902, %v1906
      %v1911 = vld [vmem:[%s1249 + $0x50] sm:$0x1e]
      %v1912 = vld [vmem:[%s1249 + $0xd0] sm:$0x1e]
      %v1913 = vld [vmem:[%s1249 + $0x150] sm:$0x1e]
      %v1914 = vld [vmem:[%s1249 + $0x1d0] sm:$0x1e]
      %v1919 = vrot.slane %v1911, 7
      %v1920 = vrot.slane %v1912, 7
      %v1921 = vrot.slane %v1913, 7
      %v1922 = vrot.slane %v1914, 7
      %v1927 = vadd.f32 %v1907, %v1919
      %v1928 = vadd.f32 %v1908, %v1920
      %v1929 = vadd.f32 %v1909, %v1921
      %v1930 = vadd.f32 %v1910, %v1922
      %s1931 = scalar_lea.vmem %s206, 48
      %1932 = vst [vmem:[%s1931 - $0x2] sm:$0x3c] %v1927
      %1933 = vst [vmem:[%s1931 + $0x2] sm:$0x3c] %v1928
      %1934 = vst [vmem:[%s1931 + $0x6] sm:$0x3c] %v1929
      %1935 = vst [vmem:[%s1931 + $0xa] sm:$0x3c] %v1930
      %v1940 = vrot.slane %v1927, 2
      %v1941 = vrot.slane %v1928, 2
      %v1942 = vrot.slane %v1929, 2
      %v1943 = vrot.slane %v1930, 2
      %v1948 = vsel %vm1596, %v1940, 0.0
      %v1949 = vsel %vm1596, %v1941, 0.0
      %v1950 = vadd.f32 %v1948, %v1949
      %v1951 = vsel %vm1596, %v1942, 0.0
      %v1952 = vadd.f32 %v1950, %v1951
      %v1953 = vsel %vm1596, %v1943, 0.0
      %v1954 = vadd.f32 %v1952, %v1953
      %v1955 = vrot.slane %v1954, 4
      %v1956 = vadd.f32 %v1954, %v1955
      %v1957 = vrot.slane %v1956, 2
      %v1958 = vadd.f32 %v1956, %v1957
      %v1959 = vrot.slane %v1958, 1
      %v1960 = vadd.f32 %v1958, %v1959
      %v1961 = vadd.f32 %v1844, %v1960
      %v1962 = vmul.f32 %v1927, %v1927
      %v1963 = vmul.f32 %v1928, %v1928
      %v1964 = vmul.f32 %v1929, %v1929
      %v1965 = vmul.f32 %v1930, %v1930
      %v1970 = vrot.slane %v1962, 2
      %v1971 = vrot.slane %v1963, 2
      %v1972 = vrot.slane %v1964, 2
      %v1973 = vrot.slane %v1965, 2
      %v1978 = vsel %vm1596, %v1970, 0.0
      %v1979 = vsel %vm1596, %v1971, 0.0
      %v1980 = vadd.f32 %v1978, %v1979
      %v1981 = vsel %vm1596, %v1972, 0.0
      %v1982 = vadd.f32 %v1980, %v1981
      %v1983 = vsel %vm1596, %v1973, 0.0
      %v1984 = vadd.f32 %v1982, %v1983
      %v1985 = vrot.slane %v1984, 4
      %v1986 = vadd.f32 %v1984, %v1985
      %v1987 = vrot.slane %v1986, 2
      %v1988 = vadd.f32 %v1986, %v1987
      %v1989 = vrot.slane %v1988, 1
      %v1990 = vadd.f32 %v1988, %v1989
      %v1991 = vadd.f32 %v1874, %v1990
      %vm1992 = vcmask 1040384
      %v1993 = vsel %vm1992, %v1961, %v1991
      %1994 = vst [vmem:[%s211] sm:$0x3] %v1993
      %s1995 = smul.u32 4, %s16
      %p1996 = scmp.lt.s32.totalorder %s1995, 7
      %s1997 = scalar_select %p1996, %s1995, 7
      %s1998 = smul.addr %s1997, 4
      %s1999 = smul.addr %s1998, 4
      %s2000 = scalar_lea.vmem %s3, %s1999
      %p2001 = scmp.lt.s32.totalorder %s16, 1
      %s2002 = scalar_select %p2001, %s16, 1
      %s2003 = smul.addr %s2002, 2
      %s2004 = scalar_lea.vmem %s4, %s2003
      // Predicated region
      $region33: #{dcgan_g_forward.4} parent=31 // pred_check
        %p2005 = pneg %p102
      $region34: #{dcgan_g_forward.4} parent=31 // pred_check_branch
        %2007 = sbr.rel (%p2005) target = $region36
      $region35: #{dcgan_g_forward.4} parent=31 // pred_region
        %s2008 = smul.u32 4, %s16
      $region36: #{dcgan_g_forward.4} parent=31 // pred_fallthru
        _
      // Predicated region
      $region37: #{dcgan_g_forward.4} parent=31 // pred_check
        %p2009 = pneg %p128
      $region38: #{dcgan_g_forward.4} parent=31 // pred_check_branch
        %2011 = sbr.rel (%p2009) target = $region40
      $region39: #{dcgan_g_forward.4} parent=31 // pred_region
        _
      $region40: #{dcgan_g_forward.4} parent=31 // pred_fallthru
        _
    $region32: #{dcgan_g_forward.4} parent=5 // pred_fallthru
      _
    %p2012 = scmp.le.s32.totalorder 2, %s11
    // Predicated region
    $region41: #{dcgan_g_forward.4} parent=5 // pred_check
      %p2013 = pneg %p2012
    $region42: #{dcgan_g_forward.4} parent=5 // pred_check_branch
      %2015 = sbr.rel (%p2013) target = $region44
    $region43: #{dcgan_g_forward.4} parent=5 // pred_region
      %s2016 = ssub.s32 %s11, 2
      // Predicated region
      $region45: #{dcgan_g_forward.4} parent=43 // pred_check
        %p2017 = pneg %p108
      $region46: #{dcgan_g_forward.4} parent=43 // pred_check_branch
        %2019 = sbr.rel (%p2017) target = $region48
      $region47: #{dcgan_g_forward.4} parent=43 // pred_region
        %s2020 = smul.u32 4, %s17
        %p2021 = scmp.lt.s32.totalorder %s2020, 7
        %s2022 = scalar_select %p2021, %s2020, 7
        %s2023 = smul.addr %s2022, 4
        %s2024 = smul.addr %s2023, 4
        %s2025 = scalar_lea.vmem %s3, %s2024
      $region48: #{dcgan_g_forward.4} parent=43 // pred_fallthru
        _
      // Predicated region
      $region49: #{dcgan_g_forward.4} parent=43 // pred_check
        %p2026 = pneg %p134
      $region50: #{dcgan_g_forward.4} parent=43 // pred_check_branch
        %2028 = sbr.rel (%p2026) target = $region52
      $region51: #{dcgan_g_forward.4} parent=43 // pred_region
        %p2029 = scmp.lt.s32.totalorder %s17, 1
        %s2030 = scalar_select %p2029, %s17, 1
        %s2031 = smul.addr %s2030, 2
        %s2032 = scalar_lea.vmem %s4, %s2031
      $region52: #{dcgan_g_forward.4} parent=43 // pred_fallthru
        _
    $region44: #{dcgan_g_forward.4} parent=5 // pred_fallthru
      _
  $region6: #{dcgan_g_forward.4} parent=0 // loop_footer
    %s15 = sadd.s32 1, %s11
  $region7: #{dcgan_g_forward.4} parent=0 // loop_footer_branch
    %10 = sbr.rel target = $region3
  $region8: #{dcgan_g_forward.4} parent=0 // loop_exit
    _

// kernel: dcgan_g_forward.5
$region0: #{dcgan_g_forward.5}
  #allocation0 [shape = 'u32[]', space=smem, size = 0x4, offset = 0x4, fixed_abs, tag = 'smem constant byte address 0x4 - core index']
  #allocation1 [shape = 'u32[72,128]{1,0:T(1,128)}', space=vmem, size = 0x9000, scoped, tag = 'internal scratch']
  #allocation2 [shape = 'f32[10,10,2048]{2,1,0:T(8,128)}', space=vmem, size = 0x140000, scoped, tag = 'scratch operand']
  %s0 = inlined_call_operand.vmem [shape: f32[2,64,128], index: 0, kind: input, shape index: {}]
  %s1 = inlined_call_operand.vmem [shape: f32[2,128], index: 1, kind: input, shape index: {}]
  %s2 = inlined_call_operand.vmem [shape: bf16[128,2048], index: 2, kind: input, shape index: {}]
  %s3 = inlined_call_operand.vmem [shape: f32[8,8,8,128], index: 3, kind: output, shape index: {}]
  %s4 = sld [smem:[#allocation0]]
  $region45: #{dcgan_g_forward.5} parent=0
    _
  %s6 = ssub.s32 1, %s4
  %s7 = scalar_select 0, %s6, %s4
  loop: start=0, step=1, limit=4
  $region2: #{dcgan_g_forward.5} parent=0 // loop_pre_header
    _
  $region3: #{dcgan_g_forward.5} parent=0 // loop_header
    %s9 = sphi 0, %s13
    %p10 = scmp.ge.s32.totalorder %s9, 4
    %s19 = sphi 0, %s21
    %s22 = sphi 0, %s19
    %s23 = sphi 0, %s22
    %s39 = sphi 0, %s23
    %s43 = sphi 0, %s43
    %s45 = sphi 0, %s43
    %s46 = sphi 0, %s45
    %s60 = sphi 0, %s46
    %s64 = sphi 0, %s64
    %s66 = sphi 0, %s64
    %s67 = sphi 0, %s66
    %s81 = sphi 0, %s67
    %s87 = sphi 0, %s89
    %s90 = sphi 0, %s87
    %s91 = sphi 0, %s90
    %s107 = sphi 0, %s91
  $region4: #{dcgan_g_forward.5} parent=0 // loop_header_branch
    %12 = sbr.rel (%p10) target = $region8
  $region5: #{dcgan_g_forward.5} parent=0 // loop_body
    %s14 = ssub.s32 %s9, 1
    %s15 = ssub.s32 %s9, 2
    %s16 = sadd.s32 %s9, 1
    %s17 = ssub.s32 %s9, %s16
    %p18 = scmp.eq.s32.totalorder %s17, 0
    %s20 = sadd.s32 %s19, 1
    %s21 = scalar_select %p18, %s19, %s20
    %p24 = pneg %p18
    %p25 = scmp.eq.s32.totalorder %s9, 1
    %p26 = por %p24, %p25
    %p27 = scmp.ne.s32.totalorder %s19, %s22
    %p28 = scmp.eq.s32.totalorder %s9, 0
    %p29 = por %p27, %p28
    %p30 = scmp.ne.s32.totalorder %s19, %s22
    %p31 = scmp.eq.s32.totalorder %s14, 1
    %p32 = por %p30, %p31
    %p33 = scmp.ne.s32.totalorder %s22, %s23
    %p34 = scmp.eq.s32.totalorder %s14, 0
    %p35 = por %p33, %p34
    %p36 = scmp.ne.s32.totalorder %s22, %s23
    %p37 = scmp.eq.s32.totalorder %s15, 1
    %p38 = por %p36, %p37
    %p40 = scmp.ne.s32.totalorder %s23, %s39
    %p41 = scmp.eq.s32.totalorder %s15, 0
    %p42 = por %p40, %p41
    %s44 = sadd.s32 %s43, 1
    %p47 = scmp.eq.s32.totalorder %s9, 1
    %p48 = scmp.ne.s32.totalorder %s43, %s45
    %p49 = scmp.eq.s32.totalorder %s9, 0
    %p50 = por %p48, %p49
    %p51 = scmp.ne.s32.totalorder %s43, %s45
    %p52 = scmp.eq.s32.totalorder %s14, 1
    %p53 = por %p51, %p52
    %p54 = scmp.ne.s32.totalorder %s45, %s46
    %p55 = scmp.eq.s32.totalorder %s14, 0
    %p56 = por %p54, %p55
    %p57 = scmp.ne.s32.totalorder %s45, %s46
    %p58 = scmp.eq.s32.totalorder %s15, 1
    %p59 = por %p57, %p58
    %p61 = scmp.ne.s32.totalorder %s46, %s60
    %p62 = scmp.eq.s32.totalorder %s15, 0
    %p63 = por %p61, %p62
    %s65 = sadd.s32 %s64, 1
    %p68 = scmp.eq.s32.totalorder %s9, 1
    %p69 = scmp.ne.s32.totalorder %s64, %s66
    %p70 = scmp.eq.s32.totalorder %s9, 0
    %p71 = por %p69, %p70
    %p72 = scmp.ne.s32.totalorder %s64, %s66
    %p73 = scmp.eq.s32.totalorder %s14, 1
    %p74 = por %p72, %p73
    %p75 = scmp.ne.s32.totalorder %s66, %s67
    %p76 = scmp.eq.s32.totalorder %s14, 0
    %p77 = por %p75, %p76
    %p78 = scmp.ne.s32.totalorder %s66, %s67
    %p79 = scmp.eq.s32.totalorder %s15, 1
    %p80 = por %p78, %p79
    %p82 = scmp.ne.s32.totalorder %s67, %s81
    %p83 = scmp.eq.s32.totalorder %s15, 0
    %p84 = por %p82, %p83
    %s85 = ssub.s32 %s9, %s16
    %p86 = scmp.eq.s32.totalorder %s85, 0
    %s88 = sadd.s32 %s87, 1
    %s89 = scalar_select %p86, %s87, %s88
    %p92 = pneg %p86
    %p93 = scmp.eq.s32.totalorder %s9, 1
    %p94 = por %p92, %p93
    %p95 = scmp.ne.s32.totalorder %s87, %s90
    %p96 = scmp.eq.s32.totalorder %s9, 0
    %p97 = por %p95, %p96
    %p98 = scmp.ne.s32.totalorder %s87, %s90
    %p99 = scmp.eq.s32.totalorder %s14, 1
    %p100 = por %p98, %p99
    %p101 = scmp.ne.s32.totalorder %s90, %s91
    %p102 = scmp.eq.s32.totalorder %s14, 0
    %p103 = por %p101, %p102
    %p104 = scmp.ne.s32.totalorder %s90, %s91
    %p105 = scmp.eq.s32.totalorder %s15, 1
    %p106 = por %p104, %p105
    %p108 = scmp.ne.s32.totalorder %s91, %s107
    %p109 = scmp.eq.s32.totalorder %s15, 0
    %p110 = por %p108, %p109
    %p111 = scmp.le.s32.totalorder 1, %s9
    %p112 = scmp.lt.s32.totalorder %s9, 3
    %p113 = pnand %p111, %p112
    %p114 = pneg %p113
    // Predicated region
    $region9: #{dcgan_g_forward.5} parent=5 // pred_check
      _
    $region10: #{dcgan_g_forward.5} parent=5 // pred_check_branch
      %116 = sbr.rel (%p113) target = $region12
    $region11: #{dcgan_g_forward.5} parent=5 // pred_region
      %s117 = ssub.s32 %s9, 1
      // Predicated region
      $region13: #{dcgan_g_forward.5} parent=11 // pred_check
        %p118 = pneg %p56
      $region14: #{dcgan_g_forward.5} parent=11 // pred_check_branch
        %120 = sbr.rel (%p118) target = $region16
      $region15: #{dcgan_g_forward.5} parent=11 // pred_region
        _
      $region16: #{dcgan_g_forward.5} parent=11 // pred_fallthru
        _
      // Predicated region
      $region17: #{dcgan_g_forward.5} parent=11 // pred_check
        %p121 = pneg %p77
      $region18: #{dcgan_g_forward.5} parent=11 // pred_check_branch
        %123 = sbr.rel (%p121) target = $region20
      $region19: #{dcgan_g_forward.5} parent=11 // pred_region
        _
      $region20: #{dcgan_g_forward.5} parent=11 // pred_fallthru
        _
    $region12: #{dcgan_g_forward.5} parent=5 // pred_fallthru
      _
    %p124 = scmp.lt.s32.totalorder %s9, 2
    // Predicated region
    $region21: #{dcgan_g_forward.5} parent=5 // pred_check
      %p125 = pneg %p124
    $region22: #{dcgan_g_forward.5} parent=5 // pred_check_branch
      %127 = sbr.rel (%p125) target = $region24
    $region23: #{dcgan_g_forward.5} parent=5 // pred_region
      // Predicated region
      $region25: #{dcgan_g_forward.5} parent=23 // pred_check
        %p128 = pneg %p29
      $region26: #{dcgan_g_forward.5} parent=23 // pred_check_branch
        %130 = sbr.rel (%p128) target = $region28
      $region27: #{dcgan_g_forward.5} parent=23 // pred_region
        %p131 = scmp.lt.s32.totalorder %s9, 1
        %s132 = scalar_select %p131, %s9, 1
        %s133 = smul.addr %s132, 8
        %s134 = smul.addr %s133, 8
        %s135 = scalar_lea.vmem %s0, %s134
      $region28: #{dcgan_g_forward.5} parent=23 // pred_fallthru
        _
    $region24: #{dcgan_g_forward.5} parent=5 // pred_fallthru
      _
    %p136 = scmp.le.s32.totalorder 1, %s9
    %p137 = scmp.lt.s32.totalorder %s9, 3
    %p138 = pnand %p136, %p137
    %p139 = pneg %p138
    // Predicated region
    $region29: #{dcgan_g_forward.5} parent=5 // pred_check
      _
    $region30: #{dcgan_g_forward.5} parent=5 // pred_check_branch
      %141 = sbr.rel (%p138) target = $region32
    $region31: #{dcgan_g_forward.5} parent=5 // pred_region
      %s142 = ssub.s32 %s9, 1
      %p143 = scmp.lt.s32.totalorder %s14, 1
      %s144 = scalar_select %p143, %s14, 1
      %s145 = smul.addr %s144, 8
      %s146 = smul.addr %s145, 8
      %s147 = scalar_lea.vmem %s0, %s146
      %p148 = pneg %p35
      %p149 = pneg %p32
      %p150 = pneg %p56
      %p151 = pneg %p53
      %p152 = pneg %p77
      %p153 = pneg %p74
      %p154 = pneg %p103
      %p155 = pneg %p100
      %s156 = smul.u32 4, %s14
      %p157 = scmp.lt.s32.totalorder %s156, 7
      %s158 = scalar_select %p157, %s156, 7
      %s159 = smul.addr %s158, 8
      %s160 = smul.addr %s159, 8
      %s161 = scalar_lea.vmem %s3, %s160
      %p162 = scmp.lt.s32.totalorder %s14, 1
      %s163 = scalar_select %p162, %s14, 1
      %s164 = smul.addr %s163, 8
      %s165 = smul.addr %s164, 8
      %s166 = scalar_lea.vmem %s0, %s165
      %s167 = smul.u32 4, %s14
      %p168 = scmp.lt.s32.totalorder %s167, 7
      %s169 = scalar_select %p168, %s167, 7
      %s170 = smul.addr %s169, 8
      %s171 = smul.addr %s170, 8
      %s172 = scalar_lea.vmem %s3, %s171
      %s173 = smul.u32 4, %s14
      %v174 = vld [vmem:[%s1] sm:$0x3]
      %v175 = vld [vmem:[%s166] sm:$0xff]
      %v176 = vld [vmem:[%s166 + $0x8] sm:$0xff]
      %v177 = vld [vmem:[%s166 + $0x10] sm:$0xff]
      %v178 = vld [vmem:[%s166 + $0x18] sm:$0xff]
      %v179 = vld [vmem:[%s166 + $0x20] sm:$0xff]
      %v180 = vld [vmem:[%s166 + $0x28] sm:$0xff]
      %v181 = vld [vmem:[%s166 + $0x30] sm:$0xff]
      %v182 = vld [vmem:[%s166 + $0x38] sm:$0xff]
      %v183 = vperm.slane %v174, 0
      %v184 = vmul.f32 %v175, %v183
      %v185 = vmul.f32 %v176, %v183
      %v186 = vmul.f32 %v177, %v183
      %v187 = vmul.f32 %v178, %v183
      %v188 = vmul.f32 %v179, %v183
      %v189 = vmul.f32 %v180, %v183
      %v190 = vmul.f32 %v181, %v183
      %v191 = vmul.f32 %v182, %v183
      %v192 = vperm.slane %v174, 1
      %v193 = vadd.f32 %v184, %v192
      %v194 = vadd.f32 %v185, %v192
      %v195 = vadd.f32 %v186, %v192
      %v196 = vadd.f32 %v187, %v192
      %v197 = vadd.f32 %v188, %v192
      %v198 = vadd.f32 %v189, %v192
      %v199 = vadd.f32 %v190, %v192
      %v200 = vadd.f32 %v191, %v192
      %v201 = vmax.f32 %v193, 0.0
      %v202 = vmax.f32 %v194, 0.0
      %v203 = vmax.f32 %v195, 0.0
      %v204 = vmax.f32 %v196, 0.0
      %v205 = vmax.f32 %v197, 0.0
      %v206 = vmax.f32 %v198, 0.0
      %v207 = vmax.f32 %v199, 0.0
      %v208 = vmax.f32 %v200, 0.0
      %v209 = vpack.c.bf16 %v202, %v201
      %v210 = vpack.c.bf16 %v204, %v203
      %v211 = vpack.c.bf16 %v206, %v205
      %v212 = vpack.c.bf16 %v208, %v207
      %v213 = vld [vmem:[%s2] sm:$0xff]
      %v214 = vld [vmem:[%s2 + $0x8] sm:$0xff]
      %v215 = vld [vmem:[%s2 + $0x10] sm:$0xff]
      %v216 = vld [vmem:[%s2 + $0x18] sm:$0xff]
      %v217 = vld [vmem:[%s2 + $0x20] sm:$0xff]
      %v218 = vld [vmem:[%s2 + $0x28] sm:$0xff]
      %v219 = vld [vmem:[%s2 + $0x30] sm:$0xff]
      %v220 = vld [vmem:[%s2 + $0x38] sm:$0xff]
      %v221 = vld [vmem:[%s2 + $0x40] sm:$0xff]
      %v222 = vld [vmem:[%s2 + $0x48] sm:$0xff]
      %v223 = vld [vmem:[%s2 + $0x50] sm:$0xff]
      %v224 = vld [vmem:[%s2 + $0x58] sm:$0xff]
      %v225 = vld [vmem:[%s2 + $0x60] sm:$0xff]
      %v226 = vld [vmem:[%s2 + $0x68] sm:$0xff]
      %v227 = vld [vmem:[%s2 + $0x70] sm:$0xff]
      %v228 = vld [vmem:[%s2 + $0x78] sm:$0xff]
      %v229 = vld [vmem:[%s2 + $0x80] sm:$0xff]
      %v230 = vld [vmem:[%s2 + $0x88] sm:$0xff]
      %v231 = vld [vmem:[%s2 + $0x90] sm:$0xff]
      %v232 = vld [vmem:[%s2 + $0x98] sm:$0xff]
      %v233 = vld [vmem:[%s2 + $0xa0] sm:$0xff]
      %v234 = vld [vmem:[%s2 + $0xa8] sm:$0xff]
      %v235 = vld [vmem:[%s2 + $0xb0] sm:$0xff]
      %v236 = vld [vmem:[%s2 + $0xb8] sm:$0xff]
      %v237 = vld [vmem:[%s2 + $0xc0] sm:$0xff]
      %v238 = vld [vmem:[%s2 + $0xc8] sm:$0xff]
      %v239 = vld [vmem:[%s2 + $0xd0] sm:$0xff]
      %v240 = vld [vmem:[%s2 + $0xd8] sm:$0xff]
      %v241 = vld [vmem:[%s2 + $0xe0] sm:$0xff]
      %v242 = vld [vmem:[%s2 + $0xe8] sm:$0xff]
      %v243 = vld [vmem:[%s2 + $0xf0] sm:$0xff]
      %v244 = vld [vmem:[%s2 + $0xf8] sm:$0xff]
      %v245 = vld [vmem:[%s2 + $0x100] sm:$0xff]
      %v246 = vld [vmem:[%s2 + $0x108] sm:$0xff]
      %v247 = vld [vmem:[%s2 + $0x110] sm:$0xff]
      %v248 = vld [vmem:[%s2 + $0x118] sm:$0xff]
      %v249 = vld [vmem:[%s2 + $0x120] sm:$0xff]
      %v250 = vld [vmem:[%s2 + $0x128] sm:$0xff]
      %v251 = vld [vmem:[%s2 + $0x130] sm:$0xff]
      %v252 = vld [vmem:[%s2 + $0x138] sm:$0xff]
      %v253 = vld [vmem:[%s2 + $0x140] sm:$0xff]
      %v254 = vld [vmem:[%s2 + $0x148] sm:$0xff]
      %v255 = vld [vmem:[%s2 + $0x150] sm:$0xff]
      %v256 = vld [vmem:[%s2 + $0x158] sm:$0xff]
      %v257 = vld [vmem:[%s2 + $0x160] sm:$0xff]
      %v258 = vld [vmem:[%s2 + $0x168] sm:$0xff]
      %v259 = vld [vmem:[%s2 + $0x170] sm:$0xff]
      %v260 = vld [vmem:[%s2 + $0x178] sm:$0xff]
      %v261 = vld [vmem:[%s2 + $0x180] sm:$0xff]
      %v262 = vld [vmem:[%s2 + $0x188] sm:$0xff]
      %v263 = vld [vmem:[%s2 + $0x190] sm:$0xff]
      %v264 = vld [vmem:[%s2 + $0x198] sm:$0xff]
      %v265 = vld [vmem:[%s2 + $0x1a0] sm:$0xff]
      %v266 = vld [vmem:[%s2 + $0x1a8] sm:$0xff]
      %v267 = vld [vmem:[%s2 + $0x1b0] sm:$0xff]
      %v268 = vld [vmem:[%s2 + $0x1b8] sm:$0xff]
      %v269 = vld [vmem:[%s2 + $0x1c0] sm:$0xff]
      %v270 = vld [vmem:[%s2 + $0x1c8] sm:$0xff]
      %v271 = vld [vmem:[%s2 + $0x1d0] sm:$0xff]
      %v272 = vld [vmem:[%s2 + $0x1d8] sm:$0xff]
      %v273 = vld [vmem:[%s2 + $0x1e0] sm:$0xff]
      %v274 = vld [vmem:[%s2 + $0x1e8] sm:$0xff]
      %v275 = vld [vmem:[%s2 + $0x1f0] sm:$0xff]
      %v276 = vld [vmem:[%s2 + $0x1f8] sm:$0xff]
      %v277 = vld [vmem:[%s2 + $0x200] sm:$0xff]
      %v278 = vld [vmem:[%s2 + $0x208] sm:$0xff]
      %v279 = vld [vmem:[%s2 + $0x210] sm:$0xff]
      %v280 = vld [vmem:[%s2 + $0x218] sm:$0xff]
      %v281 = vld [vmem:[%s2 + $0x220] sm:$0xff]
      %v282 = vld [vmem:[%s2 + $0x228] sm:$0xff]
      %v283 = vld [vmem:[%s2 + $0x230] sm:$0xff]
      %v284 = vld [vmem:[%s2 + $0x238] sm:$0xff]
      %v285 = vld [vmem:[%s2 + $0x240] sm:$0xff]
      %v286 = vld [vmem:[%s2 + $0x248] sm:$0xff]
      %v287 = vld [vmem:[%s2 + $0x250] sm:$0xff]
      %v288 = vld [vmem:[%s2 + $0x258] sm:$0xff]
      %v289 = vld [vmem:[%s2 + $0x260] sm:$0xff]
      %v290 = vld [vmem:[%s2 + $0x268] sm:$0xff]
      %v291 = vld [vmem:[%s2 + $0x270] sm:$0xff]
      %v292 = vld [vmem:[%s2 + $0x278] sm:$0xff]
      %v293 = vld [vmem:[%s2 + $0x280] sm:$0xff]
      %v294 = vld [vmem:[%s2 + $0x288] sm:$0xff]
      %v295 = vld [vmem:[%s2 + $0x290] sm:$0xff]
      %v296 = vld [vmem:[%s2 + $0x298] sm:$0xff]
      %v297 = vld [vmem:[%s2 + $0x2a0] sm:$0xff]
      %v298 = vld [vmem:[%s2 + $0x2a8] sm:$0xff]
      %v299 = vld [vmem:[%s2 + $0x2b0] sm:$0xff]
      %v300 = vld [vmem:[%s2 + $0x2b8] sm:$0xff]
      %v301 = vld [vmem:[%s2 + $0x2c0] sm:$0xff]
      %v302 = vld [vmem:[%s2 + $0x2c8] sm:$0xff]
      %v303 = vld [vmem:[%s2 + $0x2d0] sm:$0xff]
      %v304 = vld [vmem:[%s2 + $0x2d8] sm:$0xff]
      %v305 = vld [vmem:[%s2 + $0x2e0] sm:$0xff]
      %v306 = vld [vmem:[%s2 + $0x2e8] sm:$0xff]
      %v307 = vld [vmem:[%s2 + $0x2f0] sm:$0xff]
      %v308 = vld [vmem:[%s2 + $0x2f8] sm:$0xff]
      %v309 = vld [vmem:[%s2 + $0x300] sm:$0xff]
      %v310 = vld [vmem:[%s2 + $0x308] sm:$0xff]
      %v311 = vld [vmem:[%s2 + $0x310] sm:$0xff]
      %v312 = vld [vmem:[%s2 + $0x318] sm:$0xff]
      %v313 = vld [vmem:[%s2 + $0x320] sm:$0xff]
      %v314 = vld [vmem:[%s2 + $0x328] sm:$0xff]
      %v315 = vld [vmem:[%s2 + $0x330] sm:$0xff]
      %v316 = vld [vmem:[%s2 + $0x338] sm:$0xff]
      %v317 = vld [vmem:[%s2 + $0x340] sm:$0xff]
      %v318 = vld [vmem:[%s2 + $0x348] sm:$0xff]
      %v319 = vld [vmem:[%s2 + $0x350] sm:$0xff]
      %v320 = vld [vmem:[%s2 + $0x358] sm:$0xff]
      %v321 = vld [vmem:[%s2 + $0x360] sm:$0xff]
      %v322 = vld [vmem:[%s2 + $0x368] sm:$0xff]
      %v323 = vld [vmem:[%s2 + $0x370] sm:$0xff]
      %v324 = vld [vmem:[%s2 + $0x378] sm:$0xff]
      %v325 = vld [vmem:[%s2 + $0x380] sm:$0xff]
      %v326 = vld [vmem:[%s2 + $0x388] sm:$0xff]
      %v327 = vld [vmem:[%s2 + $0x390] sm:$0xff]
      %v328 = vld [vmem:[%s2 + $0x398] sm:$0xff]
      %v329 = vld [vmem:[%s2 + $0x3a0] sm:$0xff]
      %v330 = vld [vmem:[%s2 + $0x3a8] sm:$0xff]
      %v331 = vld [vmem:[%s2 + $0x3b0] sm:$0xff]
      %v332 = vld [vmem:[%s2 + $0x3b8] sm:$0xff]
      %v333 = vld [vmem:[%s2 + $0x3c0] sm:$0xff]
      %v334 = vld [vmem:[%s2 + $0x3c8] sm:$0xff]
      %v335 = vld [vmem:[%s2 + $0x3d0] sm:$0xff]
      %v336 = vld [vmem:[%s2 + $0x3d8] sm:$0xff]
      %v337 = vld [vmem:[%s2 + $0x3e0] sm:$0xff]
      %v338 = vld [vmem:[%s2 + $0x3e8] sm:$0xff]
      %v339 = vld [vmem:[%s2 + $0x3f0] sm:$0xff]
      %v340 = vld [vmem:[%s2 + $0x3f8] sm:$0xff]
      %v469 = vunpack.c.l.b16 %v213
      %v470 = vunpack.c.h.b16 %v213
      %v471 = vunpack.c.l.b16 %v214
      %v472 = vunpack.c.h.b16 %v214
      %v473 = vunpack.c.l.b16 %v215
      %v474 = vunpack.c.h.b16 %v215
      %v475 = vunpack.c.l.b16 %v216
      %v476 = vunpack.c.h.b16 %v216
      %v477 = vunpack.c.l.b16 %v217
      %v478 = vunpack.c.h.b16 %v217
      %v479 = vunpack.c.l.b16 %v218
      %v480 = vunpack.c.h.b16 %v218
      %v481 = vunpack.c.l.b16 %v219
      %v482 = vunpack.c.h.b16 %v219
      %v483 = vunpack.c.l.b16 %v220
      %v484 = vunpack.c.h.b16 %v220
      %v485 = vunpack.c.l.b16 %v221
      %v486 = vunpack.c.h.b16 %v221
      %v487 = vunpack.c.l.b16 %v222
      %v488 = vunpack.c.h.b16 %v222
      %v489 = vunpack.c.l.b16 %v223
      %v490 = vunpack.c.h.b16 %v223
      %v491 = vunpack.c.l.b16 %v224
      %v492 = vunpack.c.h.b16 %v224
      %v493 = vunpack.c.l.b16 %v225
      %v494 = vunpack.c.h.b16 %v225
      %v495 = vunpack.c.l.b16 %v226
      %v496 = vunpack.c.h.b16 %v226
      %v497 = vunpack.c.l.b16 %v227
      %v498 = vunpack.c.h.b16 %v227
      %v499 = vunpack.c.l.b16 %v228
      %v500 = vunpack.c.h.b16 %v228
      %v501 = vunpack.c.l.b16 %v229
      %v502 = vunpack.c.h.b16 %v229
      %v503 = vunpack.c.l.b16 %v230
      %v504 = vunpack.c.h.b16 %v230
      %v505 = vunpack.c.l.b16 %v231
      %v506 = vunpack.c.h.b16 %v231
      %v507 = vunpack.c.l.b16 %v232
      %v508 = vunpack.c.h.b16 %v232
      %v509 = vunpack.c.l.b16 %v233
      %v510 = vunpack.c.h.b16 %v233
      %v511 = vunpack.c.l.b16 %v234
      %v512 = vunpack.c.h.b16 %v234
      %v513 = vunpack.c.l.b16 %v235
      %v514 = vunpack.c.h.b16 %v235
      %v515 = vunpack.c.l.b16 %v236
      %v516 = vunpack.c.h.b16 %v236
      %v517 = vunpack.c.l.b16 %v237
      %v518 = vunpack.c.h.b16 %v237
      %v519 = vunpack.c.l.b16 %v238
      %v520 = vunpack.c.h.b16 %v238
      %v521 = vunpack.c.l.b16 %v239
      %v522 = vunpack.c.h.b16 %v239
      %v523 = vunpack.c.l.b16 %v240
      %v524 = vunpack.c.h.b16 %v240
      %v525 = vunpack.c.l.b16 %v241
      %v526 = vunpack.c.h.b16 %v241
      %v527 = vunpack.c.l.b16 %v242
      %v528 = vunpack.c.h.b16 %v242
      %v529 = vunpack.c.l.b16 %v243
      %v530 = vunpack.c.h.b16 %v243
      %v531 = vunpack.c.l.b16 %v244
      %v532 = vunpack.c.h.b16 %v244
      %v533 = vunpack.c.l.b16 %v245
      %v534 = vunpack.c.h.b16 %v245
      %v535 = vunpack.c.l.b16 %v246
      %v536 = vunpack.c.h.b16 %v246
      %v537 = vunpack.c.l.b16 %v247
      %v538 = vunpack.c.h.b16 %v247
      %v539 = vunpack.c.l.b16 %v248
      %v540 = vunpack.c.h.b16 %v248
      %v541 = vunpack.c.l.b16 %v249
      %v542 = vunpack.c.h.b16 %v249
      %v543 = vunpack.c.l.b16 %v250
      %v544 = vunpack.c.h.b16 %v250
      %v545 = vunpack.c.l.b16 %v251
      %v546 = vunpack.c.h.b16 %v251
      %v547 = vunpack.c.l.b16 %v252
      %v548 = vunpack.c.h.b16 %v252
      %v549 = vunpack.c.l.b16 %v253
      %v550 = vunpack.c.h.b16 %v253
      %v551 = vunpack.c.l.b16 %v254
      %v552 = vunpack.c.h.b16 %v254
      %v553 = vunpack.c.l.b16 %v255
      %v554 = vunpack.c.h.b16 %v255
      %v555 = vunpack.c.l.b16 %v256
      %v556 = vunpack.c.h.b16 %v256
      %v557 = vunpack.c.l.b16 %v257
      %v558 = vunpack.c.h.b16 %v257
      %v559 = vunpack.c.l.b16 %v258
      %v560 = vunpack.c.h.b16 %v258
      %v561 = vunpack.c.l.b16 %v259
      %v562 = vunpack.c.h.b16 %v259
      %v563 = vunpack.c.l.b16 %v260
      %v564 = vunpack.c.h.b16 %v260
      %v565 = vunpack.c.l.b16 %v261
      %v566 = vunpack.c.h.b16 %v261
      %v567 = vunpack.c.l.b16 %v262
      %v568 = vunpack.c.h.b16 %v262
      %v569 = vunpack.c.l.b16 %v263
      %v570 = vunpack.c.h.b16 %v263
      %v571 = vunpack.c.l.b16 %v264
      %v572 = vunpack.c.h.b16 %v264
      %v573 = vunpack.c.l.b16 %v265
      %v574 = vunpack.c.h.b16 %v265
      %v575 = vunpack.c.l.b16 %v266
      %v576 = vunpack.c.h.b16 %v266
      %v577 = vunpack.c.l.b16 %v267
      %v578 = vunpack.c.h.b16 %v267
      %v579 = vunpack.c.l.b16 %v268
      %v580 = vunpack.c.h.b16 %v268
      %v581 = vunpack.c.l.b16 %v269
      %v582 = vunpack.c.h.b16 %v269
      %v583 = vunpack.c.l.b16 %v270
      %v584 = vunpack.c.h.b16 %v270
      %v585 = vunpack.c.l.b16 %v271
      %v586 = vunpack.c.h.b16 %v271
      %v587 = vunpack.c.l.b16 %v272
      %v588 = vunpack.c.h.b16 %v272
      %v589 = vunpack.c.l.b16 %v273
      %v590 = vunpack.c.h.b16 %v273
      %v591 = vunpack.c.l.b16 %v274
      %v592 = vunpack.c.h.b16 %v274
      %v593 = vunpack.c.l.b16 %v275
      %v594 = vunpack.c.h.b16 %v275
      %v595 = vunpack.c.l.b16 %v276
      %v596 = vunpack.c.h.b16 %v276
      %v597 = vunpack.c.l.b16 %v277
      %v598 = vunpack.c.h.b16 %v277
      %v599 = vunpack.c.l.b16 %v278
      %v600 = vunpack.c.h.b16 %v278
      %v601 = vunpack.c.l.b16 %v279
      %v602 = vunpack.c.h.b16 %v279
      %v603 = vunpack.c.l.b16 %v280
      %v604 = vunpack.c.h.b16 %v280
      %v605 = vunpack.c.l.b16 %v281
      %v606 = vunpack.c.h.b16 %v281
      %v607 = vunpack.c.l.b16 %v282
      %v608 = vunpack.c.h.b16 %v282
      %v609 = vunpack.c.l.b16 %v283
      %v610 = vunpack.c.h.b16 %v283
      %v611 = vunpack.c.l.b16 %v284
      %v612 = vunpack.c.h.b16 %v284
      %v613 = vunpack.c.l.b16 %v285
      %v614 = vunpack.c.h.b16 %v285
      %v615 = vunpack.c.l.b16 %v286
      %v616 = vunpack.c.h.b16 %v286
      %v617 = vunpack.c.l.b16 %v287
      %v618 = vunpack.c.h.b16 %v287
      %v619 = vunpack.c.l.b16 %v288
      %v620 = vunpack.c.h.b16 %v288
      %v621 = vunpack.c.l.b16 %v289
      %v622 = vunpack.c.h.b16 %v289
      %v623 = vunpack.c.l.b16 %v290
      %v624 = vunpack.c.h.b16 %v290
      %v625 = vunpack.c.l.b16 %v291
      %v626 = vunpack.c.h.b16 %v291
      %v627 = vunpack.c.l.b16 %v292
      %v628 = vunpack.c.h.b16 %v292
      %v629 = vunpack.c.l.b16 %v293
      %v630 = vunpack.c.h.b16 %v293
      %v631 = vunpack.c.l.b16 %v294
      %v632 = vunpack.c.h.b16 %v294
      %v633 = vunpack.c.l.b16 %v295
      %v634 = vunpack.c.h.b16 %v295
      %v635 = vunpack.c.l.b16 %v296
      %v636 = vunpack.c.h.b16 %v296
      %v637 = vunpack.c.l.b16 %v297
      %v638 = vunpack.c.h.b16 %v297
      %v639 = vunpack.c.l.b16 %v298
      %v640 = vunpack.c.h.b16 %v298
      %v641 = vunpack.c.l.b16 %v299
      %v642 = vunpack.c.h.b16 %v299
      %v643 = vunpack.c.l.b16 %v300
      %v644 = vunpack.c.h.b16 %v300
      %v645 = vunpack.c.l.b16 %v301
      %v646 = vunpack.c.h.b16 %v301
      %v647 = vunpack.c.l.b16 %v302
      %v648 = vunpack.c.h.b16 %v302
      %v649 = vunpack.c.l.b16 %v303
      %v650 = vunpack.c.h.b16 %v303
      %v651 = vunpack.c.l.b16 %v304
      %v652 = vunpack.c.h.b16 %v304
      %v653 = vunpack.c.l.b16 %v305
      %v654 = vunpack.c.h.b16 %v305
      %v655 = vunpack.c.l.b16 %v306
      %v656 = vunpack.c.h.b16 %v306
      %v657 = vunpack.c.l.b16 %v307
      %v658 = vunpack.c.h.b16 %v307
      %v659 = vunpack.c.l.b16 %v308
      %v660 = vunpack.c.h.b16 %v308
      %v661 = vunpack.c.l.b16 %v309
      %v662 = vunpack.c.h.b16 %v309
      %v663 = vunpack.c.l.b16 %v310
      %v664 = vunpack.c.h.b16 %v310
      %v665 = vunpack.c.l.b16 %v311
      %v666 = vunpack.c.h.b16 %v311
      %v667 = vunpack.c.l.b16 %v312
      %v668 = vunpack.c.h.b16 %v312
      %v669 = vunpack.c.l.b16 %v313
      %v670 = vunpack.c.h.b16 %v313
      %v671 = vunpack.c.l.b16 %v314
      %v672 = vunpack.c.h.b16 %v314
      %v673 = vunpack.c.l.b16 %v315
      %v674 = vunpack.c.h.b16 %v315
      %v675 = vunpack.c.l.b16 %v316
      %v676 = vunpack.c.h.b16 %v316
      %v677 = vunpack.c.l.b16 %v317
      %v678 = vunpack.c.h.b16 %v317
      %v679 = vunpack.c.l.b16 %v318
      %v680 = vunpack.c.h.b16 %v318
      %v681 = vunpack.c.l.b16 %v319
      %v682 = vunpack.c.h.b16 %v319
      %v683 = vunpack.c.l.b16 %v320
      %v684 = vunpack.c.h.b16 %v320
      %v685 = vunpack.c.l.b16 %v321
      %v686 = vunpack.c.h.b16 %v321
      %v687 = vunpack.c.l.b16 %v322
      %v688 = vunpack.c.h.b16 %v322
      %v689 = vunpack.c.l.b16 %v323
      %v690 = vunpack.c.h.b16 %v323
      %v691 = vunpack.c.l.b16 %v324
      %v692 = vunpack.c.h.b16 %v324
      %v693 = vunpack.c.l.b16 %v325
      %v694 = vunpack.c.h.b16 %v325
      %v695 = vunpack.c.l.b16 %v326
      %v696 = vunpack.c.h.b16 %v326
      %v697 = vunpack.c.l.b16 %v327
      %v698 = vunpack.c.h.b16 %v327
      %v699 = vunpack.c.l.b16 %v328
      %v700 = vunpack.c.h.b16 %v328
      %v701 = vunpack.c.l.b16 %v329
      %v702 = vunpack.c.h.b16 %v329
      %v703 = vunpack.c.l.b16 %v330
      %v704 = vunpack.c.h.b16 %v330
      %v705 = vunpack.c.l.b16 %v331
      %v706 = vunpack.c.h.b16 %v331
      %v707 = vunpack.c.l.b16 %v332
      %v708 = vunpack.c.h.b16 %v332
      %v709 = vunpack.c.l.b16 %v333
      %v710 = vunpack.c.h.b16 %v333
      %v711 = vunpack.c.l.b16 %v334
      %v712 = vunpack.c.h.b16 %v334
      %v713 = vunpack.c.l.b16 %v335
      %v714 = vunpack.c.h.b16 %v335
      %v715 = vunpack.c.l.b16 %v336
      %v716 = vunpack.c.h.b16 %v336
      %v717 = vunpack.c.l.b16 %v337
      %v718 = vunpack.c.h.b16 %v337
      %v719 = vunpack.c.l.b16 %v338
      %v720 = vunpack.c.h.b16 %v338
      %v721 = vunpack.c.l.b16 %v339
      %v722 = vunpack.c.h.b16 %v339
      %v723 = vunpack.c.l.b16 %v340
      %v724 = vunpack.c.h.b16 %v340
      %v725 = vpack.c.b16 %v485, %v469
      %v726 = vpack.c.b16 %v486, %v470
      %v727 = vpack.c.b16 %v487, %v471
      %v728 = vpack.c.b16 %v488, %v472
      %v729 = vpack.c.b16 %v489, %v473
      %v730 = vpack.c.b16 %v490, %v474
      %v731 = vpack.c.b16 %v491, %v475
      %v732 = vpack.c.b16 %v492, %v476
      %v733 = vpack.c.b16 %v493, %v477
      %v734 = vpack.c.b16 %v494, %v478
      %v735 = vpack.c.b16 %v495, %v479
      %v736 = vpack.c.b16 %v496, %v480
      %v737 = vpack.c.b16 %v497, %v481
      %v738 = vpack.c.b16 %v498, %v482
      %v739 = vpack.c.b16 %v499, %v483
      %v740 = vpack.c.b16 %v500, %v484
      %v741 = vpack.c.b16 %v517, %v501
      %v742 = vpack.c.b16 %v518, %v502
      %v743 = vpack.c.b16 %v519, %v503
      %v744 = vpack.c.b16 %v520, %v504
      %v745 = vpack.c.b16 %v521, %v505
      %v746 = vpack.c.b16 %v522, %v506
      %v747 = vpack.c.b16 %v523, %v507
      %v748 = vpack.c.b16 %v524, %v508
      %v749 = vpack.c.b16 %v525, %v509
      %v750 = vpack.c.b16 %v526, %v510
      %v751 = vpack.c.b16 %v527, %v511
      %v752 = vpack.c.b16 %v528, %v512
      %v753 = vpack.c.b16 %v529, %v513
      %v754 = vpack.c.b16 %v530, %v514
      %v755 = vpack.c.b16 %v531, %v515
      %v756 = vpack.c.b16 %v532, %v516
      %v757 = vpack.c.b16 %v549, %v533
      %v758 = vpack.c.b16 %v550, %v534
      %v759 = vpack.c.b16 %v551, %v535
      %v760 = vpack.c.b16 %v552, %v536
      %v761 = vpack.c.b16 %v553, %v537
      %v762 = vpack.c.b16 %v554, %v538
      %v763 = vpack.c.b16 %v555, %v539
      %v764 = vpack.c.b16 %v556, %v540
      %v765 = vpack.c.b16 %v557, %v541
      %v766 = vpack.c.b16 %v558, %v542
      %v767 = vpack.c.b16 %v559, %v543
      %v768 = vpack.c.b16 %v560, %v544
      %v769 = vpack.c.b16 %v561, %v545
      %v770 = vpack.c.b16 %v562, %v546
      %v771 = vpack.c.b16 %v563, %v547
      %v772 = vpack.c.b16 %v564, %v548
      %v773 = vpack.c.b16 %v581, %v565
      %v774 = vpack.c.b16 %v582, %v566
      %v775 = vpack.c.b16 %v583, %v567
      %v776 = vpack.c.b16 %v584, %v568
      %v777 = vpack.c.b16 %v585, %v569
      %v778 = vpack.c.b16 %v586, %v570
      %v779 = vpack.c.b16 %v587, %v571
      %v780 = vpack.c.b16 %v588, %v572
      %v781 = vpack.c.b16 %v589, %v573
      %v782 = vpack.c.b16 %v590, %v574
      %v783 = vpack.c.b16 %v591, %v575
      %v784 = vpack.c.b16 %v592, %v576
      %v785 = vpack.c.b16 %v593, %v577
      %v786 = vpack.c.b16 %v594, %v578
      %v787 = vpack.c.b16 %v595, %v579
      %v788 = vpack.c.b16 %v596, %v580
      %v789 = vpack.c.b16 %v613, %v597
      %v790 = vpack.c.b16 %v614, %v598
      %v791 = vpack.c.b16 %v615, %v599
      %v792 = vpack.c.b16 %v616, %v600
      %v793 = vpack.c.b16 %v617, %v601
      %v794 = vpack.c.b16 %v618, %v602
      %v795 = vpack.c.b16 %v619, %v603
      %v796 = vpack.c.b16 %v620, %v604
      %v797 = vpack.c.b16 %v621, %v605
      %v798 = vpack.c.b16 %v622, %v606
      %v799 = vpack.c.b16 %v623, %v607
      %v800 = vpack.c.b16 %v624, %v608
      %v801 = vpack.c.b16 %v625, %v609
      %v802 = vpack.c.b16 %v626, %v610
      %v803 = vpack.c.b16 %v627, %v611
      %v804 = vpack.c.b16 %v628, %v612
      %v805 = vpack.c.b16 %v645, %v629
      %v806 = vpack.c.b16 %v646, %v630
      %v807 = vpack.c.b16 %v647, %v631
      %v808 = vpack.c.b16 %v648, %v632
      %v809 = vpack.c.b16 %v649, %v633
      %v810 = vpack.c.b16 %v650, %v634
      %v811 = vpack.c.b16 %v651, %v635
      %v812 = vpack.c.b16 %v652, %v636
      %v813 = vpack.c.b16 %v653, %v637
      %v814 = vpack.c.b16 %v654, %v638
      %v815 = vpack.c.b16 %v655, %v639
      %v816 = vpack.c.b16 %v656, %v640
      %v817 = vpack.c.b16 %v657, %v641
      %v818 = vpack.c.b16 %v658, %v642
      %v819 = vpack.c.b16 %v659, %v643
      %v820 = vpack.c.b16 %v660, %v644
      %v821 = vpack.c.b16 %v677, %v661
      %v822 = vpack.c.b16 %v678, %v662
      %v823 = vpack.c.b16 %v679, %v663
      %v824 = vpack.c.b16 %v680, %v664
      %v825 = vpack.c.b16 %v681, %v665
      %v826 = vpack.c.b16 %v682, %v666
      %v827 = vpack.c.b16 %v683, %v667
      %v828 = vpack.c.b16 %v684, %v668
      %v829 = vpack.c.b16 %v685, %v669
      %v830 = vpack.c.b16 %v686, %v670
      %v831 = vpack.c.b16 %v687, %v671
      %v832 = vpack.c.b16 %v688, %v672
      %v833 = vpack.c.b16 %v689, %v673
      %v834 = vpack.c.b16 %v690, %v674
      %v835 = vpack.c.b16 %v691, %v675
      %v836 = vpack.c.b16 %v692, %v676
      %v837 = vpack.c.b16 %v709, %v693
      %v838 = vpack.c.b16 %v710, %v694
      %v839 = vpack.c.b16 %v711, %v695
      %v840 = vpack.c.b16 %v712, %v696
      %v841 = vpack.c.b16 %v713, %v697
      %v842 = vpack.c.b16 %v714, %v698
      %v843 = vpack.c.b16 %v715, %v699
      %v844 = vpack.c.b16 %v716, %v700
      %v845 = vpack.c.b16 %v717, %v701
      %v846 = vpack.c.b16 %v718, %v702
      %v847 = vpack.c.b16 %v719, %v703
      %v848 = vpack.c.b16 %v720, %v704
      %v849 = vpack.c.b16 %v721, %v705
      %v850 = vpack.c.b16 %v722, %v706
      %v851 = vpack.c.b16 %v723, %v707
      %v852 = vpack.c.b16 %v724, %v708
      %981 = vmatpush.bf16.msra.mxu0 %v837
      %982 = vmatpush.bf16.msra.mxu0 %v821
      %983 = vmatpush.bf16.msra.mxu0 %v805
      %984 = vmatpush.bf16.msra.mxu0 %v789
      %985 = vmatpush.bf16.msra.mxu0 %v773
      %986 = vmatpush.bf16.msra.mxu0 %v757
      %987 = vmatpush.bf16.msra.mxu0 %v741
      %988 = vmatpush.bf16.msra.mxu0 %v725
      %989 = vmatmul.bf16.gmra.mxu0 %v209
      %v990 = vpop.f32.mrf.mxu0
      %v991 = vadd.f32 0.0, %v990
      %v992 = vpop.f32.mrf.mxu0
      %v993 = vadd.f32 0.0, %v992
      %994 = vmatmul.bf16.gmra.mxu0 %v210
      %v995 = vpop.f32.mrf.mxu0
      %v996 = vadd.f32 0.0, %v995
      %v997 = vpop.f32.mrf.mxu0
      %v998 = vadd.f32 0.0, %v997
      %999 = vmatmul.bf16.gmra.mxu0 %v211
      %v1000 = vpop.f32.mrf.mxu0
      %v1001 = vadd.f32 0.0, %v1000
      %v1002 = vpop.f32.mrf.mxu0
      %v1003 = vadd.f32 0.0, %v1002
      %1004 = vmatmul.bf16.gmra.mxu0 %v212
      %v1005 = vpop.f32.mrf.mxu0
      %v1006 = vadd.f32 0.0, %v1005
      %v1007 = vpop.f32.mrf.mxu0
      %v1008 = vadd.f32 0.0, %v1007
      %1009 = vdwg.mxu0
      %1010 = vmatpush.bf16.msra.mxu0 %v838
      %1011 = vmatpush.bf16.msra.mxu0 %v822
      %1012 = vmatpush.bf16.msra.mxu0 %v806
      %1013 = vmatpush.bf16.msra.mxu0 %v790
      %1014 = vmatpush.bf16.msra.mxu0 %v774
      %1015 = vmatpush.bf16.msra.mxu0 %v758
      %1016 = vmatpush.bf16.msra.mxu0 %v742
      %1017 = vmatpush.bf16.msra.mxu0 %v726
      %1018 = vmatmul.bf16.gmra.mxu0 %v209
      %v1019 = vpop.f32.mrf.mxu0
      %v1020 = vadd.f32 0.0, %v1019
      %v1021 = vpop.f32.mrf.mxu0
      %v1022 = vadd.f32 0.0, %v1021
      %1023 = vmatmul.bf16.gmra.mxu0 %v210
      %v1024 = vpop.f32.mrf.mxu0
      %v1025 = vadd.f32 0.0, %v1024
      %v1026 = vpop.f32.mrf.mxu0
      %v1027 = vadd.f32 0.0, %v1026
      %1028 = vmatmul.bf16.gmra.mxu0 %v211
      %v1029 = vpop.f32.mrf.mxu0
      %v1030 = vadd.f32 0.0, %v1029
      %v1031 = vpop.f32.mrf.mxu0
      %v1032 = vadd.f32 0.0, %v1031
      %1033 = vmatmul.bf16.gmra.mxu0 %v212
      %v1034 = vpop.f32.mrf.mxu0
      %v1035 = vadd.f32 0.0, %v1034
      %v1036 = vpop.f32.mrf.mxu0
      %v1037 = vadd.f32 0.0, %v1036
      %1038 = vdwg.mxu0
      %1039 = vmatpush.bf16.msra.mxu0 %v839
      %1040 = vmatpush.bf16.msra.mxu0 %v823
      %1041 = vmatpush.bf16.msra.mxu0 %v807
      %1042 = vmatpush.bf16.msra.mxu0 %v791
      %1043 = vmatpush.bf16.msra.mxu0 %v775
      %1044 = vmatpush.bf16.msra.mxu0 %v759
      %1045 = vmatpush.bf16.msra.mxu0 %v743
      %1046 = vmatpush.bf16.msra.mxu0 %v727
      %1047 = vmatmul.bf16.gmra.mxu0 %v209
      %v1048 = vpop.f32.mrf.mxu0
      %v1049 = vadd.f32 0.0, %v1048
      %v1050 = vpop.f32.mrf.mxu0
      %v1051 = vadd.f32 0.0, %v1050
      %1052 = vmatmul.bf16.gmra.mxu0 %v210
      %v1053 = vpop.f32.mrf.mxu0
      %v1054 = vadd.f32 0.0, %v1053
      %v1055 = vpop.f32.mrf.mxu0
      %v1056 = vadd.f32 0.0, %v1055
      %1057 = vmatmul.bf16.gmra.mxu0 %v211
      %v1058 = vpop.f32.mrf.mxu0
      %v1059 = vadd.f32 0.0, %v1058
      %v1060 = vpop.f32.mrf.mxu0
      %v1061 = vadd.f32 0.0, %v1060
      %1062 = vmatmul.bf16.gmra.mxu0 %v212
      %v1063 = vpop.f32.mrf.mxu0
      %v1064 = vadd.f32 0.0, %v1063
      %v1065 = vpop.f32.mrf.mxu0
      %v1066 = vadd.f32 0.0, %v1065
      %1067 = vdwg.mxu0
      %1068 = vmatpush.bf16.msra.mxu0 %v840
      %1069 = vmatpush.bf16.msra.mxu0 %v824
      %1070 = vmatpush.bf16.msra.mxu0 %v808
      %1071 = vmatpush.bf16.msra.mxu0 %v792
      %1072 = vmatpush.bf16.msra.mxu0 %v776
      %1073 = vmatpush.bf16.msra.mxu0 %v760
      %1074 = vmatpush.bf16.msra.mxu0 %v744
      %1075 = vmatpush.bf16.msra.mxu0 %v728
      %1076 = vmatmul.bf16.gmra.mxu0 %v209
      %v1077 = vpop.f32.mrf.mxu0
      %v1078 = vadd.f32 0.0, %v1077
      %v1079 = vpop.f32.mrf.mxu0
      %v1080 = vadd.f32 0.0, %v1079
      %1081 = vmatmul.bf16.gmra.mxu0 %v210
      %v1082 = vpop.f32.mrf.mxu0
      %v1083 = vadd.f32 0.0, %v1082
      %v1084 = vpop.f32.mrf.mxu0
      %v1085 = vadd.f32 0.0, %v1084
      %1086 = vmatmul.bf16.gmra.mxu0 %v211
      %v1087 = vpop.f32.mrf.mxu0
      %v1088 = vadd.f32 0.0, %v1087
      %v1089 = vpop.f32.mrf.mxu0
      %v1090 = vadd.f32 0.0, %v1089
      %1091 = vmatmul.bf16.gmra.mxu0 %v212
      %v1092 = vpop.f32.mrf.mxu0
      %v1093 = vadd.f32 0.0, %v1092
      %v1094 = vpop.f32.mrf.mxu0
      %v1095 = vadd.f32 0.0, %v1094
      %1096 = vdwg.mxu0
      %1097 = vmatpush.bf16.msra.mxu0 %v841
      %1098 = vmatpush.bf16.msra.mxu0 %v825
      %1099 = vmatpush.bf16.msra.mxu0 %v809
      %1100 = vmatpush.bf16.msra.mxu0 %v793
      %1101 = vmatpush.bf16.msra.mxu0 %v777
      %1102 = vmatpush.bf16.msra.mxu0 %v761
      %1103 = vmatpush.bf16.msra.mxu0 %v745
      %1104 = vmatpush.bf16.msra.mxu0 %v729
      %1105 = vmatmul.bf16.gmra.mxu0 %v209
      %v1106 = vpop.f32.mrf.mxu0
      %v1107 = vadd.f32 0.0, %v1106
      %v1108 = vpop.f32.mrf.mxu0
      %v1109 = vadd.f32 0.0, %v1108
      %1110 = vmatmul.bf16.gmra.mxu0 %v210
      %v1111 = vpop.f32.mrf.mxu0
      %v1112 = vadd.f32 0.0, %v1111
      %v1113 = vpop.f32.mrf.mxu0
      %v1114 = vadd.f32 0.0, %v1113
      %1115 = vmatmul.bf16.gmra.mxu0 %v211
      %v1116 = vpop.f32.mrf.mxu0
      %v1117 = vadd.f32 0.0, %v1116
      %v1118 = vpop.f32.mrf.mxu0
      %v1119 = vadd.f32 0.0, %v1118
      %1120 = vmatmul.bf16.gmra.mxu0 %v212
      %v1121 = vpop.f32.mrf.mxu0
      %v1122 = vadd.f32 0.0, %v1121
      %v1123 = vpop.f32.mrf.mxu0
      %v1124 = vadd.f32 0.0, %v1123
      %1125 = vdwg.mxu0
      %1126 = vmatpush.bf16.msra.mxu0 %v842
      %1127 = vmatpush.bf16.msra.mxu0 %v826
      %1128 = vmatpush.bf16.msra.mxu0 %v810
      %1129 = vmatpush.bf16.msra.mxu0 %v794
      %1130 = vmatpush.bf16.msra.mxu0 %v778
      %1131 = vmatpush.bf16.msra.mxu0 %v762
      %1132 = vmatpush.bf16.msra.mxu0 %v746
      %1133 = vmatpush.bf16.msra.mxu0 %v730
      %1134 = vmatmul.bf16.gmra.mxu0 %v209
      %v1135 = vpop.f32.mrf.mxu0
      %v1136 = vadd.f32 0.0, %v1135
      %v1137 = vpop.f32.mrf.mxu0
      %v1138 = vadd.f32 0.0, %v1137
      %1139 = vmatmul.bf16.gmra.mxu0 %v210
      %v1140 = vpop.f32.mrf.mxu0
      %v1141 = vadd.f32 0.0, %v1140
      %v1142 = vpop.f32.mrf.mxu0
      %v1143 = vadd.f32 0.0, %v1142
      %1144 = vmatmul.bf16.gmra.mxu0 %v211
      %v1145 = vpop.f32.mrf.mxu0
      %v1146 = vadd.f32 0.0, %v1145
      %v1147 = vpop.f32.mrf.mxu0
      %v1148 = vadd.f32 0.0, %v1147
      %1149 = vmatmul.bf16.gmra.mxu0 %v212
      %v1150 = vpop.f32.mrf.mxu0
      %v1151 = vadd.f32 0.0, %v1150
      %v1152 = vpop.f32.mrf.mxu0
      %v1153 = vadd.f32 0.0, %v1152
      %1154 = vdwg.mxu0
      %1155 = vmatpush.bf16.msra.mxu0 %v843
      %1156 = vmatpush.bf16.msra.mxu0 %v827
      %1157 = vmatpush.bf16.msra.mxu0 %v811
      %1158 = vmatpush.bf16.msra.mxu0 %v795
      %1159 = vmatpush.bf16.msra.mxu0 %v779
      %1160 = vmatpush.bf16.msra.mxu0 %v763
      %1161 = vmatpush.bf16.msra.mxu0 %v747
      %1162 = vmatpush.bf16.msra.mxu0 %v731
      %1163 = vmatmul.bf16.gmra.mxu0 %v209
      %v1164 = vpop.f32.mrf.mxu0
      %v1165 = vadd.f32 0.0, %v1164
      %v1166 = vpop.f32.mrf.mxu0
      %v1167 = vadd.f32 0.0, %v1166
      %1168 = vmatmul.bf16.gmra.mxu0 %v210
      %v1169 = vpop.f32.mrf.mxu0
      %v1170 = vadd.f32 0.0, %v1169
      %v1171 = vpop.f32.mrf.mxu0
      %v1172 = vadd.f32 0.0, %v1171
      %1173 = vmatmul.bf16.gmra.mxu0 %v211
      %v1174 = vpop.f32.mrf.mxu0
      %v1175 = vadd.f32 0.0, %v1174
      %v1176 = vpop.f32.mrf.mxu0
      %v1177 = vadd.f32 0.0, %v1176
      %1178 = vmatmul.bf16.gmra.mxu0 %v212
      %v1179 = vpop.f32.mrf.mxu0
      %v1180 = vadd.f32 0.0, %v1179
      %v1181 = vpop.f32.mrf.mxu0
      %v1182 = vadd.f32 0.0, %v1181
      %1183 = vdwg.mxu0
      %1184 = vmatpush.bf16.msra.mxu0 %v844
      %1185 = vmatpush.bf16.msra.mxu0 %v828
      %1186 = vmatpush.bf16.msra.mxu0 %v812
      %1187 = vmatpush.bf16.msra.mxu0 %v796
      %1188 = vmatpush.bf16.msra.mxu0 %v780
      %1189 = vmatpush.bf16.msra.mxu0 %v764
      %1190 = vmatpush.bf16.msra.mxu0 %v748
      %1191 = vmatpush.bf16.msra.mxu0 %v732
      %1192 = vmatmul.bf16.gmra.mxu0 %v209
      %v1193 = vpop.f32.mrf.mxu0
      %v1194 = vadd.f32 0.0, %v1193
      %v1195 = vpop.f32.mrf.mxu0
      %v1196 = vadd.f32 0.0, %v1195
      %1197 = vmatmul.bf16.gmra.mxu0 %v210
      %v1198 = vpop.f32.mrf.mxu0
      %v1199 = vadd.f32 0.0, %v1198
      %v1200 = vpop.f32.mrf.mxu0
      %v1201 = vadd.f32 0.0, %v1200
      %1202 = vmatmul.bf16.gmra.mxu0 %v211
      %v1203 = vpop.f32.mrf.mxu0
      %v1204 = vadd.f32 0.0, %v1203
      %v1205 = vpop.f32.mrf.mxu0
      %v1206 = vadd.f32 0.0, %v1205
      %1207 = vmatmul.bf16.gmra.mxu0 %v212
      %v1208 = vpop.f32.mrf.mxu0
      %v1209 = vadd.f32 0.0, %v1208
      %v1210 = vpop.f32.mrf.mxu0
      %v1211 = vadd.f32 0.0, %v1210
      %1212 = vdwg.mxu0
      %1213 = vmatpush.bf16.msra.mxu0 %v845
      %1214 = vmatpush.bf16.msra.mxu0 %v829
      %1215 = vmatpush.bf16.msra.mxu0 %v813
      %1216 = vmatpush.bf16.msra.mxu0 %v797
      %1217 = vmatpush.bf16.msra.mxu0 %v781
      %1218 = vmatpush.bf16.msra.mxu0 %v765
      %1219 = vmatpush.bf16.msra.mxu0 %v749
      %1220 = vmatpush.bf16.msra.mxu0 %v733
      %1221 = vmatmul.bf16.gmra.mxu0 %v209
      %v1222 = vpop.f32.mrf.mxu0
      %v1223 = vadd.f32 0.0, %v1222
      %v1224 = vpop.f32.mrf.mxu0
      %v1225 = vadd.f32 0.0, %v1224
      %1226 = vmatmul.bf16.gmra.mxu0 %v210
      %v1227 = vpop.f32.mrf.mxu0
      %v1228 = vadd.f32 0.0, %v1227
      %v1229 = vpop.f32.mrf.mxu0
      %v1230 = vadd.f32 0.0, %v1229
      %1231 = vmatmul.bf16.gmra.mxu0 %v211
      %v1232 = vpop.f32.mrf.mxu0
      %v1233 = vadd.f32 0.0, %v1232
      %v1234 = vpop.f32.mrf.mxu0
      %v1235 = vadd.f32 0.0, %v1234
      %1236 = vmatmul.bf16.gmra.mxu0 %v212
      %v1237 = vpop.f32.mrf.mxu0
      %v1238 = vadd.f32 0.0, %v1237
      %v1239 = vpop.f32.mrf.mxu0
      %v1240 = vadd.f32 0.0, %v1239
      %1241 = vdwg.mxu0
      %1242 = vmatpush.bf16.msra.mxu0 %v846
      %1243 = vmatpush.bf16.msra.mxu0 %v830
      %1244 = vmatpush.bf16.msra.mxu0 %v814
      %1245 = vmatpush.bf16.msra.mxu0 %v798
      %1246 = vmatpush.bf16.msra.mxu0 %v782
      %1247 = vmatpush.bf16.msra.mxu0 %v766
      %1248 = vmatpush.bf16.msra.mxu0 %v750
      %1249 = vmatpush.bf16.msra.mxu0 %v734
      %1250 = vmatmul.bf16.gmra.mxu0 %v209
      %v1251 = vpop.f32.mrf.mxu0
      %v1252 = vadd.f32 0.0, %v1251
      %v1253 = vpop.f32.mrf.mxu0
      %v1254 = vadd.f32 0.0, %v1253
      %1255 = vmatmul.bf16.gmra.mxu0 %v210
      %v1256 = vpop.f32.mrf.mxu0
      %v1257 = vadd.f32 0.0, %v1256
      %v1258 = vpop.f32.mrf.mxu0
      %v1259 = vadd.f32 0.0, %v1258
      %1260 = vmatmul.bf16.gmra.mxu0 %v211
      %v1261 = vpop.f32.mrf.mxu0
      %v1262 = vadd.f32 0.0, %v1261
      %v1263 = vpop.f32.mrf.mxu0
      %v1264 = vadd.f32 0.0, %v1263
      %1265 = vmatmul.bf16.gmra.mxu0 %v212
      %v1266 = vpop.f32.mrf.mxu0
      %v1267 = vadd.f32 0.0, %v1266
      %v1268 = vpop.f32.mrf.mxu0
      %v1269 = vadd.f32 0.0, %v1268
      %1270 = vdwg.mxu0
      %1271 = vmatpush.bf16.msra.mxu0 %v847
      %1272 = vmatpush.bf16.msra.mxu0 %v831
      %1273 = vmatpush.bf16.msra.mxu0 %v815
      %1274 = vmatpush.bf16.msra.mxu0 %v799
      %1275 = vmatpush.bf16.msra.mxu0 %v783
      %1276 = vmatpush.bf16.msra.mxu0 %v767
      %1277 = vmatpush.bf16.msra.mxu0 %v751
      %1278 = vmatpush.bf16.msra.mxu0 %v735
      %1279 = vmatmul.bf16.gmra.mxu0 %v209
      %v1280 = vpop.f32.mrf.mxu0
      %v1281 = vadd.f32 0.0, %v1280
      %v1282 = vpop.f32.mrf.mxu0
      %v1283 = vadd.f32 0.0, %v1282
      %1284 = vmatmul.bf16.gmra.mxu0 %v210
      %v1285 = vpop.f32.mrf.mxu0
      %v1286 = vadd.f32 0.0, %v1285
      %v1287 = vpop.f32.mrf.mxu0
      %v1288 = vadd.f32 0.0, %v1287
      %1289 = vmatmul.bf16.gmra.mxu0 %v211
      %v1290 = vpop.f32.mrf.mxu0
      %v1291 = vadd.f32 0.0, %v1290
      %v1292 = vpop.f32.mrf.mxu0
      %v1293 = vadd.f32 0.0, %v1292
      %1294 = vmatmul.bf16.gmra.mxu0 %v212
      %v1295 = vpop.f32.mrf.mxu0
      %v1296 = vadd.f32 0.0, %v1295
      %v1297 = vpop.f32.mrf.mxu0
      %v1298 = vadd.f32 0.0, %v1297
      %1299 = vdwg.mxu0
      %1300 = vmatpush.bf16.msra.mxu0 %v848
      %1301 = vmatpush.bf16.msra.mxu0 %v832
      %1302 = vmatpush.bf16.msra.mxu0 %v816
      %1303 = vmatpush.bf16.msra.mxu0 %v800
      %1304 = vmatpush.bf16.msra.mxu0 %v784
      %1305 = vmatpush.bf16.msra.mxu0 %v768
      %1306 = vmatpush.bf16.msra.mxu0 %v752
      %1307 = vmatpush.bf16.msra.mxu0 %v736
      %1308 = vmatmul.bf16.gmra.mxu0 %v209
      %v1309 = vpop.f32.mrf.mxu0
      %v1310 = vadd.f32 0.0, %v1309
      %v1311 = vpop.f32.mrf.mxu0
      %v1312 = vadd.f32 0.0, %v1311
      %1313 = vmatmul.bf16.gmra.mxu0 %v210
      %v1314 = vpop.f32.mrf.mxu0
      %v1315 = vadd.f32 0.0, %v1314
      %v1316 = vpop.f32.mrf.mxu0
      %v1317 = vadd.f32 0.0, %v1316
      %1318 = vmatmul.bf16.gmra.mxu0 %v211
      %v1319 = vpop.f32.mrf.mxu0
      %v1320 = vadd.f32 0.0, %v1319
      %v1321 = vpop.f32.mrf.mxu0
      %v1322 = vadd.f32 0.0, %v1321
      %1323 = vmatmul.bf16.gmra.mxu0 %v212
      %v1324 = vpop.f32.mrf.mxu0
      %v1325 = vadd.f32 0.0, %v1324
      %v1326 = vpop.f32.mrf.mxu0
      %v1327 = vadd.f32 0.0, %v1326
      %1328 = vdwg.mxu0
      %1329 = vmatpush.bf16.msra.mxu0 %v849
      %1330 = vmatpush.bf16.msra.mxu0 %v833
      %1331 = vmatpush.bf16.msra.mxu0 %v817
      %1332 = vmatpush.bf16.msra.mxu0 %v801
      %1333 = vmatpush.bf16.msra.mxu0 %v785
      %1334 = vmatpush.bf16.msra.mxu0 %v769
      %1335 = vmatpush.bf16.msra.mxu0 %v753
      %1336 = vmatpush.bf16.msra.mxu0 %v737
      %1337 = vmatmul.bf16.gmra.mxu0 %v209
      %v1338 = vpop.f32.mrf.mxu0
      %v1339 = vadd.f32 0.0, %v1338
      %v1340 = vpop.f32.mrf.mxu0
      %v1341 = vadd.f32 0.0, %v1340
      %1342 = vmatmul.bf16.gmra.mxu0 %v210
      %v1343 = vpop.f32.mrf.mxu0
      %v1344 = vadd.f32 0.0, %v1343
      %v1345 = vpop.f32.mrf.mxu0
      %v1346 = vadd.f32 0.0, %v1345
      %1347 = vmatmul.bf16.gmra.mxu0 %v211
      %v1348 = vpop.f32.mrf.mxu0
      %v1349 = vadd.f32 0.0, %v1348
      %v1350 = vpop.f32.mrf.mxu0
      %v1351 = vadd.f32 0.0, %v1350
      %1352 = vmatmul.bf16.gmra.mxu0 %v212
      %v1353 = vpop.f32.mrf.mxu0
      %v1354 = vadd.f32 0.0, %v1353
      %v1355 = vpop.f32.mrf.mxu0
      %v1356 = vadd.f32 0.0, %v1355
      %1357 = vdwg.mxu0
      %1358 = vmatpush.bf16.msra.mxu0 %v850
      %1359 = vmatpush.bf16.msra.mxu0 %v834
      %1360 = vmatpush.bf16.msra.mxu0 %v818
      %1361 = vmatpush.bf16.msra.mxu0 %v802
      %1362 = vmatpush.bf16.msra.mxu0 %v786
      %1363 = vmatpush.bf16.msra.mxu0 %v770
      %1364 = vmatpush.bf16.msra.mxu0 %v754
      %1365 = vmatpush.bf16.msra.mxu0 %v738
      %1366 = vmatmul.bf16.gmra.mxu0 %v209
      %v1367 = vpop.f32.mrf.mxu0
      %v1368 = vadd.f32 0.0, %v1367
      %v1369 = vpop.f32.mrf.mxu0
      %v1370 = vadd.f32 0.0, %v1369
      %1371 = vmatmul.bf16.gmra.mxu0 %v210
      %v1372 = vpop.f32.mrf.mxu0
      %v1373 = vadd.f32 0.0, %v1372
      %v1374 = vpop.f32.mrf.mxu0
      %v1375 = vadd.f32 0.0, %v1374
      %1376 = vmatmul.bf16.gmra.mxu0 %v211
      %v1377 = vpop.f32.mrf.mxu0
      %v1378 = vadd.f32 0.0, %v1377
      %v1379 = vpop.f32.mrf.mxu0
      %v1380 = vadd.f32 0.0, %v1379
      %1381 = vmatmul.bf16.gmra.mxu0 %v212
      %v1382 = vpop.f32.mrf.mxu0
      %v1383 = vadd.f32 0.0, %v1382
      %v1384 = vpop.f32.mrf.mxu0
      %v1385 = vadd.f32 0.0, %v1384
      %1386 = vdwg.mxu0
      %1387 = vmatpush.bf16.msra.mxu0 %v851
      %1388 = vmatpush.bf16.msra.mxu0 %v835
      %1389 = vmatpush.bf16.msra.mxu0 %v819
      %1390 = vmatpush.bf16.msra.mxu0 %v803
      %1391 = vmatpush.bf16.msra.mxu0 %v787
      %1392 = vmatpush.bf16.msra.mxu0 %v771
      %1393 = vmatpush.bf16.msra.mxu0 %v755
      %1394 = vmatpush.bf16.msra.mxu0 %v739
      %1395 = vmatmul.bf16.gmra.mxu0 %v209
      %v1396 = vpop.f32.mrf.mxu0
      %v1397 = vadd.f32 0.0, %v1396
      %v1398 = vpop.f32.mrf.mxu0
      %v1399 = vadd.f32 0.0, %v1398
      %1400 = vmatmul.bf16.gmra.mxu0 %v210
      %v1401 = vpop.f32.mrf.mxu0
      %v1402 = vadd.f32 0.0, %v1401
      %v1403 = vpop.f32.mrf.mxu0
      %v1404 = vadd.f32 0.0, %v1403
      %1405 = vmatmul.bf16.gmra.mxu0 %v211
      %v1406 = vpop.f32.mrf.mxu0
      %v1407 = vadd.f32 0.0, %v1406
      %v1408 = vpop.f32.mrf.mxu0
      %v1409 = vadd.f32 0.0, %v1408
      %1410 = vmatmul.bf16.gmra.mxu0 %v212
      %v1411 = vpop.f32.mrf.mxu0
      %v1412 = vadd.f32 0.0, %v1411
      %v1413 = vpop.f32.mrf.mxu0
      %v1414 = vadd.f32 0.0, %v1413
      %1415 = vdwg.mxu0
      %1416 = vmatpush.bf16.msra.mxu0 %v852
      %1417 = vmatpush.bf16.msra.mxu0 %v836
      %1418 = vmatpush.bf16.msra.mxu0 %v820
      %1419 = vmatpush.bf16.msra.mxu0 %v804
      %1420 = vmatpush.bf16.msra.mxu0 %v788
      %1421 = vmatpush.bf16.msra.mxu0 %v772
      %1422 = vmatpush.bf16.msra.mxu0 %v756
      %1423 = vmatpush.bf16.msra.mxu0 %v740
      %1424 = vmatmul.bf16.gmra.mxu0 %v209
      %v1425 = vpop.f32.mrf.mxu0
      %v1426 = vadd.f32 0.0, %v1425
      %v1427 = vpop.f32.mrf.mxu0
      %v1428 = vadd.f32 0.0, %v1427
      %1429 = vmatmul.bf16.gmra.mxu0 %v210
      %v1430 = vpop.f32.mrf.mxu0
      %v1431 = vadd.f32 0.0, %v1430
      %v1432 = vpop.f32.mrf.mxu0
      %v1433 = vadd.f32 0.0, %v1432
      %1434 = vmatmul.bf16.gmra.mxu0 %v211
      %v1435 = vpop.f32.mrf.mxu0
      %v1436 = vadd.f32 0.0, %v1435
      %v1437 = vpop.f32.mrf.mxu0
      %v1438 = vadd.f32 0.0, %v1437
      %1439 = vmatmul.bf16.gmra.mxu0 %v212
      %v1440 = vpop.f32.mrf.mxu0
      %v1441 = vadd.f32 0.0, %v1440
      %v1442 = vpop.f32.mrf.mxu0
      %v1443 = vadd.f32 0.0, %v1442
      %1444 = vdwg.mxu0
      %1445 = vst [vmem:[#allocation2] sm:$0xff] 0.0
      %1446 = vst [vmem:[#allocation2 + $0x8] sm:$0xff] 0.0
      %1447 = vst [vmem:[#allocation2 + $0x10] sm:$0xff] 0.0
      %1448 = vst [vmem:[#allocation2 + $0x18] sm:$0xff] 0.0
      %1449 = vst [vmem:[#allocation2 + $0x20] sm:$0xff] 0.0
      %1450 = vst [vmem:[#allocation2 + $0x28] sm:$0xff] 0.0
      %1451 = vst [vmem:[#allocation2 + $0x30] sm:$0xff] 0.0
      %1452 = vst [vmem:[#allocation2 + $0x38] sm:$0xff] 0.0
      %1453 = vst [vmem:[#allocation2 + $0x40] sm:$0xff] 0.0
      %1454 = vst [vmem:[#allocation2 + $0x48] sm:$0xff] 0.0
      %1455 = vst [vmem:[#allocation2 + $0x50] sm:$0xff] 0.0
      %1456 = vst [vmem:[#allocation2 + $0x58] sm:$0xff] 0.0
      %1457 = vst [vmem:[#allocation2 + $0x60] sm:$0xff] 0.0
      %1458 = vst [vmem:[#allocation2 + $0x68] sm:$0xff] 0.0
      %1459 = vst [vmem:[#allocation2 + $0x70] sm:$0xff] 0.0
      %1460 = vst [vmem:[#allocation2 + $0x78] sm:$0xff] 0.0
      %1461 = vst [vmem:[#allocation2 + $0x80] sm:$0x3] 0.0
      %1462 = vst [vmem:[#allocation2 + $0x88] sm:$0x3] 0.0
      %1463 = vst [vmem:[#allocation2 + $0x90] sm:$0x3] 0.0
      %1464 = vst [vmem:[#allocation2 + $0x98] sm:$0x3] 0.0
      %1465 = vst [vmem:[#allocation2 + $0xa0] sm:$0x3] 0.0
      %1466 = vst [vmem:[#allocation2 + $0xa8] sm:$0x3] 0.0
      %1467 = vst [vmem:[#allocation2 + $0xb0] sm:$0x3] 0.0
      %1468 = vst [vmem:[#allocation2 + $0xb8] sm:$0x3] 0.0
      %1469 = vst [vmem:[#allocation2 + $0xc0] sm:$0x3] 0.0
      %1470 = vst [vmem:[#allocation2 + $0xc8] sm:$0x3] 0.0
      %1471 = vst [vmem:[#allocation2 + $0xd0] sm:$0x3] 0.0
      %1472 = vst [vmem:[#allocation2 + $0xd8] sm:$0x3] 0.0
      %1473 = vst [vmem:[#allocation2 + $0xe0] sm:$0x3] 0.0
      %1474 = vst [vmem:[#allocation2 + $0xe8] sm:$0x3] 0.0
      %1475 = vst [vmem:[#allocation2 + $0xf0] sm:$0x3] 0.0
      %1476 = vst [vmem:[#allocation2 + $0xf8] sm:$0x3] 0.0
      %s1477 = scalar_lea.vmem [#allocation2], 2304
      %1478 = vst [vmem:[%s1477] sm:$0xff] 0.0
      %1479 = vst [vmem:[%s1477 + $0x8] sm:$0xff] 0.0
      %1480 = vst [vmem:[%s1477 + $0x10] sm:$0xff] 0.0
      %1481 = vst [vmem:[%s1477 + $0x18] sm:$0xff] 0.0
      %1482 = vst [vmem:[%s1477 + $0x20] sm:$0xff] 0.0
      %1483 = vst [vmem:[%s1477 + $0x28] sm:$0xff] 0.0
      %1484 = vst [vmem:[%s1477 + $0x30] sm:$0xff] 0.0
      %1485 = vst [vmem:[%s1477 + $0x38] sm:$0xff] 0.0
      %1486 = vst [vmem:[%s1477 + $0x40] sm:$0xff] 0.0
      %1487 = vst [vmem:[%s1477 + $0x48] sm:$0xff] 0.0
      %1488 = vst [vmem:[%s1477 + $0x50] sm:$0xff] 0.0
      %1489 = vst [vmem:[%s1477 + $0x58] sm:$0xff] 0.0
      %1490 = vst [vmem:[%s1477 + $0x60] sm:$0xff] 0.0
      %1491 = vst [vmem:[%s1477 + $0x68] sm:$0xff] 0.0
      %1492 = vst [vmem:[%s1477 + $0x70] sm:$0xff] 0.0
      %1493 = vst [vmem:[%s1477 + $0x78] sm:$0xff] 0.0
      %1494 = vst [vmem:[%s1477 + $0x80] sm:$0x3] 0.0
      %1495 = vst [vmem:[%s1477 + $0x88] sm:$0x3] 0.0
      %1496 = vst [vmem:[%s1477 + $0x90] sm:$0x3] 0.0
      %1497 = vst [vmem:[%s1477 + $0x98] sm:$0x3] 0.0
      %1498 = vst [vmem:[%s1477 + $0xa0] sm:$0x3] 0.0
      %1499 = vst [vmem:[%s1477 + $0xa8] sm:$0x3] 0.0
      %1500 = vst [vmem:[%s1477 + $0xb0] sm:$0x3] 0.0
      %1501 = vst [vmem:[%s1477 + $0xb8] sm:$0x3] 0.0
      %1502 = vst [vmem:[%s1477 + $0xc0] sm:$0x3] 0.0
      %1503 = vst [vmem:[%s1477 + $0xc8] sm:$0x3] 0.0
      %1504 = vst [vmem:[%s1477 + $0xd0] sm:$0x3] 0.0
      %1505 = vst [vmem:[%s1477 + $0xd8] sm:$0x3] 0.0
      %1506 = vst [vmem:[%s1477 + $0xe0] sm:$0x3] 0.0
      %1507 = vst [vmem:[%s1477 + $0xe8] sm:$0x3] 0.0
      %1508 = vst [vmem:[%s1477 + $0xf0] sm:$0x3] 0.0
      %1509 = vst [vmem:[%s1477 + $0xf8] sm:$0x3] 0.0
      %s1510 = scalar_lea.vmem [#allocation2], 256
      %1511 = vst [vmem:[%s1510] ss:$8 sm:$0xf] 0.0
      %1512 = vst [vmem:[%s1510] ss:$8 sm:$0xf0] 0.0
      %s1513 = scalar_lea.vmem %s1510, 64 [#allocation2]
      %1514 = vst [vmem:[%s1513] ss:$8 sm:$0xf] 0.0
      %1515 = vst [vmem:[%s1513] ss:$8 sm:$0xf0] 0.0
      %s1516 = scalar_lea.vmem %s1510, 256 [#allocation2]
      %1517 = vst [vmem:[%s1516] ss:$8 sm:$0xf] 0.0
      %1518 = vst [vmem:[%s1516] ss:$8 sm:$0xf0] 0.0
      %s1519 = scalar_lea.vmem %s1510, 320 [#allocation2]
      %1520 = vst [vmem:[%s1519] ss:$8 sm:$0xf] 0.0
      %1521 = vst [vmem:[%s1519] ss:$8 sm:$0xf0] 0.0
      %s1522 = scalar_lea.vmem %s1510, 512 [#allocation2]
      %1523 = vst [vmem:[%s1522] ss:$8 sm:$0xf] 0.0
      %1524 = vst [vmem:[%s1522] ss:$8 sm:$0xf0] 0.0
      %s1525 = scalar_lea.vmem %s1510, 576 [#allocation2]
      %1526 = vst [vmem:[%s1525] ss:$8 sm:$0xf] 0.0
      %1527 = vst [vmem:[%s1525] ss:$8 sm:$0xf0] 0.0
      %s1528 = scalar_lea.vmem %s1510, 768 [#allocation2]
      %1529 = vst [vmem:[%s1528] ss:$8 sm:$0xf] 0.0
      %1530 = vst [vmem:[%s1528] ss:$8 sm:$0xf0] 0.0
      %s1531 = scalar_lea.vmem %s1510, 832 [#allocation2]
      %1532 = vst [vmem:[%s1531] ss:$8 sm:$0xf] 0.0
      %1533 = vst [vmem:[%s1531] ss:$8 sm:$0xf0] 0.0
      %s1534 = scalar_lea.vmem %s1510, 1024 [#allocation2]
      %1535 = vst [vmem:[%s1534] ss:$8 sm:$0xf] 0.0
      %1536 = vst [vmem:[%s1534] ss:$8 sm:$0xf0] 0.0
      %s1537 = scalar_lea.vmem %s1510, 1088 [#allocation2]
      %1538 = vst [vmem:[%s1537] ss:$8 sm:$0xf] 0.0
      %1539 = vst [vmem:[%s1537] ss:$8 sm:$0xf0] 0.0
      %s1540 = scalar_lea.vmem %s1510, 1280 [#allocation2]
      %1541 = vst [vmem:[%s1540] ss:$8 sm:$0xf] 0.0
      %1542 = vst [vmem:[%s1540] ss:$8 sm:$0xf0] 0.0
      %s1543 = scalar_lea.vmem %s1510, 1344 [#allocation2]
      %1544 = vst [vmem:[%s1543] ss:$8 sm:$0xf] 0.0
      %1545 = vst [vmem:[%s1543] ss:$8 sm:$0xf0] 0.0
      %s1546 = scalar_lea.vmem %s1510, 1536 [#allocation2]
      %1547 = vst [vmem:[%s1546] ss:$8 sm:$0xf] 0.0
      %1548 = vst [vmem:[%s1546] ss:$8 sm:$0xf0] 0.0
      %s1549 = scalar_lea.vmem %s1510, 1600 [#allocation2]
      %1550 = vst [vmem:[%s1549] ss:$8 sm:$0xf] 0.0
      %1551 = vst [vmem:[%s1549] ss:$8 sm:$0xf0] 0.0
      %s1552 = scalar_lea.vmem %s1510, 1792 [#allocation2]
      %1553 = vst [vmem:[%s1552] ss:$8 sm:$0xf] 0.0
      %1554 = vst [vmem:[%s1552] ss:$8 sm:$0xf0] 0.0
      %s1555 = scalar_lea.vmem %s1510, 1856 [#allocation2]
      %1556 = vst [vmem:[%s1555] ss:$8 sm:$0xf] 0.0
      %1557 = vst [vmem:[%s1555] ss:$8 sm:$0xf0] 0.0
      %s1558 = scalar_lea.vmem %s1510, 129 [#allocation2]
      %1559 = vst [vmem:[%s1558] ss:$8 sm:$0xf] 0.0
      %1560 = vst [vmem:[%s1558] ss:$8 sm:$0xf0] 0.0
      %s1561 = scalar_lea.vmem %s1510, 193 [#allocation2]
      %1562 = vst [vmem:[%s1561] ss:$8 sm:$0xf] 0.0
      %1563 = vst [vmem:[%s1561] ss:$8 sm:$0xf0] 0.0
      %s1564 = scalar_lea.vmem %s1510, 385 [#allocation2]
      %1565 = vst [vmem:[%s1564] ss:$8 sm:$0xf] 0.0
      %1566 = vst [vmem:[%s1564] ss:$8 sm:$0xf0] 0.0
      %s1567 = scalar_lea.vmem %s1510, 449 [#allocation2]
      %1568 = vst [vmem:[%s1567] ss:$8 sm:$0xf] 0.0
      %1569 = vst [vmem:[%s1567] ss:$8 sm:$0xf0] 0.0
      %s1570 = scalar_lea.vmem %s1510, 641 [#allocation2]
      %1571 = vst [vmem:[%s1570] ss:$8 sm:$0xf] 0.0
      %1572 = vst [vmem:[%s1570] ss:$8 sm:$0xf0] 0.0
      %s1573 = scalar_lea.vmem %s1510, 705 [#allocation2]
      %1574 = vst [vmem:[%s1573] ss:$8 sm:$0xf] 0.0
      %1575 = vst [vmem:[%s1573] ss:$8 sm:$0xf0] 0.0
      %s1576 = scalar_lea.vmem %s1510, 897 [#allocation2]
      %1577 = vst [vmem:[%s1576] ss:$8 sm:$0xf] 0.0
      %1578 = vst [vmem:[%s1576] ss:$8 sm:$0xf0] 0.0
      %s1579 = scalar_lea.vmem %s1510, 961 [#allocation2]
      %1580 = vst [vmem:[%s1579] ss:$8 sm:$0xf] 0.0
      %1581 = vst [vmem:[%s1579] ss:$8 sm:$0xf0] 0.0
      %s1582 = scalar_lea.vmem %s1510, 1153 [#allocation2]
      %1583 = vst [vmem:[%s1582] ss:$8 sm:$0xf] 0.0
      %1584 = vst [vmem:[%s1582] ss:$8 sm:$0xf0] 0.0
      %s1585 = scalar_lea.vmem %s1510, 1217 [#allocation2]
      %1586 = vst [vmem:[%s1585] ss:$8 sm:$0xf] 0.0
      %1587 = vst [vmem:[%s1585] ss:$8 sm:$0xf0] 0.0
      %s1588 = scalar_lea.vmem %s1510, 1409 [#allocation2]
      %1589 = vst [vmem:[%s1588] ss:$8 sm:$0xf] 0.0
      %1590 = vst [vmem:[%s1588] ss:$8 sm:$0xf0] 0.0
      %s1591 = scalar_lea.vmem %s1510, 1473 [#allocation2]
      %1592 = vst [vmem:[%s1591] ss:$8 sm:$0xf] 0.0
      %1593 = vst [vmem:[%s1591] ss:$8 sm:$0xf0] 0.0
      %s1594 = scalar_lea.vmem %s1510, 1665 [#allocation2]
      %1595 = vst [vmem:[%s1594] ss:$8 sm:$0xf] 0.0
      %1596 = vst [vmem:[%s1594] ss:$8 sm:$0xf0] 0.0
      %s1597 = scalar_lea.vmem %s1510, 1729 [#allocation2]
      %1598 = vst [vmem:[%s1597] ss:$8 sm:$0xf] 0.0
      %1599 = vst [vmem:[%s1597] ss:$8 sm:$0xf0] 0.0
      %s1600 = scalar_lea.vmem %s1510, 1921 [#allocation2]
      %1601 = vst [vmem:[%s1600] ss:$8 sm:$0xf] 0.0
      %1602 = vst [vmem:[%s1600] ss:$8 sm:$0xf0] 0.0
      %s1603 = scalar_lea.vmem %s1510, 1985 [#allocation2]
      %1604 = vst [vmem:[%s1603] ss:$8 sm:$0xf] 0.0
      %1605 = vst [vmem:[%s1603] ss:$8 sm:$0xf0] 0.0
      %v1622 = vrot.slane %v991, 7
      %v1623 = vrot.slane %v1020, 7
      %v1624 = vrot.slane %v1049, 7
      %v1625 = vrot.slane %v1078, 7
      %v1626 = vrot.slane %v1107, 7
      %v1627 = vrot.slane %v1136, 7
      %v1628 = vrot.slane %v1165, 7
      %v1629 = vrot.slane %v1194, 7
      %v1630 = vrot.slane %v1223, 7
      %v1631 = vrot.slane %v1252, 7
      %v1632 = vrot.slane %v1281, 7
      %v1633 = vrot.slane %v1310, 7
      %v1634 = vrot.slane %v1339, 7
      %v1635 = vrot.slane %v1368, 7
      %v1636 = vrot.slane %v1397, 7
      %v1637 = vrot.slane %v1426, 7
      %1654 = vst [vmem:[%s1510] sm:$0xfe] %v1622
      %1655 = vst [vmem:[%s1510 + $0x8] sm:$0xfe] %v1623
      %1656 = vst [vmem:[%s1510 + $0x10] sm:$0xfe] %v1624
      %1657 = vst [vmem:[%s1510 + $0x18] sm:$0xfe] %v1625
      %1658 = vst [vmem:[%s1510 + $0x20] sm:$0xfe] %v1626
      %1659 = vst [vmem:[%s1510 + $0x28] sm:$0xfe] %v1627
      %1660 = vst [vmem:[%s1510 + $0x30] sm:$0xfe] %v1628
      %1661 = vst [vmem:[%s1510 + $0x38] sm:$0xfe] %v1629
      %1662 = vst [vmem:[%s1510 + $0x40] sm:$0xfe] %v1630
      %1663 = vst [vmem:[%s1510 + $0x48] sm:$0xfe] %v1631
      %1664 = vst [vmem:[%s1510 + $0x50] sm:$0xfe] %v1632
      %1665 = vst [vmem:[%s1510 + $0x58] sm:$0xfe] %v1633
      %1666 = vst [vmem:[%s1510 + $0x60] sm:$0xfe] %v1634
      %1667 = vst [vmem:[%s1510 + $0x68] sm:$0xfe] %v1635
      %1668 = vst [vmem:[%s1510 + $0x70] sm:$0xfe] %v1636
      %1669 = vst [vmem:[%s1510 + $0x78] sm:$0xfe] %v1637
      %1670 = vst [vmem:[%s1510 + $0x80] sm:$0x1] %v1622
      %1671 = vst [vmem:[%s1510 + $0x88] sm:$0x1] %v1623
      %1672 = vst [vmem:[%s1510 + $0x90] sm:$0x1] %v1624
      %1673 = vst [vmem:[%s1510 + $0x98] sm:$0x1] %v1625
      %1674 = vst [vmem:[%s1510 + $0xa0] sm:$0x1] %v1626
      %1675 = vst [vmem:[%s1510 + $0xa8] sm:$0x1] %v1627
      %1676 = vst [vmem:[%s1510 + $0xb0] sm:$0x1] %v1628
      %1677 = vst [vmem:[%s1510 + $0xb8] sm:$0x1] %v1629
      %1678 = vst [vmem:[%s1510 + $0xc0] sm:$0x1] %v1630
      %1679 = vst [vmem:[%s1510 + $0xc8] sm:$0x1] %v1631
      %1680 = vst [vmem:[%s1510 + $0xd0] sm:$0x1] %v1632
      %1681 = vst [vmem:[%s1510 + $0xd8] sm:$0x1] %v1633
      %1682 = vst [vmem:[%s1510 + $0xe0] sm:$0x1] %v1634
      %1683 = vst [vmem:[%s1510 + $0xe8] sm:$0x1] %v1635
      %1684 = vst [vmem:[%s1510 + $0xf0] sm:$0x1] %v1636
      %1685 = vst [vmem:[%s1510 + $0xf8] sm:$0x1] %v1637
      %v1702 = vrot.slane %v993, 7
      %v1703 = vrot.slane %v1022, 7
      %v1704 = vrot.slane %v1051, 7
      %v1705 = vrot.slane %v1080, 7
      %v1706 = vrot.slane %v1109, 7
      %v1707 = vrot.slane %v1138, 7
      %v1708 = vrot.slane %v1167, 7
      %v1709 = vrot.slane %v1196, 7
      %v1710 = vrot.slane %v1225, 7
      %v1711 = vrot.slane %v1254, 7
      %v1712 = vrot.slane %v1283, 7
      %v1713 = vrot.slane %v1312, 7
      %v1714 = vrot.slane %v1341, 7
      %v1715 = vrot.slane %v1370, 7
      %v1716 = vrot.slane %v1399, 7
      %v1717 = vrot.slane %v1428, 7
      %s1734 = scalar_lea.vmem [#allocation2], 512
      %1735 = vst [vmem:[%s1734] sm:$0xfe] %v1702
      %1736 = vst [vmem:[%s1734 + $0x8] sm:$0xfe] %v1703
      %1737 = vst [vmem:[%s1734 + $0x10] sm:$0xfe] %v1704
      %1738 = vst [vmem:[%s1734 + $0x18] sm:$0xfe] %v1705
      %1739 = vst [vmem:[%s1734 + $0x20] sm:$0xfe] %v1706
      %1740 = vst [vmem:[%s1734 + $0x28] sm:$0xfe] %v1707
      %1741 = vst [vmem:[%s1734 + $0x30] sm:$0xfe] %v1708
      %1742 = vst [vmem:[%s1734 + $0x38] sm:$0xfe] %v1709
      %1743 = vst [vmem:[%s1734 + $0x40] sm:$0xfe] %v1710
      %1744 = vst [vmem:[%s1734 + $0x48] sm:$0xfe] %v1711
      %1745 = vst [vmem:[%s1734 + $0x50] sm:$0xfe] %v1712
      %1746 = vst [vmem:[%s1734 + $0x58] sm:$0xfe] %v1713
      %1747 = vst [vmem:[%s1734 + $0x60] sm:$0xfe] %v1714
      %1748 = vst [vmem:[%s1734 + $0x68] sm:$0xfe] %v1715
      %1749 = vst [vmem:[%s1734 + $0x70] sm:$0xfe] %v1716
      %1750 = vst [vmem:[%s1734 + $0x78] sm:$0xfe] %v1717
      %1751 = vst [vmem:[%s1734 + $0x80] sm:$0x1] %v1702
      %1752 = vst [vmem:[%s1734 + $0x88] sm:$0x1] %v1703
      %1753 = vst [vmem:[%s1734 + $0x90] sm:$0x1] %v1704
      %1754 = vst [vmem:[%s1734 + $0x98] sm:$0x1] %v1705
      %1755 = vst [vmem:[%s1734 + $0xa0] sm:$0x1] %v1706
      %1756 = vst [vmem:[%s1734 + $0xa8] sm:$0x1] %v1707
      %1757 = vst [vmem:[%s1734 + $0xb0] sm:$0x1] %v1708
      %1758 = vst [vmem:[%s1734 + $0xb8] sm:$0x1] %v1709
      %1759 = vst [vmem:[%s1734 + $0xc0] sm:$0x1] %v1710
      %1760 = vst [vmem:[%s1734 + $0xc8] sm:$0x1] %v1711
      %1761 = vst [vmem:[%s1734 + $0xd0] sm:$0x1] %v1712
      %1762 = vst [vmem:[%s1734 + $0xd8] sm:$0x1] %v1713
      %1763 = vst [vmem:[%s1734 + $0xe0] sm:$0x1] %v1714
      %1764 = vst [vmem:[%s1734 + $0xe8] sm:$0x1] %v1715
      %1765 = vst [vmem:[%s1734 + $0xf0] sm:$0x1] %v1716
      %1766 = vst [vmem:[%s1734 + $0xf8] sm:$0x1] %v1717
      %v1783 = vrot.slane %v996, 7
      %v1784 = vrot.slane %v1025, 7
      %v1785 = vrot.slane %v1054, 7
      %v1786 = vrot.slane %v1083, 7
      %v1787 = vrot.slane %v1112, 7
      %v1788 = vrot.slane %v1141, 7
      %v1789 = vrot.slane %v1170, 7
      %v1790 = vrot.slane %v1199, 7
      %v1791 = vrot.slane %v1228, 7
      %v1792 = vrot.slane %v1257, 7
      %v1793 = vrot.slane %v1286, 7
      %v1794 = vrot.slane %v1315, 7
      %v1795 = vrot.slane %v1344, 7
      %v1796 = vrot.slane %v1373, 7
      %v1797 = vrot.slane %v1402, 7
      %v1798 = vrot.slane %v1431, 7
      %s1815 = scalar_lea.vmem [#allocation2], 768
      %1816 = vst [vmem:[%s1815] sm:$0xfe] %v1783
      %1817 = vst [vmem:[%s1815 + $0x8] sm:$0xfe] %v1784
      %1818 = vst [vmem:[%s1815 + $0x10] sm:$0xfe] %v1785
      %1819 = vst [vmem:[%s1815 + $0x18] sm:$0xfe] %v1786
      %1820 = vst [vmem:[%s1815 + $0x20] sm:$0xfe] %v1787
      %1821 = vst [vmem:[%s1815 + $0x28] sm:$0xfe] %v1788
      %1822 = vst [vmem:[%s1815 + $0x30] sm:$0xfe] %v1789
      %1823 = vst [vmem:[%s1815 + $0x38] sm:$0xfe] %v1790
      %1824 = vst [vmem:[%s1815 + $0x40] sm:$0xfe] %v1791
      %1825 = vst [vmem:[%s1815 + $0x48] sm:$0xfe] %v1792
      %1826 = vst [vmem:[%s1815 + $0x50] sm:$0xfe] %v1793
      %1827 = vst [vmem:[%s1815 + $0x58] sm:$0xfe] %v1794
      %1828 = vst [vmem:[%s1815 + $0x60] sm:$0xfe] %v1795
      %1829 = vst [vmem:[%s1815 + $0x68] sm:$0xfe] %v1796
      %1830 = vst [vmem:[%s1815 + $0x70] sm:$0xfe] %v1797
      %1831 = vst [vmem:[%s1815 + $0x78] sm:$0xfe] %v1798
      %1832 = vst [vmem:[%s1815 + $0x80] sm:$0x1] %v1783
      %1833 = vst [vmem:[%s1815 + $0x88] sm:$0x1] %v1784
      %1834 = vst [vmem:[%s1815 + $0x90] sm:$0x1] %v1785
      %1835 = vst [vmem:[%s1815 + $0x98] sm:$0x1] %v1786
      %1836 = vst [vmem:[%s1815 + $0xa0] sm:$0x1] %v1787
      %1837 = vst [vmem:[%s1815 + $0xa8] sm:$0x1] %v1788
      %1838 = vst [vmem:[%s1815 + $0xb0] sm:$0x1] %v1789
      %1839 = vst [vmem:[%s1815 + $0xb8] sm:$0x1] %v1790
      %1840 = vst [vmem:[%s1815 + $0xc0] sm:$0x1] %v1791
      %1841 = vst [vmem:[%s1815 + $0xc8] sm:$0x1] %v1792
      %1842 = vst [vmem:[%s1815 + $0xd0] sm:$0x1] %v1793
      %1843 = vst [vmem:[%s1815 + $0xd8] sm:$0x1] %v1794
      %1844 = vst [vmem:[%s1815 + $0xe0] sm:$0x1] %v1795
      %1845 = vst [vmem:[%s1815 + $0xe8] sm:$0x1] %v1796
      %1846 = vst [vmem:[%s1815 + $0xf0] sm:$0x1] %v1797
      %1847 = vst [vmem:[%s1815 + $0xf8] sm:$0x1] %v1798
      %v1864 = vrot.slane %v998, 7
      %v1865 = vrot.slane %v1027, 7
      %v1866 = vrot.slane %v1056, 7
      %v1867 = vrot.slane %v1085, 7
      %v1868 = vrot.slane %v1114, 7
      %v1869 = vrot.slane %v1143, 7
      %v1870 = vrot.slane %v1172, 7
      %v1871 = vrot.slane %v1201, 7
      %v1872 = vrot.slane %v1230, 7
      %v1873 = vrot.slane %v1259, 7
      %v1874 = vrot.slane %v1288, 7
      %v1875 = vrot.slane %v1317, 7
      %v1876 = vrot.slane %v1346, 7
      %v1877 = vrot.slane %v1375, 7
      %v1878 = vrot.slane %v1404, 7
      %v1879 = vrot.slane %v1433, 7
      %s1896 = scalar_lea.vmem [#allocation2], 1024
      %1897 = vst [vmem:[%s1896] sm:$0xfe] %v1864
      %1898 = vst [vmem:[%s1896 + $0x8] sm:$0xfe] %v1865
      %1899 = vst [vmem:[%s1896 + $0x10] sm:$0xfe] %v1866
      %1900 = vst [vmem:[%s1896 + $0x18] sm:$0xfe] %v1867
      %1901 = vst [vmem:[%s1896 + $0x20] sm:$0xfe] %v1868
      %1902 = vst [vmem:[%s1896 + $0x28] sm:$0xfe] %v1869
      %1903 = vst [vmem:[%s1896 + $0x30] sm:$0xfe] %v1870
      %1904 = vst [vmem:[%s1896 + $0x38] sm:$0xfe] %v1871
      %1905 = vst [vmem:[%s1896 + $0x40] sm:$0xfe] %v1872
      %1906 = vst [vmem:[%s1896 + $0x48] sm:$0xfe] %v1873
      %1907 = vst [vmem:[%s1896 + $0x50] sm:$0xfe] %v1874
      %1908 = vst [vmem:[%s1896 + $0x58] sm:$0xfe] %v1875
      %1909 = vst [vmem:[%s1896 + $0x60] sm:$0xfe] %v1876
      %1910 = vst [vmem:[%s1896 + $0x68] sm:$0xfe] %v1877
      %1911 = vst [vmem:[%s1896 + $0x70] sm:$0xfe] %v1878
      %1912 = vst [vmem:[%s1896 + $0x78] sm:$0xfe] %v1879
      %1913 = vst [vmem:[%s1896 + $0x80] sm:$0x1] %v1864
      %1914 = vst [vmem:[%s1896 + $0x88] sm:$0x1] %v1865
      %1915 = vst [vmem:[%s1896 + $0x90] sm:$0x1] %v1866
      %1916 = vst [vmem:[%s1896 + $0x98] sm:$0x1] %v1867
      %1917 = vst [vmem:[%s1896 + $0xa0] sm:$0x1] %v1868
      %1918 = vst [vmem:[%s1896 + $0xa8] sm:$0x1] %v1869
      %1919 = vst [vmem:[%s1896 + $0xb0] sm:$0x1] %v1870
      %1920 = vst [vmem:[%s1896 + $0xb8] sm:$0x1] %v1871
      %1921 = vst [vmem:[%s1896 + $0xc0] sm:$0x1] %v1872
      %1922 = vst [vmem:[%s1896 + $0xc8] sm:$0x1] %v1873
      %1923 = vst [vmem:[%s1896 + $0xd0] sm:$0x1] %v1874
      %1924 = vst [vmem:[%s1896 + $0xd8] sm:$0x1] %v1875
      %1925 = vst [vmem:[%s1896 + $0xe0] sm:$0x1] %v1876
      %1926 = vst [vmem:[%s1896 + $0xe8] sm:$0x1] %v1877
      %1927 = vst [vmem:[%s1896 + $0xf0] sm:$0x1] %v1878
      %1928 = vst [vmem:[%s1896 + $0xf8] sm:$0x1] %v1879
      %v1945 = vrot.slane %v1001, 7
      %v1946 = vrot.slane %v1030, 7
      %v1947 = vrot.slane %v1059, 7
      %v1948 = vrot.slane %v1088, 7
      %v1949 = vrot.slane %v1117, 7
      %v1950 = vrot.slane %v1146, 7
      %v1951 = vrot.slane %v1175, 7
      %v1952 = vrot.slane %v1204, 7
      %v1953 = vrot.slane %v1233, 7
      %v1954 = vrot.slane %v1262, 7
      %v1955 = vrot.slane %v1291, 7
      %v1956 = vrot.slane %v1320, 7
      %v1957 = vrot.slane %v1349, 7
      %v1958 = vrot.slane %v1378, 7
      %v1959 = vrot.slane %v1407, 7
      %v1960 = vrot.slane %v1436, 7
      %s1977 = scalar_lea.vmem [#allocation2], 1280
      %1978 = vst [vmem:[%s1977] sm:$0xfe] %v1945
      %1979 = vst [vmem:[%s1977 + $0x8] sm:$0xfe] %v1946
      %1980 = vst [vmem:[%s1977 + $0x10] sm:$0xfe] %v1947
      %1981 = vst [vmem:[%s1977 + $0x18] sm:$0xfe] %v1948
      %1982 = vst [vmem:[%s1977 + $0x20] sm:$0xfe] %v1949
      %1983 = vst [vmem:[%s1977 + $0x28] sm:$0xfe] %v1950
      %1984 = vst [vmem:[%s1977 + $0x30] sm:$0xfe] %v1951
      %1985 = vst [vmem:[%s1977 + $0x38] sm:$0xfe] %v1952
      %1986 = vst [vmem:[%s1977 + $0x40] sm:$0xfe] %v1953
      %1987 = vst [vmem:[%s1977 + $0x48] sm:$0xfe] %v1954
      %1988 = vst [vmem:[%s1977 + $0x50] sm:$0xfe] %v1955
      %1989 = vst [vmem:[%s1977 + $0x58] sm:$0xfe] %v1956
      %1990 = vst [vmem:[%s1977 + $0x60] sm:$0xfe] %v1957
      %1991 = vst [vmem:[%s1977 + $0x68] sm:$0xfe] %v1958
      %1992 = vst [vmem:[%s1977 + $0x70] sm:$0xfe] %v1959
      %1993 = vst [vmem:[%s1977 + $0x78] sm:$0xfe] %v1960
      %1994 = vst [vmem:[%s1977 + $0x80] sm:$0x1] %v1945
      %1995 = vst [vmem:[%s1977 + $0x88] sm:$0x1] %v1946
      %1996 = vst [vmem:[%s1977 + $0x90] sm:$0x1] %v1947
      %1997 = vst [vmem:[%s1977 + $0x98] sm:$0x1] %v1948
      %1998 = vst [vmem:[%s1977 + $0xa0] sm:$0x1] %v1949
      %1999 = vst [vmem:[%s1977 + $0xa8] sm:$0x1] %v1950
      %2000 = vst [vmem:[%s1977 + $0xb0] sm:$0x1] %v1951
      %2001 = vst [vmem:[%s1977 + $0xb8] sm:$0x1] %v1952
      %2002 = vst [vmem:[%s1977 + $0xc0] sm:$0x1] %v1953
      %2003 = vst [vmem:[%s1977 + $0xc8] sm:$0x1] %v1954
      %2004 = vst [vmem:[%s1977 + $0xd0] sm:$0x1] %v1955
      %2005 = vst [vmem:[%s1977 + $0xd8] sm:$0x1] %v1956
      %2006 = vst [vmem:[%s1977 + $0xe0] sm:$0x1] %v1957
      %2007 = vst [vmem:[%s1977 + $0xe8] sm:$0x1] %v1958
      %2008 = vst [vmem:[%s1977 + $0xf0] sm:$0x1] %v1959
      %2009 = vst [vmem:[%s1977 + $0xf8] sm:$0x1] %v1960
      %v2026 = vrot.slane %v1003, 7
      %v2027 = vrot.slane %v1032, 7
      %v2028 = vrot.slane %v1061, 7
      %v2029 = vrot.slane %v1090, 7
      %v2030 = vrot.slane %v1119, 7
      %v2031 = vrot.slane %v1148, 7
      %v2032 = vrot.slane %v1177, 7
      %v2033 = vrot.slane %v1206, 7
      %v2034 = vrot.slane %v1235, 7
      %v2035 = vrot.slane %v1264, 7
      %v2036 = vrot.slane %v1293, 7
      %v2037 = vrot.slane %v1322, 7
      %v2038 = vrot.slane %v1351, 7
      %v2039 = vrot.slane %v1380, 7
      %v2040 = vrot.slane %v1409, 7
      %v2041 = vrot.slane %v1438, 7
      %s2058 = scalar_lea.vmem [#allocation2], 1536
      %2059 = vst [vmem:[%s2058] sm:$0xfe] %v2026
      %2060 = vst [vmem:[%s2058 + $0x8] sm:$0xfe] %v2027
      %2061 = vst [vmem:[%s2058 + $0x10] sm:$0xfe] %v2028
      %2062 = vst [vmem:[%s2058 + $0x18] sm:$0xfe] %v2029
      %2063 = vst [vmem:[%s2058 + $0x20] sm:$0xfe] %v2030
      %2064 = vst [vmem:[%s2058 + $0x28] sm:$0xfe] %v2031
      %2065 = vst [vmem:[%s2058 + $0x30] sm:$0xfe] %v2032
      %2066 = vst [vmem:[%s2058 + $0x38] sm:$0xfe] %v2033
      %2067 = vst [vmem:[%s2058 + $0x40] sm:$0xfe] %v2034
      %2068 = vst [vmem:[%s2058 + $0x48] sm:$0xfe] %v2035
      %2069 = vst [vmem:[%s2058 + $0x50] sm:$0xfe] %v2036
      %2070 = vst [vmem:[%s2058 + $0x58] sm:$0xfe] %v2037
      %2071 = vst [vmem:[%s2058 + $0x60] sm:$0xfe] %v2038
      %2072 = vst [vmem:[%s2058 + $0x68] sm:$0xfe] %v2039
      %2073 = vst [vmem:[%s2058 + $0x70] sm:$0xfe] %v2040
      %2074 = vst [vmem:[%s2058 + $0x78] sm:$0xfe] %v2041
      %2075 = vst [vmem:[%s2058 + $0x80] sm:$0x1] %v2026
      %2076 = vst [vmem:[%s2058 + $0x88] sm:$0x1] %v2027
      %2077 = vst [vmem:[%s2058 + $0x90] sm:$0x1] %v2028
      %2078 = vst [vmem:[%s2058 + $0x98] sm:$0x1] %v2029
      %2079 = vst [vmem:[%s2058 + $0xa0] sm:$0x1] %v2030
      %2080 = vst [vmem:[%s2058 + $0xa8] sm:$0x1] %v2031
      %2081 = vst [vmem:[%s2058 + $0xb0] sm:$0x1] %v2032
      %2082 = vst [vmem:[%s2058 + $0xb8] sm:$0x1] %v2033
      %2083 = vst [vmem:[%s2058 + $0xc0] sm:$0x1] %v2034
      %2084 = vst [vmem:[%s2058 + $0xc8] sm:$0x1] %v2035
      %2085 = vst [vmem:[%s2058 + $0xd0] sm:$0x1] %v2036
      %2086 = vst [vmem:[%s2058 + $0xd8] sm:$0x1] %v2037
      %2087 = vst [vmem:[%s2058 + $0xe0] sm:$0x1] %v2038
      %2088 = vst [vmem:[%s2058 + $0xe8] sm:$0x1] %v2039
      %2089 = vst [vmem:[%s2058 + $0xf0] sm:$0x1] %v2040
      %2090 = vst [vmem:[%s2058 + $0xf8] sm:$0x1] %v2041
      %v2107 = vrot.slane %v1006, 7
      %v2108 = vrot.slane %v1035, 7
      %v2109 = vrot.slane %v1064, 7
      %v2110 = vrot.slane %v1093, 7
      %v2111 = vrot.slane %v1122, 7
      %v2112 = vrot.slane %v1151, 7
      %v2113 = vrot.slane %v1180, 7
      %v2114 = vrot.slane %v1209, 7
      %v2115 = vrot.slane %v1238, 7
      %v2116 = vrot.slane %v1267, 7
      %v2117 = vrot.slane %v1296, 7
      %v2118 = vrot.slane %v1325, 7
      %v2119 = vrot.slane %v1354, 7
      %v2120 = vrot.slane %v1383, 7
      %v2121 = vrot.slane %v1412, 7
      %v2122 = vrot.slane %v1441, 7
      %s2139 = scalar_lea.vmem [#allocation2], 1792
      %2140 = vst [vmem:[%s2139] sm:$0xfe] %v2107
      %2141 = vst [vmem:[%s2139 + $0x8] sm:$0xfe] %v2108
      %2142 = vst [vmem:[%s2139 + $0x10] sm:$0xfe] %v2109
      %2143 = vst [vmem:[%s2139 + $0x18] sm:$0xfe] %v2110
      %2144 = vst [vmem:[%s2139 + $0x20] sm:$0xfe] %v2111
      %2145 = vst [vmem:[%s2139 + $0x28] sm:$0xfe] %v2112
      %2146 = vst [vmem:[%s2139 + $0x30] sm:$0xfe] %v2113
      %2147 = vst [vmem:[%s2139 + $0x38] sm:$0xfe] %v2114
      %2148 = vst [vmem:[%s2139 + $0x40] sm:$0xfe] %v2115
      %2149 = vst [vmem:[%s2139 + $0x48] sm:$0xfe] %v2116
      %2150 = vst [vmem:[%s2139 + $0x50] sm:$0xfe] %v2117
      %2151 = vst [vmem:[%s2139 + $0x58] sm:$0xfe] %v2118
      %2152 = vst [vmem:[%s2139 + $0x60] sm:$0xfe] %v2119
      %2153 = vst [vmem:[%s2139 + $0x68] sm:$0xfe] %v2120
      %2154 = vst [vmem:[%s2139 + $0x70] sm:$0xfe] %v2121
      %2155 = vst [vmem:[%s2139 + $0x78] sm:$0xfe] %v2122
      %2156 = vst [vmem:[%s2139 + $0x80] sm:$0x1] %v2107
      %2157 = vst [vmem:[%s2139 + $0x88] sm:$0x1] %v2108
      %2158 = vst [vmem:[%s2139 + $0x90] sm:$0x1] %v2109
      %2159 = vst [vmem:[%s2139 + $0x98] sm:$0x1] %v2110
      %2160 = vst [vmem:[%s2139 + $0xa0] sm:$0x1] %v2111
      %2161 = vst [vmem:[%s2139 + $0xa8] sm:$0x1] %v2112
      %2162 = vst [vmem:[%s2139 + $0xb0] sm:$0x1] %v2113
      %2163 = vst [vmem:[%s2139 + $0xb8] sm:$0x1] %v2114
      %2164 = vst [vmem:[%s2139 + $0xc0] sm:$0x1] %v2115
      %2165 = vst [vmem:[%s2139 + $0xc8] sm:$0x1] %v2116
      %2166 = vst [vmem:[%s2139 + $0xd0] sm:$0x1] %v2117
      %2167 = vst [vmem:[%s2139 + $0xd8] sm:$0x1] %v2118
      %2168 = vst [vmem:[%s2139 + $0xe0] sm:$0x1] %v2119
      %2169 = vst [vmem:[%s2139 + $0xe8] sm:$0x1] %v2120
      %2170 = vst [vmem:[%s2139 + $0xf0] sm:$0x1] %v2121
      %2171 = vst [vmem:[%s2139 + $0xf8] sm:$0x1] %v2122
      %v2188 = vrot.slane %v1008, 7
      %v2189 = vrot.slane %v1037, 7
      %v2190 = vrot.slane %v1066, 7
      %v2191 = vrot.slane %v1095, 7
      %v2192 = vrot.slane %v1124, 7
      %v2193 = vrot.slane %v1153, 7
      %v2194 = vrot.slane %v1182, 7
      %v2195 = vrot.slane %v1211, 7
      %v2196 = vrot.slane %v1240, 7
      %v2197 = vrot.slane %v1269, 7
      %v2198 = vrot.slane %v1298, 7
      %v2199 = vrot.slane %v1327, 7
      %v2200 = vrot.slane %v1356, 7
      %v2201 = vrot.slane %v1385, 7
      %v2202 = vrot.slane %v1414, 7
      %v2203 = vrot.slane %v1443, 7
      %s2220 = scalar_lea.vmem [#allocation2], 2048
      %2221 = vst [vmem:[%s2220] sm:$0xfe] %v2188
      %2222 = vst [vmem:[%s2220 + $0x8] sm:$0xfe] %v2189
      %2223 = vst [vmem:[%s2220 + $0x10] sm:$0xfe] %v2190
      %2224 = vst [vmem:[%s2220 + $0x18] sm:$0xfe] %v2191
      %2225 = vst [vmem:[%s2220 + $0x20] sm:$0xfe] %v2192
      %2226 = vst [vmem:[%s2220 + $0x28] sm:$0xfe] %v2193
      %2227 = vst [vmem:[%s2220 + $0x30] sm:$0xfe] %v2194
      %2228 = vst [vmem:[%s2220 + $0x38] sm:$0xfe] %v2195
      %2229 = vst [vmem:[%s2220 + $0x40] sm:$0xfe] %v2196
      %2230 = vst [vmem:[%s2220 + $0x48] sm:$0xfe] %v2197
      %2231 = vst [vmem:[%s2220 + $0x50] sm:$0xfe] %v2198
      %2232 = vst [vmem:[%s2220 + $0x58] sm:$0xfe] %v2199
      %2233 = vst [vmem:[%s2220 + $0x60] sm:$0xfe] %v2200
      %2234 = vst [vmem:[%s2220 + $0x68] sm:$0xfe] %v2201
      %2235 = vst [vmem:[%s2220 + $0x70] sm:$0xfe] %v2202
      %2236 = vst [vmem:[%s2220 + $0x78] sm:$0xfe] %v2203
      %2237 = vst [vmem:[%s2220 + $0x80] sm:$0x1] %v2188
      %2238 = vst [vmem:[%s2220 + $0x88] sm:$0x1] %v2189
      %2239 = vst [vmem:[%s2220 + $0x90] sm:$0x1] %v2190
      %2240 = vst [vmem:[%s2220 + $0x98] sm:$0x1] %v2191
      %2241 = vst [vmem:[%s2220 + $0xa0] sm:$0x1] %v2192
      %2242 = vst [vmem:[%s2220 + $0xa8] sm:$0x1] %v2193
      %2243 = vst [vmem:[%s2220 + $0xb0] sm:$0x1] %v2194
      %2244 = vst [vmem:[%s2220 + $0xb8] sm:$0x1] %v2195
      %2245 = vst [vmem:[%s2220 + $0xc0] sm:$0x1] %v2196
      %2246 = vst [vmem:[%s2220 + $0xc8] sm:$0x1] %v2197
      %2247 = vst [vmem:[%s2220 + $0xd0] sm:$0x1] %v2198
      %2248 = vst [vmem:[%s2220 + $0xd8] sm:$0x1] %v2199
      %2249 = vst [vmem:[%s2220 + $0xe0] sm:$0x1] %v2200
      %2250 = vst [vmem:[%s2220 + $0xe8] sm:$0x1] %v2201
      %2251 = vst [vmem:[%s2220 + $0xf0] sm:$0x1] %v2202
      %2252 = vst [vmem:[%s2220 + $0xf8] sm:$0x1] %v2203
      %v2253 = vld [vmem:[%s1510 + $0x28] sm:$0xfe]
      %v2254 = vld [vmem:[%s1510 + $0xa8] sm:$0x1]
      %v2255 = vld [vmem:[%s1510 + $0x128] sm:$0xfe]
      %v2256 = vld [vmem:[%s1510 + $0x1a8] sm:$0x1]
      %v2257 = vld [vmem:[%s1510 + $0x228] sm:$0xfe]
      %v2258 = vld [vmem:[%s1510 + $0x2a8] sm:$0x1]
      %v2259 = vld [vmem:[%s1510 + $0x328] sm:$0xfe]
      %v2260 = vld [vmem:[%s1510 + $0x3a8] sm:$0x1]
      %v2261 = vld [vmem:[%s1510 + $0x428] sm:$0xfe]
      %v2262 = vld [vmem:[%s1510 + $0x4a8] sm:$0x1]
      %v2263 = vld [vmem:[%s1510 + $0x528] sm:$0xfe]
      %v2264 = vld [vmem:[%s1510 + $0x5a8] sm:$0x1]
      %v2265 = vld [vmem:[%s1510 + $0x628] sm:$0xfe]
      %v2266 = vld [vmem:[%s1510 + $0x6a8] sm:$0x1]
      %v2267 = vld [vmem:[%s1510 + $0x728] sm:$0xfe]
      %v2268 = vld [vmem:[%s1510 + $0x7a8] sm:$0x1]
      %v2269 = vadd.f32 %v2253, 0.0
      %v2270 = vadd.f32 %v2254, 0.0
      %v2271 = vadd.f32 %v2255, 0.0
      %v2272 = vadd.f32 %v2256, 0.0
      %v2273 = vadd.f32 %v2257, 0.0
      %v2274 = vadd.f32 %v2258, 0.0
      %v2275 = vadd.f32 %v2259, 0.0
      %v2276 = vadd.f32 %v2260, 0.0
      %v2277 = vadd.f32 %v2261, 0.0
      %v2278 = vadd.f32 %v2262, 0.0
      %v2279 = vadd.f32 %v2263, 0.0
      %v2280 = vadd.f32 %v2264, 0.0
      %v2281 = vadd.f32 %v2265, 0.0
      %v2282 = vadd.f32 %v2266, 0.0
      %v2283 = vadd.f32 %v2267, 0.0
      %v2284 = vadd.f32 %v2268, 0.0
      %v2285 = vld [vmem:[%s1510 + $0x38] sm:$0xff]
      %v2286 = vld [vmem:[%s1510 + $0x138] sm:$0xff]
      %v2287 = vld [vmem:[%s1510 + $0x238] sm:$0xff]
      %v2288 = vld [vmem:[%s1510 + $0x338] sm:$0xff]
      %v2289 = vld [vmem:[%s1510 + $0x438] sm:$0xff]
      %v2290 = vld [vmem:[%s1510 + $0x538] sm:$0xff]
      %v2291 = vld [vmem:[%s1510 + $0x638] sm:$0xff]
      %v2292 = vld [vmem:[%s1510 + $0x738] sm:$0xff]
      %v2301 = vrot.slane %v2285, 7
      %v2302 = vrot.slane %v2286, 7
      %v2303 = vrot.slane %v2287, 7
      %v2304 = vrot.slane %v2288, 7
      %v2305 = vrot.slane %v2289, 7
      %v2306 = vrot.slane %v2290, 7
      %v2307 = vrot.slane %v2291, 7
      %v2308 = vrot.slane %v2292, 7
      %v2317 = vadd.f32 %v2269, %v2301
      %v2318 = vadd.f32 %v2270, %v2301
      %v2319 = vadd.f32 %v2271, %v2302
      %v2320 = vadd.f32 %v2272, %v2302
      %v2321 = vadd.f32 %v2273, %v2303
      %v2322 = vadd.f32 %v2274, %v2303
      %v2323 = vadd.f32 %v2275, %v2304
      %v2324 = vadd.f32 %v2276, %v2304
      %v2325 = vadd.f32 %v2277, %v2305
      %v2326 = vadd.f32 %v2278, %v2305
      %v2327 = vadd.f32 %v2279, %v2306
      %v2328 = vadd.f32 %v2280, %v2306
      %v2329 = vadd.f32 %v2281, %v2307
      %v2330 = vadd.f32 %v2282, %v2307
      %v2331 = vadd.f32 %v2283, %v2308
      %v2332 = vadd.f32 %v2284, %v2308
      %v2333 = vld [vmem:[#allocation2 + $0x68] sm:$0xfe]
      %v2334 = vld [vmem:[#allocation2 + $0xe8] sm:$0x1]
      %v2335 = vld [vmem:[#allocation2 + $0x168] sm:$0xfe]
      %v2336 = vld [vmem:[#allocation2 + $0x1e8] sm:$0x1]
      %v2337 = vld [vmem:[#allocation2 + $0x268] sm:$0xfe]
      %v2338 = vld [vmem:[#allocation2 + $0x2e8] sm:$0x1]
      %v2339 = vld [vmem:[#allocation2 + $0x368] sm:$0xfe]
      %v2340 = vld [vmem:[#allocation2 + $0x3e8] sm:$0x1]
      %v2341 = vld [vmem:[#allocation2 + $0x468] sm:$0xfe]
      %v2342 = vld [vmem:[#allocation2 + $0x4e8] sm:$0x1]
      %v2343 = vld [vmem:[#allocation2 + $0x568] sm:$0xfe]
      %v2344 = vld [vmem:[#allocation2 + $0x5e8] sm:$0x1]
      %v2345 = vld [vmem:[#allocation2 + $0x668] sm:$0xfe]
      %v2346 = vld [vmem:[#allocation2 + $0x6e8] sm:$0x1]
      %v2347 = vld [vmem:[#allocation2 + $0x768] sm:$0xfe]
      %v2348 = vld [vmem:[#allocation2 + $0x7e8] sm:$0x1]
      %v2349 = vadd.f32 %v2317, %v2333
      %v2350 = vadd.f32 %v2318, %v2334
      %v2351 = vadd.f32 %v2319, %v2335
      %v2352 = vadd.f32 %v2320, %v2336
      %v2353 = vadd.f32 %v2321, %v2337
      %v2354 = vadd.f32 %v2322, %v2338
      %v2355 = vadd.f32 %v2323, %v2339
      %v2356 = vadd.f32 %v2324, %v2340
      %v2357 = vadd.f32 %v2325, %v2341
      %v2358 = vadd.f32 %v2326, %v2342
      %v2359 = vadd.f32 %v2327, %v2343
      %v2360 = vadd.f32 %v2328, %v2344
      %v2361 = vadd.f32 %v2329, %v2345
      %v2362 = vadd.f32 %v2330, %v2346
      %v2363 = vadd.f32 %v2331, %v2347
      %v2364 = vadd.f32 %v2332, %v2348
      %v2365 = vld [vmem:[#allocation2 + $0x78] sm:$0xff]
      %v2366 = vld [vmem:[#allocation2 + $0x178] sm:$0xff]
      %v2367 = vld [vmem:[#allocation2 + $0x278] sm:$0xff]
      %v2368 = vld [vmem:[#allocation2 + $0x378] sm:$0xff]
      %v2369 = vld [vmem:[#allocation2 + $0x478] sm:$0xff]
      %v2370 = vld [vmem:[#allocation2 + $0x578] sm:$0xff]
      %v2371 = vld [vmem:[#allocation2 + $0x678] sm:$0xff]
      %v2372 = vld [vmem:[#allocation2 + $0x778] sm:$0xff]
      %v2381 = vrot.slane %v2365, 7
      %v2382 = vrot.slane %v2366, 7
      %v2383 = vrot.slane %v2367, 7
      %v2384 = vrot.slane %v2368, 7
      %v2385 = vrot.slane %v2369, 7
      %v2386 = vrot.slane %v2370, 7
      %v2387 = vrot.slane %v2371, 7
      %v2388 = vrot.slane %v2372, 7
      %v2397 = vadd.f32 %v2349, %v2381
      %v2398 = vadd.f32 %v2350, %v2381
      %v2399 = vadd.f32 %v2351, %v2382
      %v2400 = vadd.f32 %v2352, %v2382
      %v2401 = vadd.f32 %v2353, %v2383
      %v2402 = vadd.f32 %v2354, %v2383
      %v2403 = vadd.f32 %v2355, %v2384
      %v2404 = vadd.f32 %v2356, %v2384
      %v2405 = vadd.f32 %v2357, %v2385
      %v2406 = vadd.f32 %v2358, %v2385
      %v2407 = vadd.f32 %v2359, %v2386
      %v2408 = vadd.f32 %v2360, %v2386
      %v2409 = vadd.f32 %v2361, %v2387
      %v2410 = vadd.f32 %v2362, %v2387
      %v2411 = vadd.f32 %v2363, %v2388
      %v2412 = vadd.f32 %v2364, %v2388
      %v2413 = vtanh.pop %v2397
      %v2414 = vtanh.pop %v2398
      %v2415 = vtanh.pop %v2399
      %v2416 = vtanh.pop %v2400
      %v2417 = vtanh.pop %v2401
      %v2418 = vtanh.pop %v2402
      %v2419 = vtanh.pop %v2403
      %v2420 = vtanh.pop %v2404
      %v2421 = vtanh.pop %v2405
      %v2422 = vtanh.pop %v2406
      %v2423 = vtanh.pop %v2407
      %v2424 = vtanh.pop %v2408
      %v2425 = vtanh.pop %v2409
      %v2426 = vtanh.pop %v2410
      %v2427 = vtanh.pop %v2411
      %v2428 = vtanh.pop %v2412
      %2429 = vst [vmem:[%s172 - $0x1] sm:$0xfe] %v2413
      %2430 = vst [vmem:[%s172 + $0x7] sm:$0x1] %v2414
      %2431 = vst [vmem:[%s172 + $0x7] sm:$0xfe] %v2415
      %2432 = vst [vmem:[%s172 + $0xf] sm:$0x1] %v2416
      %2433 = vst [vmem:[%s172 + $0xf] sm:$0xfe] %v2417
      %2434 = vst [vmem:[%s172 + $0x17] sm:$0x1] %v2418
      %2435 = vst [vmem:[%s172 + $0x17] sm:$0xfe] %v2419
      %2436 = vst [vmem:[%s172 + $0x1f] sm:$0x1] %v2420
      %2437 = vst [vmem:[%s172 + $0x1f] sm:$0xfe] %v2421
      %2438 = vst [vmem:[%s172 + $0x27] sm:$0x1] %v2422
      %2439 = vst [vmem:[%s172 + $0x27] sm:$0xfe] %v2423
      %2440 = vst [vmem:[%s172 + $0x2f] sm:$0x1] %v2424
      %2441 = vst [vmem:[%s172 + $0x2f] sm:$0xfe] %v2425
      %2442 = vst [vmem:[%s172 + $0x37] sm:$0x1] %v2426
      %2443 = vst [vmem:[%s172 + $0x37] sm:$0xfe] %v2427
      %2444 = vst [vmem:[%s172 + $0x3f] sm:$0x1] %v2428
      %v2445 = vld [vmem:[%s1510 + $0x20] sm:$0xfc]
      %v2446 = vld [vmem:[%s1510 + $0xa0] sm:$0x3]
      %v2447 = vld [vmem:[%s1510 + $0x120] sm:$0xfc]
      %v2448 = vld [vmem:[%s1510 + $0x1a0] sm:$0x3]
      %v2449 = vld [vmem:[%s1510 + $0x220] sm:$0xfc]
      %v2450 = vld [vmem:[%s1510 + $0x2a0] sm:$0x3]
      %v2451 = vld [vmem:[%s1510 + $0x320] sm:$0xfc]
      %v2452 = vld [vmem:[%s1510 + $0x3a0] sm:$0x3]
      %v2453 = vld [vmem:[%s1510 + $0x420] sm:$0xfc]
      %v2454 = vld [vmem:[%s1510 + $0x4a0] sm:$0x3]
      %v2455 = vld [vmem:[%s1510 + $0x520] sm:$0xfc]
      %v2456 = vld [vmem:[%s1510 + $0x5a0] sm:$0x3]
      %v2457 = vld [vmem:[%s1510 + $0x620] sm:$0xfc]
      %v2458 = vld [vmem:[%s1510 + $0x6a0] sm:$0x3]
      %v2459 = vld [vmem:[%s1510 + $0x720] sm:$0xfc]
      %v2460 = vld [vmem:[%s1510 + $0x7a0] sm:$0x3]
      %v2461 = vadd.f32 %v2445, 0.0
      %v2462 = vadd.f32 %v2446, 0.0
      %v2463 = vadd.f32 %v2447, 0.0
      %v2464 = vadd.f32 %v2448, 0.0
      %v2465 = vadd.f32 %v2449, 0.0
      %v2466 = vadd.f32 %v2450, 0.0
      %v2467 = vadd.f32 %v2451, 0.0
      %v2468 = vadd.f32 %v2452, 0.0
      %v2469 = vadd.f32 %v2453, 0.0
      %v2470 = vadd.f32 %v2454, 0.0
      %v2471 = vadd.f32 %v2455, 0.0
      %v2472 = vadd.f32 %v2456, 0.0
      %v2473 = vadd.f32 %v2457, 0.0
      %v2474 = vadd.f32 %v2458, 0.0
      %v2475 = vadd.f32 %v2459, 0.0
      %v2476 = vadd.f32 %v2460, 0.0
      %v2477 = vld [vmem:[%s1510 + $0x30] sm:$0xfe]
      %v2478 = vld [vmem:[%s1510 + $0xb0] sm:$0x1]
      %v2479 = vld [vmem:[%s1510 + $0x130] sm:$0xfe]
      %v2480 = vld [vmem:[%s1510 + $0x1b0] sm:$0x1]
      %v2481 = vld [vmem:[%s1510 + $0x230] sm:$0xfe]
      %v2482 = vld [vmem:[%s1510 + $0x2b0] sm:$0x1]
      %v2483 = vld [vmem:[%s1510 + $0x330] sm:$0xfe]
      %v2484 = vld [vmem:[%s1510 + $0x3b0] sm:$0x1]
      %v2485 = vld [vmem:[%s1510 + $0x430] sm:$0xfe]
      %v2486 = vld [vmem:[%s1510 + $0x4b0] sm:$0x1]
      %v2487 = vld [vmem:[%s1510 + $0x530] sm:$0xfe]
      %v2488 = vld [vmem:[%s1510 + $0x5b0] sm:$0x1]
      %v2489 = vld [vmem:[%s1510 + $0x630] sm:$0xfe]
      %v2490 = vld [vmem:[%s1510 + $0x6b0] sm:$0x1]
      %v2491 = vld [vmem:[%s1510 + $0x730] sm:$0xfe]
      %v2492 = vld [vmem:[%s1510 + $0x7b0] sm:$0x1]
      %vm2509 = vcmask 1040384
      %v2510 = vrot.slane %v2477, 7
      %v2511 = vrot.slane %v2478, 7
      %v2512 = vsel %vm2509, %v2510, %v2511
      %v2513 = vrot.slane %v2479, 7
      %v2514 = vrot.slane %v2480, 7
      %v2515 = vsel %vm2509, %v2513, %v2514
      %v2516 = vrot.slane %v2481, 7
      %v2517 = vrot.slane %v2482, 7
      %v2518 = vsel %vm2509, %v2516, %v2517
      %v2519 = vrot.slane %v2483, 7
      %v2520 = vrot.slane %v2484, 7
      %v2521 = vsel %vm2509, %v2519, %v2520
      %v2522 = vrot.slane %v2485, 7
      %v2523 = vrot.slane %v2486, 7
      %v2524 = vsel %vm2509, %v2522, %v2523
      %v2525 = vrot.slane %v2487, 7
      %v2526 = vrot.slane %v2488, 7
      %v2527 = vsel %vm2509, %v2525, %v2526
      %v2528 = vrot.slane %v2489, 7
      %v2529 = vrot.slane %v2490, 7
      %v2530 = vsel %vm2509, %v2528, %v2529
      %v2531 = vrot.slane %v2491, 7
      %v2532 = vrot.slane %v2492, 7
      %v2533 = vsel %vm2509, %v2531, %v2532
      %v2550 = vadd.f32 %v2461, %v2510
      %v2551 = vadd.f32 %v2462, %v2512
      %v2552 = vadd.f32 %v2463, %v2513
      %v2553 = vadd.f32 %v2464, %v2515
      %v2554 = vadd.f32 %v2465, %v2516
      %v2555 = vadd.f32 %v2466, %v2518
      %v2556 = vadd.f32 %v2467, %v2519
      %v2557 = vadd.f32 %v2468, %v2521
      %v2558 = vadd.f32 %v2469, %v2522
      %v2559 = vadd.f32 %v2470, %v2524
      %v2560 = vadd.f32 %v2471, %v2525
      %v2561 = vadd.f32 %v2472, %v2527
      %v2562 = vadd.f32 %v2473, %v2528
      %v2563 = vadd.f32 %v2474, %v2530
      %v2564 = vadd.f32 %v2475, %v2531
      %v2565 = vadd.f32 %v2476, %v2533
      %v2566 = vld [vmem:[#allocation2 + $0x60] sm:$0xfc]
      %v2567 = vld [vmem:[#allocation2 + $0xe0] sm:$0x3]
      %v2568 = vld [vmem:[#allocation2 + $0x160] sm:$0xfc]
      %v2569 = vld [vmem:[#allocation2 + $0x1e0] sm:$0x3]
      %v2570 = vld [vmem:[#allocation2 + $0x260] sm:$0xfc]
      %v2571 = vld [vmem:[#allocation2 + $0x2e0] sm:$0x3]
      %v2572 = vld [vmem:[#allocation2 + $0x360] sm:$0xfc]
      %v2573 = vld [vmem:[#allocation2 + $0x3e0] sm:$0x3]
      %v2574 = vld [vmem:[#allocation2 + $0x460] sm:$0xfc]
      %v2575 = vld [vmem:[#allocation2 + $0x4e0] sm:$0x3]
      %v2576 = vld [vmem:[#allocation2 + $0x560] sm:$0xfc]
      %v2577 = vld [vmem:[#allocation2 + $0x5e0] sm:$0x3]
      %v2578 = vld [vmem:[#allocation2 + $0x660] sm:$0xfc]
      %v2579 = vld [vmem:[#allocation2 + $0x6e0] sm:$0x3]
      %v2580 = vld [vmem:[#allocation2 + $0x760] sm:$0xfc]
      %v2581 = vld [vmem:[#allocation2 + $0x7e0] sm:$0x3]
      %v2582 = vadd.f32 %v2550, %v2566
      %v2583 = vadd.f32 %v2551, %v2567
      %v2584 = vadd.f32 %v2552, %v2568
      %v2585 = vadd.f32 %v2553, %v2569
      %v2586 = vadd.f32 %v2554, %v2570
      %v2587 = vadd.f32 %v2555, %v2571
      %v2588 = vadd.f32 %v2556, %v2572
      %v2589 = vadd.f32 %v2557, %v2573
      %v2590 = vadd.f32 %v2558, %v2574
      %v2591 = vadd.f32 %v2559, %v2575
      %v2592 = vadd.f32 %v2560, %v2576
      %v2593 = vadd.f32 %v2561, %v2577
      %v2594 = vadd.f32 %v2562, %v2578
      %v2595 = vadd.f32 %v2563, %v2579
      %v2596 = vadd.f32 %v2564, %v2580
      %v2597 = vadd.f32 %v2565, %v2581
      %v2598 = vld [vmem:[#allocation2 + $0x70] sm:$0xfe]
      %v2599 = vld [vmem:[#allocation2 + $0xf0] sm:$0x1]
      %v2600 = vld [vmem:[#allocation2 + $0x170] sm:$0xfe]
      %v2601 = vld [vmem:[#allocation2 + $0x1f0] sm:$0x1]
      %v2602 = vld [vmem:[#allocation2 + $0x270] sm:$0xfe]
      %v2603 = vld [vmem:[#allocation2 + $0x2f0] sm:$0x1]
      %v2604 = vld [vmem:[#allocation2 + $0x370] sm:$0xfe]
      %v2605 = vld [vmem:[#allocation2 + $0x3f0] sm:$0x1]
      %v2606 = vld [vmem:[#allocation2 + $0x470] sm:$0xfe]
      %v2607 = vld [vmem:[#allocation2 + $0x4f0] sm:$0x1]
      %v2608 = vld [vmem:[#allocation2 + $0x570] sm:$0xfe]
      %v2609 = vld [vmem:[#allocation2 + $0x5f0] sm:$0x1]
      %v2610 = vld [vmem:[#allocation2 + $0x670] sm:$0xfe]
      %v2611 = vld [vmem:[#allocation2 + $0x6f0] sm:$0x1]
      %v2612 = vld [vmem:[#allocation2 + $0x770] sm:$0xfe]
      %v2613 = vld [vmem:[#allocation2 + $0x7f0] sm:$0x1]
      %v2630 = vrot.slane %v2598, 7
      %v2631 = vrot.slane %v2599, 7
      %v2632 = vsel %vm2509, %v2630, %v2631
      %v2633 = vrot.slane %v2600, 7
      %v2634 = vrot.slane %v2601, 7
      %v2635 = vsel %vm2509, %v2633, %v2634
      %v2636 = vrot.slane %v2602, 7
      %v2637 = vrot.slane %v2603, 7
      %v2638 = vsel %vm2509, %v2636, %v2637
      %v2639 = vrot.slane %v2604, 7
      %v2640 = vrot.slane %v2605, 7
      %v2641 = vsel %vm2509, %v2639, %v2640
      %v2642 = vrot.slane %v2606, 7
      %v2643 = vrot.slane %v2607, 7
      %v2644 = vsel %vm2509, %v2642, %v2643
      %v2645 = vrot.slane %v2608, 7
      %v2646 = vrot.slane %v2609, 7
      %v2647 = vsel %vm2509, %v2645, %v2646
      %v2648 = vrot.slane %v2610, 7
      %v2649 = vrot.slane %v2611, 7
      %v2650 = vsel %vm2509, %v2648, %v2649
      %v2651 = vrot.slane %v2612, 7
      %v2652 = vrot.slane %v2613, 7
      %v2653 = vsel %vm2509, %v2651, %v2652
      %v2670 = vadd.f32 %v2582, %v2630
      %v2671 = vadd.f32 %v2583, %v2632
      %v2672 = vadd.f32 %v2584, %v2633
      %v2673 = vadd.f32 %v2585, %v2635
      %v2674 = vadd.f32 %v2586, %v2636
      %v2675 = vadd.f32 %v2587, %v2638
      %v2676 = vadd.f32 %v2588, %v2639
      %v2677 = vadd.f32 %v2589, %v2641
      %v2678 = vadd.f32 %v2590, %v2642
      %v2679 = vadd.f32 %v2591, %v2644
      %v2680 = vadd.f32 %v2592, %v2645
      %v2681 = vadd.f32 %v2593, %v2647
      %v2682 = vadd.f32 %v2594, %v2648
      %v2683 = vadd.f32 %v2595, %v2650
      %v2684 = vadd.f32 %v2596, %v2651
      %v2685 = vadd.f32 %v2597, %v2653
      %v2686 = vtanh.pop %v2670
      %v2687 = vtanh.pop %v2671
      %v2688 = vtanh.pop %v2672
      %v2689 = vtanh.pop %v2673
      %v2690 = vtanh.pop %v2674
      %v2691 = vtanh.pop %v2675
      %v2692 = vtanh.pop %v2676
      %v2693 = vtanh.pop %v2677
      %v2694 = vtanh.pop %v2678
      %v2695 = vtanh.pop %v2679
      %v2696 = vtanh.pop %v2680
      %v2697 = vtanh.pop %v2681
      %v2698 = vtanh.pop %v2682
      %v2699 = vtanh.pop %v2683
      %v2700 = vtanh.pop %v2684
      %v2701 = vtanh.pop %v2685
      %s2702 = scalar_lea.vmem %s172, 64
      %2703 = vst [vmem:[%s2702 - $0x2] sm:$0xfc] %v2686
      %2704 = vst [vmem:[%s2702 + $0x6] sm:$0x3] %v2687
      %2705 = vst [vmem:[%s2702 + $0x6] sm:$0xfc] %v2688
      %2706 = vst [vmem:[%s2702 + $0xe] sm:$0x3] %v2689
      %2707 = vst [vmem:[%s2702 + $0xe] sm:$0xfc] %v2690
      %2708 = vst [vmem:[%s2702 + $0x16] sm:$0x3] %v2691
      %2709 = vst [vmem:[%s2702 + $0x16] sm:$0xfc] %v2692
      %2710 = vst [vmem:[%s2702 + $0x1e] sm:$0x3] %v2693
      %2711 = vst [vmem:[%s2702 + $0x1e] sm:$0xfc] %v2694
      %2712 = vst [vmem:[%s2702 + $0x26] sm:$0x3] %v2695
      %2713 = vst [vmem:[%s2702 + $0x26] sm:$0xfc] %v2696
      %2714 = vst [vmem:[%s2702 + $0x2e] sm:$0x3] %v2697
      %2715 = vst [vmem:[%s2702 + $0x2e] sm:$0xfc] %v2698
      %2716 = vst [vmem:[%s2702 + $0x36] sm:$0x3] %v2699
      %2717 = vst [vmem:[%s2702 + $0x36] sm:$0xfc] %v2700
      %2718 = vst [vmem:[%s2702 + $0x3e] sm:$0x3] %v2701
      %v2719 = vld [vmem:[%s1734 + $0x8] sm:$0xfe]
      %v2720 = vld [vmem:[%s1734 + $0x88] sm:$0x1]
      %v2721 = vld [vmem:[%s1734 + $0x108] sm:$0xfe]
      %v2722 = vld [vmem:[%s1734 + $0x188] sm:$0x1]
      %v2723 = vld [vmem:[%s1734 + $0x208] sm:$0xfe]
      %v2724 = vld [vmem:[%s1734 + $0x288] sm:$0x1]
      %v2725 = vld [vmem:[%s1734 + $0x308] sm:$0xfe]
      %v2726 = vld [vmem:[%s1734 + $0x388] sm:$0x1]
      %v2727 = vld [vmem:[%s1734 + $0x408] sm:$0xfe]
      %v2728 = vld [vmem:[%s1734 + $0x488] sm:$0x1]
      %v2729 = vld [vmem:[%s1734 + $0x508] sm:$0xfe]
      %v2730 = vld [vmem:[%s1734 + $0x588] sm:$0x1]
      %v2731 = vld [vmem:[%s1734 + $0x608] sm:$0xfe]
      %v2732 = vld [vmem:[%s1734 + $0x688] sm:$0x1]
      %v2733 = vld [vmem:[%s1734 + $0x708] sm:$0xfe]
      %v2734 = vld [vmem:[%s1734 + $0x788] sm:$0x1]
      %v2735 = vadd.f32 %v2719, 0.0
      %v2736 = vadd.f32 %v2720, 0.0
      %v2737 = vadd.f32 %v2721, 0.0
      %v2738 = vadd.f32 %v2722, 0.0
      %v2739 = vadd.f32 %v2723, 0.0
      %v2740 = vadd.f32 %v2724, 0.0
      %v2741 = vadd.f32 %v2725, 0.0
      %v2742 = vadd.f32 %v2726, 0.0
      %v2743 = vadd.f32 %v2727, 0.0
      %v2744 = vadd.f32 %v2728, 0.0
      %v2745 = vadd.f32 %v2729, 0.0
      %v2746 = vadd.f32 %v2730, 0.0
      %v2747 = vadd.f32 %v2731, 0.0
      %v2748 = vadd.f32 %v2732, 0.0
      %v2749 = vadd.f32 %v2733, 0.0
      %v2750 = vadd.f32 %v2734, 0.0
      %v2751 = vld [vmem:[%s1734 + $0x18] sm:$0xff]
      %v2752 = vld [vmem:[%s1734 + $0x118] sm:$0xff]
      %v2753 = vld [vmem:[%s1734 + $0x218] sm:$0xff]
      %v2754 = vld [vmem:[%s1734 + $0x318] sm:$0xff]
      %v2755 = vld [vmem:[%s1734 + $0x418] sm:$0xff]
      %v2756 = vld [vmem:[%s1734 + $0x518] sm:$0xff]
      %v2757 = vld [vmem:[%s1734 + $0x618] sm:$0xff]
      %v2758 = vld [vmem:[%s1734 + $0x718] sm:$0xff]
      %v2767 = vrot.slane %v2751, 7
      %v2768 = vrot.slane %v2752, 7
      %v2769 = vrot.slane %v2753, 7
      %v2770 = vrot.slane %v2754, 7
      %v2771 = vrot.slane %v2755, 7
      %v2772 = vrot.slane %v2756, 7
      %v2773 = vrot.slane %v2757, 7
      %v2774 = vrot.slane %v2758, 7
      %v2783 = vadd.f32 %v2735, %v2767
      %v2784 = vadd.f32 %v2736, %v2767
      %v2785 = vadd.f32 %v2737, %v2768
      %v2786 = vadd.f32 %v2738, %v2768
      %v2787 = vadd.f32 %v2739, %v2769
      %v2788 = vadd.f32 %v2740, %v2769
      %v2789 = vadd.f32 %v2741, %v2770
      %v2790 = vadd.f32 %v2742, %v2770
      %v2791 = vadd.f32 %v2743, %v2771
      %v2792 = vadd.f32 %v2744, %v2771
      %v2793 = vadd.f32 %v2745, %v2772
      %v2794 = vadd.f32 %v2746, %v2772
      %v2795 = vadd.f32 %v2747, %v2773
      %v2796 = vadd.f32 %v2748, %v2773
      %v2797 = vadd.f32 %v2749, %v2774
      %v2798 = vadd.f32 %v2750, %v2774
      %v2799 = vld [vmem:[%s1510 + $0x48] sm:$0xfe]
      %v2800 = vld [vmem:[%s1510 + $0xc8] sm:$0x1]
      %v2801 = vld [vmem:[%s1510 + $0x148] sm:$0xfe]
      %v2802 = vld [vmem:[%s1510 + $0x1c8] sm:$0x1]
      %v2803 = vld [vmem:[%s1510 + $0x248] sm:$0xfe]
      %v2804 = vld [vmem:[%s1510 + $0x2c8] sm:$0x1]
      %v2805 = vld [vmem:[%s1510 + $0x348] sm:$0xfe]
      %v2806 = vld [vmem:[%s1510 + $0x3c8] sm:$0x1]
      %v2807 = vld [vmem:[%s1510 + $0x448] sm:$0xfe]
      %v2808 = vld [vmem:[%s1510 + $0x4c8] sm:$0x1]
      %v2809 = vld [vmem:[%s1510 + $0x548] sm:$0xfe]
      %v2810 = vld [vmem:[%s1510 + $0x5c8] sm:$0x1]
      %v2811 = vld [vmem:[%s1510 + $0x648] sm:$0xfe]
      %v2812 = vld [vmem:[%s1510 + $0x6c8] sm:$0x1]
      %v2813 = vld [vmem:[%s1510 + $0x748] sm:$0xfe]
      %v2814 = vld [vmem:[%s1510 + $0x7c8] sm:$0x1]
      %v2815 = vadd.f32 %v2783, %v2799
      %v2816 = vadd.f32 %v2784, %v2800
      %v2817 = vadd.f32 %v2785, %v2801
      %v2818 = vadd.f32 %v2786, %v2802
      %v2819 = vadd.f32 %v2787, %v2803
      %v2820 = vadd.f32 %v2788, %v2804
      %v2821 = vadd.f32 %v2789, %v2805
      %v2822 = vadd.f32 %v2790, %v2806
      %v2823 = vadd.f32 %v2791, %v2807
      %v2824 = vadd.f32 %v2792, %v2808
      %v2825 = vadd.f32 %v2793, %v2809
      %v2826 = vadd.f32 %v2794, %v2810
      %v2827 = vadd.f32 %v2795, %v2811
      %v2828 = vadd.f32 %v2796, %v2812
      %v2829 = vadd.f32 %v2797, %v2813
      %v2830 = vadd.f32 %v2798, %v2814
      %v2831 = vld [vmem:[%s1510 + $0x58] sm:$0xff]
      %v2832 = vld [vmem:[%s1510 + $0x158] sm:$0xff]
      %v2833 = vld [vmem:[%s1510 + $0x258] sm:$0xff]
      %v2834 = vld [vmem:[%s1510 + $0x358] sm:$0xff]
      %v2835 = vld [vmem:[%s1510 + $0x458] sm:$0xff]
      %v2836 = vld [vmem:[%s1510 + $0x558] sm:$0xff]
      %v2837 = vld [vmem:[%s1510 + $0x658] sm:$0xff]
      %v2838 = vld [vmem:[%s1510 + $0x758] sm:$0xff]
      %v2847 = vrot.slane %v2831, 7
      %v2848 = vrot.slane %v2832, 7
      %v2849 = vrot.slane %v2833, 7
      %v2850 = vrot.slane %v2834, 7
      %v2851 = vrot.slane %v2835, 7
      %v2852 = vrot.slane %v2836, 7
      %v2853 = vrot.slane %v2837, 7
      %v2854 = vrot.slane %v2838, 7
      %v2863 = vadd.f32 %v2815, %v2847
      %v2864 = vadd.f32 %v2816, %v2847
      %v2865 = vadd.f32 %v2817, %v2848
      %v2866 = vadd.f32 %v2818, %v2848
      %v2867 = vadd.f32 %v2819, %v2849
      %v2868 = vadd.f32 %v2820, %v2849
      %v2869 = vadd.f32 %v2821, %v2850
      %v2870 = vadd.f32 %v2822, %v2850
      %v2871 = vadd.f32 %v2823, %v2851
      %v2872 = vadd.f32 %v2824, %v2851
      %v2873 = vadd.f32 %v2825, %v2852
      %v2874 = vadd.f32 %v2826, %v2852
      %v2875 = vadd.f32 %v2827, %v2853
      %v2876 = vadd.f32 %v2828, %v2853
      %v2877 = vadd.f32 %v2829, %v2854
      %v2878 = vadd.f32 %v2830, %v2854
      %v2879 = vtanh.pop %v2863
      %v2880 = vtanh.pop %v2864
      %v2881 = vtanh.pop %v2865
      %v2882 = vtanh.pop %v2866
      %v2883 = vtanh.pop %v2867
      %v2884 = vtanh.pop %v2868
      %v2885 = vtanh.pop %v2869
      %v2886 = vtanh.pop %v2870
      %v2887 = vtanh.pop %v2871
      %v2888 = vtanh.pop %v2872
      %v2889 = vtanh.pop %v2873
      %v2890 = vtanh.pop %v2874
      %v2891 = vtanh.pop %v2875
      %v2892 = vtanh.pop %v2876
      %v2893 = vtanh.pop %v2877
      %v2894 = vtanh.pop %v2878
      %s2895 = scalar_lea.vmem %s172, 128
      %2896 = vst [vmem:[%s2895 - $0x1] sm:$0xfe] %v2879
      %2897 = vst [vmem:[%s2895 + $0x7] sm:$0x1] %v2880
      %2898 = vst [vmem:[%s2895 + $0x7] sm:$0xfe] %v2881
      %2899 = vst [vmem:[%s2895 + $0xf] sm:$0x1] %v2882
      %2900 = vst [vmem:[%s2895 + $0xf] sm:$0xfe] %v2883
      %2901 = vst [vmem:[%s2895 + $0x17] sm:$0x1] %v2884
      %2902 = vst [vmem:[%s2895 + $0x17] sm:$0xfe] %v2885
      %2903 = vst [vmem:[%s2895 + $0x1f] sm:$0x1] %v2886
      %2904 = vst [vmem:[%s2895 + $0x1f] sm:$0xfe] %v2887
      %2905 = vst [vmem:[%s2895 + $0x27] sm:$0x1] %v2888
      %2906 = vst [vmem:[%s2895 + $0x27] sm:$0xfe] %v2889
      %2907 = vst [vmem:[%s2895 + $0x2f] sm:$0x1] %v2890
      %2908 = vst [vmem:[%s2895 + $0x2f] sm:$0xfe] %v2891
      %2909 = vst [vmem:[%s2895 + $0x37] sm:$0x1] %v2892
      %2910 = vst [vmem:[%s2895 + $0x37] sm:$0xfe] %v2893
      %2911 = vst [vmem:[%s2895 + $0x3f] sm:$0x1] %v2894
      %v2912 = vld [vmem:[%s1734] sm:$0xfc]
      %v2913 = vld [vmem:[%s1734 + $0x80] sm:$0x3]
      %v2914 = vld [vmem:[%s1734 + $0x100] sm:$0xfc]
      %v2915 = vld [vmem:[%s1734 + $0x180] sm:$0x3]
      %v2916 = vld [vmem:[%s1734 + $0x200] sm:$0xfc]
      %v2917 = vld [vmem:[%s1734 + $0x280] sm:$0x3]
      %v2918 = vld [vmem:[%s1734 + $0x300] sm:$0xfc]
      %v2919 = vld [vmem:[%s1734 + $0x380] sm:$0x3]
      %v2920 = vld [vmem:[%s1734 + $0x400] sm:$0xfc]
      %v2921 = vld [vmem:[%s1734 + $0x480] sm:$0x3]
      %v2922 = vld [vmem:[%s1734 + $0x500] sm:$0xfc]
      %v2923 = vld [vmem:[%s1734 + $0x580] sm:$0x3]
      %v2924 = vld [vmem:[%s1734 + $0x600] sm:$0xfc]
      %v2925 = vld [vmem:[%s1734 + $0x680] sm:$0x3]
      %v2926 = vld [vmem:[%s1734 + $0x700] sm:$0xfc]
      %v2927 = vld [vmem:[%s1734 + $0x780] sm:$0x3]
      %v2928 = vadd.f32 %v2912, 0.0
      %v2929 = vadd.f32 %v2913, 0.0
      %v2930 = vadd.f32 %v2914, 0.0
      %v2931 = vadd.f32 %v2915, 0.0
      %v2932 = vadd.f32 %v2916, 0.0
      %v2933 = vadd.f32 %v2917, 0.0
      %v2934 = vadd.f32 %v2918, 0.0
      %v2935 = vadd.f32 %v2919, 0.0
      %v2936 = vadd.f32 %v2920, 0.0
      %v2937 = vadd.f32 %v2921, 0.0
      %v2938 = vadd.f32 %v2922, 0.0
      %v2939 = vadd.f32 %v2923, 0.0
      %v2940 = vadd.f32 %v2924, 0.0
      %v2941 = vadd.f32 %v2925, 0.0
      %v2942 = vadd.f32 %v2926, 0.0
      %v2943 = vadd.f32 %v2927, 0.0
      %v2944 = vld [vmem:[%s1734 + $0x10] sm:$0xfe]
      %v2945 = vld [vmem:[%s1734 + $0x90] sm:$0x1]
      %v2946 = vld [vmem:[%s1734 + $0x110] sm:$0xfe]
      %v2947 = vld [vmem:[%s1734 + $0x190] sm:$0x1]
      %v2948 = vld [vmem:[%s1734 + $0x210] sm:$0xfe]
      %v2949 = vld [vmem:[%s1734 + $0x290] sm:$0x1]
      %v2950 = vld [vmem:[%s1734 + $0x310] sm:$0xfe]
      %v2951 = vld [vmem:[%s1734 + $0x390] sm:$0x1]
      %v2952 = vld [vmem:[%s1734 + $0x410] sm:$0xfe]
      %v2953 = vld [vmem:[%s1734 + $0x490] sm:$0x1]
      %v2954 = vld [vmem:[%s1734 + $0x510] sm:$0xfe]
      %v2955 = vld [vmem:[%s1734 + $0x590] sm:$0x1]
      %v2956 = vld [vmem:[%s1734 + $0x610] sm:$0xfe]
      %v2957 = vld [vmem:[%s1734 + $0x690] sm:$0x1]
      %v2958 = vld [vmem:[%s1734 + $0x710] sm:$0xfe]
      %v2959 = vld [vmem:[%s1734 + $0x790] sm:$0x1]
      %v2976 = vrot.slane %v2944, 7
      %v2977 = vrot.slane %v2945, 7
      %v2978 = vsel %vm2509, %v2976, %v2977
      %v2979 = vrot.slane %v2946, 7
      %v2980 = vrot.slane %v2947, 7
      %v2981 = vsel %vm2509, %v2979, %v2980
      %v2982 = vrot.slane %v2948, 7
      %v2983 = vrot.slane %v2949, 7
      %v2984 = vsel %vm2509, %v2982, %v2983
      %v2985 = vrot.slane %v2950, 7
      %v2986 = vrot.slane %v2951, 7
      %v2987 = vsel %vm2509, %v2985, %v2986
      %v2988 = vrot.slane %v2952, 7
      %v2989 = vrot.slane %v2953, 7
      %v2990 = vsel %vm2509, %v2988, %v2989
      %v2991 = vrot.slane %v2954, 7
      %v2992 = vrot.slane %v2955, 7
      %v2993 = vsel %vm2509, %v2991, %v2992
      %v2994 = vrot.slane %v2956, 7
      %v2995 = vrot.slane %v2957, 7
      %v2996 = vsel %vm2509, %v2994, %v2995
      %v2997 = vrot.slane %v2958, 7
      %v2998 = vrot.slane %v2959, 7
      %v2999 = vsel %vm2509, %v2997, %v2998
      %v3016 = vadd.f32 %v2928, %v2976
      %v3017 = vadd.f32 %v2929, %v2978
      %v3018 = vadd.f32 %v2930, %v2979
      %v3019 = vadd.f32 %v2931, %v2981
      %v3020 = vadd.f32 %v2932, %v2982
      %v3021 = vadd.f32 %v2933, %v2984
      %v3022 = vadd.f32 %v2934, %v2985
      %v3023 = vadd.f32 %v2935, %v2987
      %v3024 = vadd.f32 %v2936, %v2988
      %v3025 = vadd.f32 %v2937, %v2990
      %v3026 = vadd.f32 %v2938, %v2991
      %v3027 = vadd.f32 %v2939, %v2993
      %v3028 = vadd.f32 %v2940, %v2994
      %v3029 = vadd.f32 %v2941, %v2996
      %v3030 = vadd.f32 %v2942, %v2997
      %v3031 = vadd.f32 %v2943, %v2999
      %v3032 = vld [vmem:[%s1510 + $0x40] sm:$0xfc]
      %v3033 = vld [vmem:[%s1510 + $0xc0] sm:$0x3]
      %v3034 = vld [vmem:[%s1510 + $0x140] sm:$0xfc]
      %v3035 = vld [vmem:[%s1510 + $0x1c0] sm:$0x3]
      %v3036 = vld [vmem:[%s1510 + $0x240] sm:$0xfc]
      %v3037 = vld [vmem:[%s1510 + $0x2c0] sm:$0x3]
      %v3038 = vld [vmem:[%s1510 + $0x340] sm:$0xfc]
      %v3039 = vld [vmem:[%s1510 + $0x3c0] sm:$0x3]
      %v3040 = vld [vmem:[%s1510 + $0x440] sm:$0xfc]
      %v3041 = vld [vmem:[%s1510 + $0x4c0] sm:$0x3]
      %v3042 = vld [vmem:[%s1510 + $0x540] sm:$0xfc]
      %v3043 = vld [vmem:[%s1510 + $0x5c0] sm:$0x3]
      %v3044 = vld [vmem:[%s1510 + $0x640] sm:$0xfc]
      %v3045 = vld [vmem:[%s1510 + $0x6c0] sm:$0x3]
      %v3046 = vld [vmem:[%s1510 + $0x740] sm:$0xfc]
      %v3047 = vld [vmem:[%s1510 + $0x7c0] sm:$0x3]
      %v3048 = vadd.f32 %v3016, %v3032
      %v3049 = vadd.f32 %v3017, %v3033
      %v3050 = vadd.f32 %v3018, %v3034
      %v3051 = vadd.f32 %v3019, %v3035
      %v3052 = vadd.f32 %v3020, %v3036
      %v3053 = vadd.f32 %v3021, %v3037
      %v3054 = vadd.f32 %v3022, %v3038
      %v3055 = vadd.f32 %v3023, %v3039
      %v3056 = vadd.f32 %v3024, %v3040
      %v3057 = vadd.f32 %v3025, %v3041
      %v3058 = vadd.f32 %v3026, %v3042
      %v3059 = vadd.f32 %v3027, %v3043
      %v3060 = vadd.f32 %v3028, %v3044
      %v3061 = vadd.f32 %v3029, %v3045
      %v3062 = vadd.f32 %v3030, %v3046
      %v3063 = vadd.f32 %v3031, %v3047
      %v3064 = vld [vmem:[%s1510 + $0x50] sm:$0xfe]
      %v3065 = vld [vmem:[%s1510 + $0xd0] sm:$0x1]
      %v3066 = vld [vmem:[%s1510 + $0x150] sm:$0xfe]
      %v3067 = vld [vmem:[%s1510 + $0x1d0] sm:$0x1]
      %v3068 = vld [vmem:[%s1510 + $0x250] sm:$0xfe]
      %v3069 = vld [vmem:[%s1510 + $0x2d0] sm:$0x1]
      %v3070 = vld [vmem:[%s1510 + $0x350] sm:$0xfe]
      %v3071 = vld [vmem:[%s1510 + $0x3d0] sm:$0x1]
      %v3072 = vld [vmem:[%s1510 + $0x450] sm:$0xfe]
      %v3073 = vld [vmem:[%s1510 + $0x4d0] sm:$0x1]
      %v3074 = vld [vmem:[%s1510 + $0x550] sm:$0xfe]
      %v3075 = vld [vmem:[%s1510 + $0x5d0] sm:$0x1]
      %v3076 = vld [vmem:[%s1510 + $0x650] sm:$0xfe]
      %v3077 = vld [vmem:[%s1510 + $0x6d0] sm:$0x1]
      %v3078 = vld [vmem:[%s1510 + $0x750] sm:$0xfe]
      %v3079 = vld [vmem:[%s1510 + $0x7d0] sm:$0x1]
      %v3096 = vrot.slane %v3064, 7
      %v3097 = vrot.slane %v3065, 7
      %v3098 = vsel %vm2509, %v3096, %v3097
      %v3099 = vrot.slane %v3066, 7
      %v3100 = vrot.slane %v3067, 7
      %v3101 = vsel %vm2509, %v3099, %v3100
      %v3102 = vrot.slane %v3068, 7
      %v3103 = vrot.slane %v3069, 7
      %v3104 = vsel %vm2509, %v3102, %v3103
      %v3105 = vrot.slane %v3070, 7
      %v3106 = vrot.slane %v3071, 7
      %v3107 = vsel %vm2509, %v3105, %v3106
      %v3108 = vrot.slane %v3072, 7
      %v3109 = vrot.slane %v3073, 7
      %v3110 = vsel %vm2509, %v3108, %v3109
      %v3111 = vrot.slane %v3074, 7
      %v3112 = vrot.slane %v3075, 7
      %v3113 = vsel %vm2509, %v3111, %v3112
      %v3114 = vrot.slane %v3076, 7
      %v3115 = vrot.slane %v3077, 7
      %v3116 = vsel %vm2509, %v3114, %v3115
      %v3117 = vrot.slane %v3078, 7
      %v3118 = vrot.slane %v3079, 7
      %v3119 = vsel %vm2509, %v3117, %v3118
      %v3136 = vadd.f32 %v3048, %v3096
      %v3137 = vadd.f32 %v3049, %v3098
      %v3138 = vadd.f32 %v3050, %v3099
      %v3139 = vadd.f32 %v3051, %v3101
      %v3140 = vadd.f32 %v3052, %v3102
      %v3141 = vadd.f32 %v3053, %v3104
      %v3142 = vadd.f32 %v3054, %v3105
      %v3143 = vadd.f32 %v3055, %v3107
      %v3144 = vadd.f32 %v3056, %v3108
      %v3145 = vadd.f32 %v3057, %v3110
      %v3146 = vadd.f32 %v3058, %v3111
      %v3147 = vadd.f32 %v3059, %v3113
      %v3148 = vadd.f32 %v3060, %v3114
      %v3149 = vadd.f32 %v3061, %v3116
      %v3150 = vadd.f32 %v3062, %v3117
      %v3151 = vadd.f32 %v3063, %v3119
      %v3152 = vtanh.pop %v3136
      %v3153 = vtanh.pop %v3137
      %v3154 = vtanh.pop %v3138
      %v3155 = vtanh.pop %v3139
      %v3156 = vtanh.pop %v3140
      %v3157 = vtanh.pop %v3141
      %v3158 = vtanh.pop %v3142
      %v3159 = vtanh.pop %v3143
      %v3160 = vtanh.pop %v3144
      %v3161 = vtanh.pop %v3145
      %v3162 = vtanh.pop %v3146
      %v3163 = vtanh.pop %v3147
      %v3164 = vtanh.pop %v3148
      %v3165 = vtanh.pop %v3149
      %v3166 = vtanh.pop %v3150
      %v3167 = vtanh.pop %v3151
      %s3168 = scalar_lea.vmem %s172, 192
      %3169 = vst [vmem:[%s3168 - $0x2] sm:$0xfc] %v3152
      %3170 = vst [vmem:[%s3168 + $0x6] sm:$0x3] %v3153
      %3171 = vst [vmem:[%s3168 + $0x6] sm:$0xfc] %v3154
      %3172 = vst [vmem:[%s3168 + $0xe] sm:$0x3] %v3155
      %3173 = vst [vmem:[%s3168 + $0xe] sm:$0xfc] %v3156
      %3174 = vst [vmem:[%s3168 + $0x16] sm:$0x3] %v3157
      %3175 = vst [vmem:[%s3168 + $0x16] sm:$0xfc] %v3158
      %3176 = vst [vmem:[%s3168 + $0x1e] sm:$0x3] %v3159
      %3177 = vst [vmem:[%s3168 + $0x1e] sm:$0xfc] %v3160
      %3178 = vst [vmem:[%s3168 + $0x26] sm:$0x3] %v3161
      %3179 = vst [vmem:[%s3168 + $0x26] sm:$0xfc] %v3162
      %3180 = vst [vmem:[%s3168 + $0x2e] sm:$0x3] %v3163
      %3181 = vst [vmem:[%s3168 + $0x2e] sm:$0xfc] %v3164
      %3182 = vst [vmem:[%s3168 + $0x36] sm:$0x3] %v3165
      %3183 = vst [vmem:[%s3168 + $0x36] sm:$0xfc] %v3166
      %3184 = vst [vmem:[%s3168 + $0x3e] sm:$0x3] %v3167
      %s3185 = smul.u32 4, %s14
      %p3186 = scmp.lt.s32.totalorder %s3185, 7
      %s3187 = scalar_select %p3186, %s3185, 7
      %s3188 = smul.addr %s3187, 8
      %s3189 = smul.addr %s3188, 8
      %s3190 = scalar_lea.vmem %s3, %s3189
      // Predicated region
      $region33: #{dcgan_g_forward.5} parent=31 // pred_check
        %p3191 = pneg %p100
      $region34: #{dcgan_g_forward.5} parent=31 // pred_check_branch
        %3193 = sbr.rel (%p3191) target = $region36
      $region35: #{dcgan_g_forward.5} parent=31 // pred_region
        %s3194 = smul.u32 4, %s14
      $region36: #{dcgan_g_forward.5} parent=31 // pred_fallthru
        _
    $region32: #{dcgan_g_forward.5} parent=5 // pred_fallthru
      _
    %p3195 = scmp.le.s32.totalorder 2, %s9
    // Predicated region
    $region37: #{dcgan_g_forward.5} parent=5 // pred_check
      %p3196 = pneg %p3195
    $region38: #{dcgan_g_forward.5} parent=5 // pred_check_branch
      %3198 = sbr.rel (%p3196) target = $region40
    $region39: #{dcgan_g_forward.5} parent=5 // pred_region
      %s3199 = ssub.s32 %s9, 2
      // Predicated region
      $region41: #{dcgan_g_forward.5} parent=39 // pred_check
        %p3200 = pneg %p106
      $region42: #{dcgan_g_forward.5} parent=39 // pred_check_branch
        %3202 = sbr.rel (%p3200) target = $region44
      $region43: #{dcgan_g_forward.5} parent=39 // pred_region
        %s3203 = smul.u32 4, %s15
        %p3204 = scmp.lt.s32.totalorder %s3203, 7
        %s3205 = scalar_select %p3204, %s3203, 7
        %s3206 = smul.addr %s3205, 8
        %s3207 = smul.addr %s3206, 8
        %s3208 = scalar_lea.vmem %s3, %s3207
      $region44: #{dcgan_g_forward.5} parent=39 // pred_fallthru
        _
    $region40: #{dcgan_g_forward.5} parent=5 // pred_fallthru
      _
  $region6: #{dcgan_g_forward.5} parent=0 // loop_footer
    %s13 = sadd.s32 1, %s9
  $region7: #{dcgan_g_forward.5} parent=0 // loop_footer_branch
    %8 = sbr.rel target = $region3
  $region8: #{dcgan_g_forward.5} parent=0 // loop_exit
    _

</llo_original>
